<compile_context>
chip_gen: v7x
topology: tpu7x:2x2x1
jax: 0.10.0
libtpu: 0.0.40
codegen_flags: <defaults>
</compile_context>

<pallas_src>
import functools

import jax
import jax.numpy as jnp
from jax import lax
from jax.experimental import pallas as pl
from jax.experimental.pallas import tpu as pltpu

_LANES = 128
_VMEM_LIMIT = 32 * 1024 * 1024  # safe on v5e/v6e (128 MiB) and v7x (64 MiB)


def _conv_tile(x_ref, w_ref, *, kh_sz, kw_sz, stride, oh, ow):
    """Fused im2col + matmul for one batch element.

    x_ref: (1, HP, WP, Cin) VMEM block; w_ref: (KH*KW, Cin, CoutP).
    Returns the conv output for this element as (OH*OW, CoutP) float32.
    """
    x = x_ref[0]                                   # (HP, WP, Cin)
    cin = x.shape[-1]
    coutp = w_ref.shape[-1]
    h_span = stride * (oh - 1) + 1
    w_span = stride * (ow - 1) + 1
    acc = jnp.zeros((oh * ow, coutp), jnp.float32)
    for kh in range(kh_sz):
        for kw in range(kw_sz):
            xs = x[kh:kh + h_span:stride, kw:kw + w_span:stride, :]  # (OH, OW, Cin)
            # OW is a multiple of 8, so this collapse into the sublane axis is a
            # pure re-tiling (no data movement).
            xs = xs.reshape(oh * ow, cin)
            acc += jnp.dot(xs, w_ref[kh * kw_sz + kw],
                           preferred_element_type=jnp.float32)
    return acc


def _conv_stats_kernel(x_ref, w_ref, stats_ref, *, kh_sz, kw_sz, stride, oh, ow):
    """Pass 1: per-channel sum / sum-of-squares of the conv output."""
    @pl.when(pl.program_id(0) == 0)
    def _():
        stats_ref[...] = jnp.zeros_like(stats_ref)

    y = _conv_tile(x_ref, w_ref, kh_sz=kh_sz, kw_sz=kw_sz,
                   stride=stride, oh=oh, ow=ow)
    stats_ref[0:1, :] += jnp.sum(y, axis=0, keepdims=True)
    stats_ref[1:2, :] += jnp.sum(y * y, axis=0, keepdims=True)


def _bn_lrelu_apply_kernel(x_ref, w_ref, stats_ref, gamma_ref, beta_ref, out_ref, *,
                           kh_sz, kw_sz, stride, oh, ow, m_total, eps,
                           negative_slope):
    """Pass 2: conv tile -> folded BN scale/shift -> LeakyReLU -> lane-dense store."""
    y = _conv_tile(x_ref, w_ref, kh_sz=kh_sz, kw_sz=kw_sz,
                   stride=stride, oh=oh, ow=ow)                       # (OH*OW, CoutP)
    inv_m = 1.0 / m_total
    mean = stats_ref[0:1, :] * inv_m                                  # (1, CoutP)
    var = jnp.maximum(stats_ref[1:2, :] * inv_m - mean * mean, 0.0)   # biased, clamped
    scale = gamma_ref[...] * lax.rsqrt(var + eps)                     # rsqrt on EUP
    shift = beta_ref[...] - mean * scale
    y = y * scale + shift                                             # folded BN affine
    out_ref[...] = jnp.where(y >= 0, y, negative_slope * y).astype(out_ref.dtype)


def conv_bn_lrelu(x_nchw, conv_w, conv_b, gamma, beta, *,
                  stride=1, padding=0, negative_slope=0.2, eps=1e-5):
    """Forward pass matching ConvBNLReLU.forward (training-mode BN)."""
    del conv_b  # conv bias is cancelled exactly by training-mode BatchNorm
    n, cin, h, w = x_nchw.shape
    cout, cin_w, kh, kw = conv_w.shape
    assert cin == cin_w
    oh = (h + 2 * padding - kh) // stride + 1
    ow = (w + 2 * padding - kw) // stride + 1
    m_total = n * oh * ow
    coutp = ((cout + _LANES - 1) // _LANES) * _LANES

    # NCHW -> padded NHWC (the only host-side data movement; no im2col blowup).
    x_nhwc = jnp.transpose(x_nchw, (0, 2, 3, 1)).astype(jnp.float32)
    x_pad = jnp.pad(x_nhwc,
                    ((0, 0), (padding, padding), (padding, padding), (0, 0)))
    hp, wp = h + 2 * padding, w + 2 * padding

    # (Cout, Cin, KH, KW) -> (KH*KW, Cin, CoutP), zero-padded to 128 lanes.
    w_mat = jnp.transpose(conv_w, (2, 3, 1, 0)).reshape(kh * kw, cin, cout)
    w_mat = jnp.pad(w_mat, ((0, 0), (0, 0), (0, coutp - cout))).astype(jnp.float32)
    gamma_row = jnp.pad(gamma.reshape(1, cout),
                        ((0, 0), (0, coutp - cout))).astype(jnp.float32)
    beta_row = jnp.pad(beta.reshape(1, cout),
                       ((0, 0), (0, coutp - cout))).astype(jnp.float32)

    x_spec = pl.BlockSpec((1, hp, wp, cin), lambda i: (i, 0, 0, 0))
    w_spec = pl.BlockSpec((kh * kw, cin, coutp), lambda i: (0, 0, 0))

    # --- Pass 1: BN training statistics (sum, sumsq) over the whole batch. ---
    stats_kernel = functools.partial(_conv_stats_kernel, kh_sz=kh, kw_sz=kw,
                                     stride=stride, oh=oh, ow=ow)
    stats = pl.pallas_call(
        stats_kernel,
        out_shape=jax.ShapeDtypeStruct((2, coutp), jnp.float32),
        grid=(n,),
        in_specs=[x_spec, w_spec],
        out_specs=pl.BlockSpec((2, coutp), lambda i: (0, 0)),
        compiler_params=pltpu.CompilerParams(
            dimension_semantics=("arbitrary",),   # stats accumulate across batch
            vmem_limit_bytes=_VMEM_LIMIT),
    )(x_pad, w_mat)

    # --- Pass 2: recompute conv, apply folded BN + LeakyReLU, store slab. ---
    apply_kernel = functools.partial(_bn_lrelu_apply_kernel, kh_sz=kh, kw_sz=kw,
                                     stride=stride, oh=oh, ow=ow, m_total=m_total,
                                     eps=eps, negative_slope=negative_slope)
    out_flat = pl.pallas_call(
        apply_kernel,
        out_shape=jax.ShapeDtypeStruct((n * oh * ow, coutp), x_nchw.dtype),
        grid=(n,),
        in_specs=[x_spec, w_spec,
                  pl.BlockSpec((2, coutp), lambda i: (0, 0)),
                  pl.BlockSpec((1, coutp), lambda i: (0, 0)),
                  pl.BlockSpec((1, coutp), lambda i: (0, 0))],
        out_specs=pl.BlockSpec((oh * ow, coutp), lambda i: (i, 0)),
        compiler_params=pltpu.CompilerParams(
            dimension_semantics=("parallel",),    # batch elements independent
            vmem_limit_bytes=_VMEM_LIMIT),
    )(x_pad, w_mat, stats, gamma_row, beta_row)

    # (M, CoutP) lane-dense slab -> drop channel padding -> NCHW.
    out = out_flat[:, :cout].reshape(n, oh, ow, cout)
    return jnp.transpose(out, (0, 3, 1, 2))


def _reference(x_nchw, conv_w, conv_b, gamma, beta,
               *, stride, padding, negative_slope, eps=1e-5):
    """Pure-JAX reference mirroring PyTorch semantics (training-mode BN)."""
    y = lax.conv_general_dilated(
        x_nchw, conv_w, window_strides=(stride, stride),
        padding=[(padding, padding), (padding, padding)],
        dimension_numbers=("NCHW", "OIHW", "NCHW"))
    y = y + conv_b[None, :, None, None]
    mean = jnp.mean(y, axis=(0, 2, 3), keepdims=True)
    var = jnp.mean((y - mean) ** 2, axis=(0, 2, 3), keepdims=True)
    y = (y - mean) / jnp.sqrt(var + eps)
    y = y * gamma[None, :, None, None] + beta[None, :, None, None]
    return jnp.where(y >= 0, y, negative_slope * y)


if __name__ == "__main__":
    # Module config: ConvBNLReLU(in_channels=4, out_channels=8, kerner_size=3,
    #                            stride=1, padding=1, negative_slope=0.2)
    N, CIN, H, W = 2, 4, 16, 16
    COUT, KH, KW = 8, 3, 3
    STRIDE, PADDING, NEG_SLOPE = 1, 1, 0.2

    key = jax.random.PRNGKey(0)
    kx, kw_, kb = jax.random.split(key, 3)

    x = jax.random.normal(kx, (N, CIN, H, W), dtype=jnp.float32)

    # Deterministic synthetic parameter init (shapes match nn.Conv2d / nn.BatchNorm2d).
    fan_in = CIN * KH * KW
    bound = 1.0 / (fan_in ** 0.5)
    conv_w = jax.random.uniform(kw_, (COUT, CIN, KH, KW),
                                minval=-bound, maxval=bound, dtype=jnp.float32)
    conv_b = jax.random.uniform(kb, (COUT,), minval=-bound, maxval=bound,
                                dtype=jnp.float32)
    gamma = jnp.ones((COUT,), jnp.float32)   # BatchNorm2d weight init
    beta = jnp.zeros((COUT,), jnp.float32)   # BatchNorm2d bias init

    out = conv_bn_lrelu(x, conv_w, conv_b, gamma, beta,
                        stride=STRIDE, padding=PADDING,
                        negative_slope=NEG_SLOPE)
    out = jax.block_until_ready(out)

    ref = _reference(x, conv_w, conv_b, gamma, beta,
                     stride=STRIDE, padding=PADDING, negative_slope=NEG_SLOPE)
    assert out.shape == (N, COUT, H, W), out.shape
    assert jnp.allclose(out, ref, atol=2e-3, rtol=2e-3), \
        float(jnp.max(jnp.abs(out - ref)))

    print("KERNEL_OK")
</pallas_src>

<mosaic_0001>
module attributes {stable_mosaic.version = 11 : i64} {
  func.func @_conv_stats_kernel(%arg0: i32, %arg1: memref<1x18x18x4xf32, #tpu.memory_space<vmem>>, %arg2: memref<9x4x128xf32, #tpu.memory_space<vmem>>, %arg3: memref<2x128xf32, #tpu.memory_space<vmem>>) attributes {dimension_semantics = [#tpu.dimension_semantics<arbitrary>], iteration_bounds = array<i64: 2>, scalar_prefetch = 0 : i64, scratch_operands = 0 : i64, tpu.core_type = #tpu.core_type<tc>, window_params = [{transform_indices = @transform_0, window_bounds = array<i64: 1, 18, 18, 4>}, {pipeline_mode = #tpu.pipeline_mode<synchronous>, transform_indices = @transform_1, window_bounds = array<i64: 9, 4, 128>}, {pipeline_mode = #tpu.pipeline_mode<synchronous>, transform_indices = @transform_2, window_bounds = array<i64: 2, 128>}]} {
    %c0_i32 = arith.constant 0 : i32
    %0 = arith.cmpi eq, %arg0, %c0_i32 : i32
    %1 = arith.extui %0 : i1 to i32
    %c0_i32_0 = arith.constant 0 : i32
    %2 = arith.cmpi ne, %1, %c0_i32_0 : i32
    scf.if %2 {
      %cst_42 = arith.constant 0.000000e+00 : f32
      %71 = vector.broadcast %cst_42 : f32 to vector<2x128xf32>
      %c0_43 = arith.constant 0 : index
      %c0_44 = arith.constant 0 : index
      %72 = vector.load %arg3[%c0_43, %c0_44] : memref<2x128xf32, #tpu.memory_space<vmem>>, vector<2x128xf32>
      tpu.vector_store %arg3[%c0_43, %c0_44], %71 {strides = array<i32>} : memref<2x128xf32, #tpu.memory_space<vmem>>, vector<2x128xf32>,
    } else {
    }
    %c0 = arith.constant 0 : index
    %c0_1 = arith.constant 0 : index
    %c0_2 = arith.constant 0 : index
    %c0_3 = arith.constant 0 : index
    %3 = vector.load %arg1[%c0, %c0_1, %c0_2, %c0_3] : memref<1x18x18x4xf32, #tpu.memory_space<vmem>>, vector<1x18x18x4xf32>
    %4 = vector.shape_cast %3 : vector<1x18x18x4xf32> to vector<18x18x4xf32>
    %cst = arith.constant 0.000000e+00 : f32
    %5 = vector.broadcast %cst : f32 to vector<256x128xf32>
    %6 = vector.extract_strided_slice %4 {offsets = [0, 0, 0], sizes = [16, 16, 4], strides = [1, 1, 1]} : vector<18x18x4xf32> to vector<16x16x4xf32>
    %7 = vector.shape_cast %6 : vector<16x16x4xf32> to vector<256x4xf32>
    %c0_4 = arith.constant 0 : index
    %c0_5 = arith.constant 0 : index
    %c0_6 = arith.constant 0 : index
    %8 = vector.load %arg2[%c0_4, %c0_5, %c0_6] : memref<9x4x128xf32, #tpu.memory_space<vmem>>, vector<1x4x128xf32>
    %9 = vector.shape_cast %8 : vector<1x4x128xf32> to vector<4x128xf32>
    %cst_7 = arith.constant dense<0.000000e+00> : vector<256x128xf32>
    %10 = tpu.matmul %7, %9, %cst_7 {dimension_numbers = #tpu.dot_dimension_numbers<[1], [0], [0], [1], [0, 0, 1, 1], [], []>} : vector<256x4xf32>, vector<4x128xf32>, vector<256x128xf32> -> vector<256x128xf32>
    %11 = arith.addf %5, %10 : vector<256x128xf32>
    %12 = vector.extract_strided_slice %4 {offsets = [0, 1, 0], sizes = [16, 16, 4], strides = [1, 1, 1]} : vector<18x18x4xf32> to vector<16x16x4xf32>
    %13 = vector.shape_cast %12 : vector<16x16x4xf32> to vector<256x4xf32>
    %c1 = arith.constant 1 : index
    %c0_8 = arith.constant 0 : index
    %c0_9 = arith.constant 0 : index
    %14 = vector.load %arg2[%c1, %c0_8, %c0_9] : memref<9x4x128xf32, #tpu.memory_space<vmem>>, vector<1x4x128xf32>
    %15 = vector.shape_cast %14 : vector<1x4x128xf32> to vector<4x128xf32>
    %cst_10 = arith.constant dense<0.000000e+00> : vector<256x128xf32>
    %16 = tpu.matmul %13, %15, %cst_10 {dimension_numbers = #tpu.dot_dimension_numbers<[1], [0], [0], [1], [0, 0, 1, 1], [], []>} : vector<256x4xf32>, vector<4x128xf32>, vector<256x128xf32> -> vector<256x128xf32>
    %17 = arith.addf %11, %16 : vector<256x128xf32>
    %18 = vector.extract_strided_slice %4 {offsets = [0, 2, 0], sizes = [16, 16, 4], strides = [1, 1, 1]} : vector<18x18x4xf32> to vector<16x16x4xf32>
    %19 = vector.shape_cast %18 : vector<16x16x4xf32> to vector<256x4xf32>
    %c2 = arith.constant 2 : index
    %c0_11 = arith.constant 0 : index
    %c0_12 = arith.constant 0 : index
    %20 = vector.load %arg2[%c2, %c0_11, %c0_12] : memref<9x4x128xf32, #tpu.memory_space<vmem>>, vector<1x4x128xf32>
    %21 = vector.shape_cast %20 : vector<1x4x128xf32> to vector<4x128xf32>
    %cst_13 = arith.constant dense<0.000000e+00> : vector<256x128xf32>
    %22 = tpu.matmul %19, %21, %cst_13 {dimension_numbers = #tpu.dot_dimension_numbers<[1], [0], [0], [1], [0, 0, 1, 1], [], []>} : vector<256x4xf32>, vector<4x128xf32>, vector<256x128xf32> -> vector<256x128xf32>
    %23 = arith.addf %17, %22 : vector<256x128xf32>
    %24 = vector.extract_strided_slice %4 {offsets = [1, 0, 0], sizes = [16, 16, 4], strides = [1, 1, 1]} : vector<18x18x4xf32> to vector<16x16x4xf32>
    %25 = vector.shape_cast %24 : vector<16x16x4xf32> to vector<256x4xf32>
    %c3 = arith.constant 3 : index
    %c0_14 = arith.constant 0 : index
    %c0_15 = arith.constant 0 : index
    %26 = vector.load %arg2[%c3, %c0_14, %c0_15] : memref<9x4x128xf32, #tpu.memory_space<vmem>>, vector<1x4x128xf32>
    %27 = vector.shape_cast %26 : vector<1x4x128xf32> to vector<4x128xf32>
    %cst_16 = arith.constant dense<0.000000e+00> : vector<256x128xf32>
    %28 = tpu.matmul %25, %27, %cst_16 {dimension_numbers = #tpu.dot_dimension_numbers<[1], [0], [0], [1], [0, 0, 1, 1], [], []>} : vector<256x4xf32>, vector<4x128xf32>, vector<256x128xf32> -> vector<256x128xf32>
    %29 = arith.addf %23, %28 : vector<256x128xf32>
    %30 = vector.extract_strided_slice %4 {offsets = [1, 1, 0], sizes = [16, 16, 4], strides = [1, 1, 1]} : vector<18x18x4xf32> to vector<16x16x4xf32>
    %31 = vector.shape_cast %30 : vector<16x16x4xf32> to vector<256x4xf32>
    %c4 = arith.constant 4 : index
    %c0_17 = arith.constant 0 : index
    %c0_18 = arith.constant 0 : index
    %32 = vector.load %arg2[%c4, %c0_17, %c0_18] : memref<9x4x128xf32, #tpu.memory_space<vmem>>, vector<1x4x128xf32>
    %33 = vector.shape_cast %32 : vector<1x4x128xf32> to vector<4x128xf32>
    %cst_19 = arith.constant dense<0.000000e+00> : vector<256x128xf32>
    %34 = tpu.matmul %31, %33, %cst_19 {dimension_numbers = #tpu.dot_dimension_numbers<[1], [0], [0], [1], [0, 0, 1, 1], [], []>} : vector<256x4xf32>, vector<4x128xf32>, vector<256x128xf32> -> vector<256x128xf32>
    %35 = arith.addf %29, %34 : vector<256x128xf32>
    %36 = vector.extract_strided_slice %4 {offsets = [1, 2, 0], sizes = [16, 16, 4], strides = [1, 1, 1]} : vector<18x18x4xf32> to vector<16x16x4xf32>
    %37 = vector.shape_cast %36 : vector<16x16x4xf32> to vector<256x4xf32>
    %c5 = arith.constant 5 : index
    %c0_20 = arith.constant 0 : index
    %c0_21 = arith.constant 0 : index
    %38 = vector.load %arg2[%c5, %c0_20, %c0_21] : memref<9x4x128xf32, #tpu.memory_space<vmem>>, vector<1x4x128xf32>
    %39 = vector.shape_cast %38 : vector<1x4x128xf32> to vector<4x128xf32>
    %cst_22 = arith.constant dense<0.000000e+00> : vector<256x128xf32>
    %40 = tpu.matmul %37, %39, %cst_22 {dimension_numbers = #tpu.dot_dimension_numbers<[1], [0], [0], [1], [0, 0, 1, 1], [], []>} : vector<256x4xf32>, vector<4x128xf32>, vector<256x128xf32> -> vector<256x128xf32>
    %41 = arith.addf %35, %40 : vector<256x128xf32>
    %42 = vector.extract_strided_slice %4 {offsets = [2, 0, 0], sizes = [16, 16, 4], strides = [1, 1, 1]} : vector<18x18x4xf32> to vector<16x16x4xf32>
    %43 = vector.shape_cast %42 : vector<16x16x4xf32> to vector<256x4xf32>
    %c6 = arith.constant 6 : index
    %c0_23 = arith.constant 0 : index
    %c0_24 = arith.constant 0 : index
    %44 = vector.load %arg2[%c6, %c0_23, %c0_24] : memref<9x4x128xf32, #tpu.memory_space<vmem>>, vector<1x4x128xf32>
    %45 = vector.shape_cast %44 : vector<1x4x128xf32> to vector<4x128xf32>
    %cst_25 = arith.constant dense<0.000000e+00> : vector<256x128xf32>
    %46 = tpu.matmul %43, %45, %cst_25 {dimension_numbers = #tpu.dot_dimension_numbers<[1], [0], [0], [1], [0, 0, 1, 1], [], []>} : vector<256x4xf32>, vector<4x128xf32>, vector<256x128xf32> -> vector<256x128xf32>
    %47 = arith.addf %41, %46 : vector<256x128xf32>
    %48 = vector.extract_strided_slice %4 {offsets = [2, 1, 0], sizes = [16, 16, 4], strides = [1, 1, 1]} : vector<18x18x4xf32> to vector<16x16x4xf32>
    %49 = vector.shape_cast %48 : vector<16x16x4xf32> to vector<256x4xf32>
    %c7 = arith.constant 7 : index
    %c0_26 = arith.constant 0 : index
    %c0_27 = arith.constant 0 : index
    %50 = vector.load %arg2[%c7, %c0_26, %c0_27] : memref<9x4x128xf32, #tpu.memory_space<vmem>>, vector<1x4x128xf32>
    %51 = vector.shape_cast %50 : vector<1x4x128xf32> to vector<4x128xf32>
    %cst_28 = arith.constant dense<0.000000e+00> : vector<256x128xf32>
    %52 = tpu.matmul %49, %51, %cst_28 {dimension_numbers = #tpu.dot_dimension_numbers<[1], [0], [0], [1], [0, 0, 1, 1], [], []>} : vector<256x4xf32>, vector<4x128xf32>, vector<256x128xf32> -> vector<256x128xf32>
    %53 = arith.addf %47, %52 : vector<256x128xf32>
    %54 = vector.extract_strided_slice %4 {offsets = [2, 2, 0], sizes = [16, 16, 4], strides = [1, 1, 1]} : vector<18x18x4xf32> to vector<16x16x4xf32>
    %55 = vector.shape_cast %54 : vector<16x16x4xf32> to vector<256x4xf32>
    %c8 = arith.constant 8 : index
    %c0_29 = arith.constant 0 : index
    %c0_30 = arith.constant 0 : index
    %56 = vector.load %arg2[%c8, %c0_29, %c0_30] : memref<9x4x128xf32, #tpu.memory_space<vmem>>, vector<1x4x128xf32>
    %57 = vector.shape_cast %56 : vector<1x4x128xf32> to vector<4x128xf32>
    %cst_31 = arith.constant dense<0.000000e+00> : vector<256x128xf32>
    %58 = tpu.matmul %55, %57, %cst_31 {dimension_numbers = #tpu.dot_dimension_numbers<[1], [0], [0], [1], [0, 0, 1, 1], [], []>} : vector<256x4xf32>, vector<4x128xf32>, vector<256x128xf32> -> vector<256x128xf32>
    %59 = arith.addf %53, %58 : vector<256x128xf32>
    %c0_32 = arith.constant 0 : index
    %c0_33 = arith.constant 0 : index
    %60 = vector.load %arg3[%c0_32, %c0_33] : memref<2x128xf32, #tpu.memory_space<vmem>>, vector<1x128xf32>
    %cst_34 = arith.constant dense<0.000000e+00> : vector<128xf32>
    %61 = vector.multi_reduction <add>, %59, %cst_34 [0] : vector<256x128xf32> to vector<128xf32>
    %62 = vector.shape_cast %61 : vector<128xf32> to vector<1x128xf32>
    %63 = arith.addf %60, %62 : vector<1x128xf32>
    %c0_35 = arith.constant 0 : index
    %c0_36 = arith.constant 0 : index
    %64 = vector.load %arg3[%c0_35, %c0_36] : memref<2x128xf32, #tpu.memory_space<vmem>>, vector<1x128xf32>
    tpu.vector_store %arg3[%c0_35, %c0_36], %63 {strides = array<i32>} : memref<2x128xf32, #tpu.memory_space<vmem>>, vector<1x128xf32>,
    %c1_37 = arith.constant 1 : index
    %c0_38 = arith.constant 0 : index
    %65 = vector.load %arg3[%c1_37, %c0_38] : memref<2x128xf32, #tpu.memory_space<vmem>>, vector<1x128xf32>
    %66 = arith.mulf %59, %59 : vector<256x128xf32>
    %cst_39 = arith.constant dense<0.000000e+00> : vector<128xf32>
    %67 = vector.multi_reduction <add>, %66, %cst_39 [0] : vector<256x128xf32> to vector<128xf32>
    %68 = vector.shape_cast %67 : vector<128xf32> to vector<1x128xf32>
    %69 = arith.addf %65, %68 : vector<1x128xf32>
    %c1_40 = arith.constant 1 : index
    %c0_41 = arith.constant 0 : index
    %70 = vector.load %arg3[%c1_40, %c0_41] : memref<2x128xf32, #tpu.memory_space<vmem>>, vector<1x128xf32>
    tpu.vector_store %arg3[%c1_40, %c0_41], %69 {strides = array<i32>} : memref<2x128xf32, #tpu.memory_space<vmem>>, vector<1x128xf32>,
    return
  }
  func.func @transform_0(%arg0: i32) -> (i32, i32, i32, i32) {
    %c0_i32 = arith.constant 0 : i32
    %c0_i32_0 = arith.constant 0 : i32
    %c0_i32_1 = arith.constant 0 : i32
    %c0_i32_2 = arith.constant 0 : i32
    return %arg0, %c0_i32, %c0_i32_0, %c0_i32_1 : i32, i32, i32, i32
  }
  func.func @transform_1(%arg0: i32) -> (i32, i32, i32) {
    %c0_i32 = arith.constant 0 : i32
    %c0_i32_0 = arith.constant 0 : i32
    %c0_i32_1 = arith.constant 0 : i32
    %c0_i32_2 = arith.constant 0 : i32
    return %c0_i32, %c0_i32_0, %c0_i32_1 : i32, i32, i32
  }
  func.func @transform_2(%arg0: i32) -> (i32, i32) {
    %c0_i32 = arith.constant 0 : i32
    %c0_i32_0 = arith.constant 0 : i32
    %c0_i32_1 = arith.constant 0 : i32
    return %c0_i32, %c0_i32_0 : i32, i32
  }
}

</mosaic_0001>

<llo_original>
// kernel: tpu_custom_call.1
$region0: #{tpu_custom_call.1}
  #allocation0 [shape = 'u32[]', space=smem, size = 0x4, offset = 0x4, fixed_abs, tag = 'smem constant byte address 0x4 - core index']
  #allocation1 [shape = 'u32[144,128]{1,0:T(1,128)}', space=vmem, size = 0x12000, scoped, tag = 'internal scratch']
  %s0 = inlined_call_operand.vmem [shape: f32[2,18,18,4], index: 0, kind: input, shape index: {}]
  %s1 = inlined_call_operand.vmem [shape: f32[9,4,128], index: 1, kind: input, shape index: {}]
  %s2 = inlined_call_operand.hbm [shape: f32[2,128], index: 2, kind: output, shape index: {}]
  %s3 = sld [smem:[#allocation0]]
  $region45: #{tpu_custom_call.1} parent=0
    _
  %s5 = ssub.s32 1, %s3
  %s6 = scalar_select 0, %s5, %s3
  $region1: #{tpu_custom_call.1} parent=0
    #allocation2 [shape = 'u8[1024]{0}', space=vmem, size = 0x400, scoped, tag = 'output window, operand 0, single buffered']
    #allocation3 [shape = 's32[2]{0}', space=sflag, size = 0x8, scoped, tag = 'scoped memory for tpu_custom_call.1']
    %7 = vsyncpa [#allocation3], 0
    loop: start=0, step=1, limit=4
    $region2: #{tpu_custom_call.1} parent=1 // loop_pre_header
      _
    $region3: #{tpu_custom_call.1} parent=1 // loop_header
      %s9 = sphi 0, %s13
      %p10 = scmp.ge.s32.totalorder %s9, 4
      %s19 = sphi 0, %s21
      %s22 = sphi 0, %s19
      %s23 = sphi 0, %s22
      %s39 = sphi 0, %s23
      %s43 = sphi 0, %s43
      %s45 = sphi 0, %s43
      %s46 = sphi 0, %s45
      %s60 = sphi 0, %s46
      %s64 = sphi 0, %s64
      %s66 = sphi 0, %s64
      %s67 = sphi 0, %s66
      %s81 = sphi 0, %s67
    $region4: #{tpu_custom_call.1} parent=1 // loop_header_branch
      %12 = sbr.rel (%p10) target = $region8
    $region5: #{tpu_custom_call.1} parent=1 // loop_body
      %s14 = ssub.s32 %s9, 1
      %s15 = ssub.s32 %s9, 2
      %s16 = sadd.s32 %s9, 1
      %s17 = ssub.s32 %s9, %s16
      %p18 = scmp.eq.s32.totalorder %s17, 0
      %s20 = sadd.s32 %s19, 1
      %s21 = scalar_select %p18, %s19, %s20
      %p24 = pneg %p18
      %p25 = scmp.eq.s32.totalorder %s9, 1
      %p26 = por %p24, %p25
      %p27 = scmp.ne.s32.totalorder %s19, %s22
      %p28 = scmp.eq.s32.totalorder %s9, 0
      %p29 = por %p27, %p28
      %p30 = scmp.ne.s32.totalorder %s19, %s22
      %p31 = scmp.eq.s32.totalorder %s14, 1
      %p32 = por %p30, %p31
      %p33 = scmp.ne.s32.totalorder %s22, %s23
      %p34 = scmp.eq.s32.totalorder %s14, 0
      %p35 = por %p33, %p34
      %p36 = scmp.ne.s32.totalorder %s22, %s23
      %p37 = scmp.eq.s32.totalorder %s15, 1
      %p38 = por %p36, %p37
      %p40 = scmp.ne.s32.totalorder %s23, %s39
      %p41 = scmp.eq.s32.totalorder %s15, 0
      %p42 = por %p40, %p41
      %s44 = sadd.s32 %s43, 1
      %p47 = scmp.eq.s32.totalorder %s9, 1
      %p48 = scmp.ne.s32.totalorder %s43, %s45
      %p49 = scmp.eq.s32.totalorder %s9, 0
      %p50 = por %p48, %p49
      %p51 = scmp.ne.s32.totalorder %s43, %s45
      %p52 = scmp.eq.s32.totalorder %s14, 1
      %p53 = por %p51, %p52
      %p54 = scmp.ne.s32.totalorder %s45, %s46
      %p55 = scmp.eq.s32.totalorder %s14, 0
      %p56 = por %p54, %p55
      %p57 = scmp.ne.s32.totalorder %s45, %s46
      %p58 = scmp.eq.s32.totalorder %s15, 1
      %p59 = por %p57, %p58
      %p61 = scmp.ne.s32.totalorder %s46, %s60
      %p62 = scmp.eq.s32.totalorder %s15, 0
      %p63 = por %p61, %p62
      %s65 = sadd.s32 %s64, 1
      %p68 = scmp.eq.s32.totalorder %s9, 1
      %p69 = scmp.ne.s32.totalorder %s64, %s66
      %p70 = scmp.eq.s32.totalorder %s9, 0
      %p71 = por %p69, %p70
      %p72 = scmp.ne.s32.totalorder %s64, %s66
      %p73 = scmp.eq.s32.totalorder %s14, 1
      %p74 = por %p72, %p73
      %p75 = scmp.ne.s32.totalorder %s66, %s67
      %p76 = scmp.eq.s32.totalorder %s14, 0
      %p77 = por %p75, %p76
      %p78 = scmp.ne.s32.totalorder %s66, %s67
      %p79 = scmp.eq.s32.totalorder %s15, 1
      %p80 = por %p78, %p79
      %p82 = scmp.ne.s32.totalorder %s67, %s81
      %p83 = scmp.eq.s32.totalorder %s15, 0
      %p84 = por %p82, %p83
      %p85 = scmp.le.s32.totalorder 1, %s9
      %p86 = scmp.lt.s32.totalorder %s9, 3
      %p87 = pnand %p85, %p86
      %p88 = pneg %p87
      // Predicated region
      $region9: #{tpu_custom_call.1} parent=5 // pred_check
        _
      $region10: #{tpu_custom_call.1} parent=5 // pred_check_branch
        %90 = sbr.rel (%p87) target = $region12
      $region11: #{tpu_custom_call.1} parent=5 // pred_region
        %s91 = ssub.s32 %s9, 1
        // Predicated region
        $region13: #{tpu_custom_call.1} parent=11 // pred_check
          %p92 = pneg %p56
        $region14: #{tpu_custom_call.1} parent=11 // pred_check_branch
          %94 = sbr.rel (%p92) target = $region16
        $region15: #{tpu_custom_call.1} parent=11 // pred_region
          _
        $region16: #{tpu_custom_call.1} parent=11 // pred_fallthru
          _
      $region12: #{tpu_custom_call.1} parent=5 // pred_fallthru
        _
      %p95 = scmp.lt.s32.totalorder %s9, 2
      // Predicated region
      $region17: #{tpu_custom_call.1} parent=5 // pred_check
        %p96 = pneg %p95
      $region18: #{tpu_custom_call.1} parent=5 // pred_check_branch
        %98 = sbr.rel (%p96) target = $region20
      $region19: #{tpu_custom_call.1} parent=5 // pred_region
        // Predicated region
        $region21: #{tpu_custom_call.1} parent=19 // pred_check
          %p99 = pneg %p29
        $region22: #{tpu_custom_call.1} parent=19 // pred_check_branch
          %101 = sbr.rel (%p99) target = $region24
        $region23: #{tpu_custom_call.1} parent=19 // pred_region
          %p102 = scmp.lt.s32.totalorder %s9, 1
          %s103 = scalar_select %p102, %s9, 1
          %s104 = smul.addr %s103, 54
          %s105 = smul.addr %s104, 8
          %s106 = scalar_lea.vmem %s0, %s105
        $region24: #{tpu_custom_call.1} parent=19 // pred_fallthru
          _
      $region20: #{tpu_custom_call.1} parent=5 // pred_fallthru
        _
      %p107 = scmp.le.s32.totalorder 1, %s9
      %p108 = scmp.lt.s32.totalorder %s9, 3
      %p109 = pnand %p107, %p108
      %p110 = pneg %p109
      // Predicated region
      $region25: #{tpu_custom_call.1} parent=5 // pred_check
        _
      $region26: #{tpu_custom_call.1} parent=5 // pred_check_branch
        %112 = sbr.rel (%p109) target = $region28
      $region27: #{tpu_custom_call.1} parent=5 // pred_region
        %s113 = ssub.s32 %s9, 1
        %p114 = scmp.lt.s32.totalorder %s14, 1
        %s115 = scalar_select %p114, %s14, 1
        %s116 = smul.addr %s115, 54
        %s117 = smul.addr %s116, 8
        %s118 = scalar_lea.vmem %s0, %s117
        %p119 = pneg %p35
        %p120 = pneg %p32
        %p121 = pneg %p56
        %p122 = pneg %p53
        %p123 = pneg %p77
        %p124 = pneg %p74
        %p125 = scmp.lt.s32.totalorder %s14, 1
        %s126 = scalar_select %p125, %s14, 1
        %s127 = smul.addr %s126, 54
        %s128 = smul.addr %s127, 8
        %s129 = scalar_lea.vmem %s0, %s128
        %p130 = scmp.eq.s32.totalorder %s14, 0
        // Predicated region
        $region29: #{tpu_custom_call.1} parent=27 // pred_check
          %p131 = pneg %p130
        $region30: #{tpu_custom_call.1} parent=27 // pred_check_branch
          %133 = sbr.rel (%p131) target = $region32
        $region31: #{tpu_custom_call.1} parent=27 // pred_region
          %134 = vst [vmem:[#allocation2] sm:$0x3] 0.0
        $region32: #{tpu_custom_call.1} parent=27 // pred_fallthru
          _
        %v135 = vld [vmem:[%s129] sm:$0xff]
        %v136 = vld [vmem:[%s129 + $0x8] sm:$0xff]
        %v137 = vld [vmem:[%s129 + $0x10] sm:$0x3]
        %v138 = vld [vmem:[%s129 + $0x18] sm:$0xff]
        %v139 = vld [vmem:[%s129 + $0x20] sm:$0xff]
        %v140 = vld [vmem:[%s129 + $0x28] sm:$0x3]
        %v141 = vld [vmem:[%s129 + $0x30] sm:$0xff]
        %v142 = vld [vmem:[%s129 + $0x38] sm:$0xff]
        %v143 = vld [vmem:[%s129 + $0x40] sm:$0x3]
        %v144 = vld [vmem:[%s129 + $0x48] sm:$0xff]
        %v145 = vld [vmem:[%s129 + $0x50] sm:$0xff]
        %v146 = vld [vmem:[%s129 + $0x58] sm:$0x3]
        %v147 = vld [vmem:[%s129 + $0x60] sm:$0xff]
        %v148 = vld [vmem:[%s129 + $0x68] sm:$0xff]
        %v149 = vld [vmem:[%s129 + $0x70] sm:$0x3]
        %v150 = vld [vmem:[%s129 + $0x78] sm:$0xff]
        %v151 = vld [vmem:[%s129 + $0x80] sm:$0xff]
        %v152 = vld [vmem:[%s129 + $0x88] sm:$0x3]
        %v153 = vld [vmem:[%s129 + $0x90] sm:$0xff]
        %v154 = vld [vmem:[%s129 + $0x98] sm:$0xff]
        %v155 = vld [vmem:[%s129 + $0xa0] sm:$0x3]
        %v156 = vld [vmem:[%s129 + $0xa8] sm:$0xff]
        %v157 = vld [vmem:[%s129 + $0xb0] sm:$0xff]
        %v158 = vld [vmem:[%s129 + $0xb8] sm:$0x3]
        %v159 = vld [vmem:[%s129 + $0xc0] sm:$0xff]
        %v160 = vld [vmem:[%s129 + $0xc8] sm:$0xff]
        %v161 = vld [vmem:[%s129 + $0xd0] sm:$0x3]
        %v162 = vld [vmem:[%s129 + $0xd8] sm:$0xff]
        %v163 = vld [vmem:[%s129 + $0xe0] sm:$0xff]
        %v164 = vld [vmem:[%s129 + $0xe8] sm:$0x3]
        %v165 = vld [vmem:[%s129 + $0xf0] sm:$0xff]
        %v166 = vld [vmem:[%s129 + $0xf8] sm:$0xff]
        %v167 = vld [vmem:[%s129 + $0x100] sm:$0x3]
        %v168 = vld [vmem:[%s129 + $0x108] sm:$0xff]
        %v169 = vld [vmem:[%s129 + $0x110] sm:$0xff]
        %v170 = vld [vmem:[%s129 + $0x118] sm:$0x3]
        %v171 = vld [vmem:[%s129 + $0x120] sm:$0xff]
        %v172 = vld [vmem:[%s129 + $0x128] sm:$0xff]
        %v173 = vld [vmem:[%s129 + $0x130] sm:$0x3]
        %v174 = vld [vmem:[%s129 + $0x138] sm:$0xff]
        %v175 = vld [vmem:[%s129 + $0x140] sm:$0xff]
        %v176 = vld [vmem:[%s129 + $0x148] sm:$0x3]
        %v177 = vld [vmem:[%s129 + $0x150] sm:$0xff]
        %v178 = vld [vmem:[%s129 + $0x158] sm:$0xff]
        %v179 = vld [vmem:[%s129 + $0x160] sm:$0x3]
        %v180 = vld [vmem:[%s129 + $0x168] sm:$0xff]
        %v181 = vld [vmem:[%s129 + $0x170] sm:$0xff]
        %v182 = vld [vmem:[%s129 + $0x178] sm:$0x3]
        %v183 = vld [vmem:[%s129 + $0x180] sm:$0xff]
        %v184 = vld [vmem:[%s129 + $0x188] sm:$0xff]
        %v185 = vld [vmem:[%s129 + $0x190] sm:$0x3]
        %v186 = vld [vmem:[%s129 + $0x198] sm:$0xff]
        %v187 = vld [vmem:[%s129 + $0x1a0] sm:$0xff]
        %v188 = vld [vmem:[%s129 + $0x1a8] sm:$0x3]
        %v189 = vld [vmem:[%s1] sm:$0xf]
        %vm238 = vcmask 1046528
        %v239 = vrot.slane %v135, 1
        %v240 = vrot.slane %v136, 1
        %v241 = vsel %vm238, %v239, %v240
        %v242 = vrot.slane %v137, 1
        %v243 = vsel %vm238, %v240, %v242
        %v244 = vrot.slane %v138, 1
        %v245 = vrot.slane %v139, 1
        %v246 = vsel %vm238, %v244, %v245
        %v247 = vrot.slane %v140, 1
        %v248 = vsel %vm238, %v245, %v247
        %v249 = vrot.slane %v141, 1
        %v250 = vrot.slane %v142, 1
        %v251 = vsel %vm238, %v249, %v250
        %v252 = vrot.slane %v143, 1
        %v253 = vsel %vm238, %v250, %v252
        %v254 = vrot.slane %v144, 1
        %v255 = vrot.slane %v145, 1
        %v256 = vsel %vm238, %v254, %v255
        %v257 = vrot.slane %v146, 1
        %v258 = vsel %vm238, %v255, %v257
        %v259 = vrot.slane %v147, 1
        %v260 = vrot.slane %v148, 1
        %v261 = vsel %vm238, %v259, %v260
        %v262 = vrot.slane %v149, 1
        %v263 = vsel %vm238, %v260, %v262
        %v264 = vrot.slane %v150, 1
        %v265 = vrot.slane %v151, 1
        %v266 = vsel %vm238, %v264, %v265
        %v267 = vrot.slane %v152, 1
        %v268 = vsel %vm238, %v265, %v267
        %v269 = vrot.slane %v153, 1
        %v270 = vrot.slane %v154, 1
        %v271 = vsel %vm238, %v269, %v270
        %v272 = vrot.slane %v155, 1
        %v273 = vsel %vm238, %v270, %v272
        %v274 = vrot.slane %v156, 1
        %v275 = vrot.slane %v157, 1
        %v276 = vsel %vm238, %v274, %v275
        %v277 = vrot.slane %v158, 1
        %v278 = vsel %vm238, %v275, %v277
        %v279 = vrot.slane %v159, 1
        %v280 = vrot.slane %v160, 1
        %v281 = vsel %vm238, %v279, %v280
        %v282 = vrot.slane %v161, 1
        %v283 = vsel %vm238, %v280, %v282
        %v284 = vrot.slane %v162, 1
        %v285 = vrot.slane %v163, 1
        %v286 = vsel %vm238, %v284, %v285
        %v287 = vrot.slane %v164, 1
        %v288 = vsel %vm238, %v285, %v287
        %v289 = vrot.slane %v165, 1
        %v290 = vrot.slane %v166, 1
        %v291 = vsel %vm238, %v289, %v290
        %v292 = vrot.slane %v167, 1
        %v293 = vsel %vm238, %v290, %v292
        %v294 = vrot.slane %v168, 1
        %v295 = vrot.slane %v169, 1
        %v296 = vsel %vm238, %v294, %v295
        %v297 = vrot.slane %v170, 1
        %v298 = vsel %vm238, %v295, %v297
        %v299 = vrot.slane %v171, 1
        %v300 = vrot.slane %v172, 1
        %v301 = vsel %vm238, %v299, %v300
        %v302 = vrot.slane %v173, 1
        %v303 = vsel %vm238, %v300, %v302
        %v304 = vrot.slane %v174, 1
        %v305 = vrot.slane %v175, 1
        %v306 = vsel %vm238, %v304, %v305
        %v307 = vrot.slane %v176, 1
        %v308 = vsel %vm238, %v305, %v307
        %v309 = vrot.slane %v177, 1
        %v310 = vrot.slane %v178, 1
        %v311 = vsel %vm238, %v309, %v310
        %v312 = vrot.slane %v179, 1
        %v313 = vsel %vm238, %v310, %v312
        %v314 = vrot.slane %v180, 1
        %v315 = vrot.slane %v181, 1
        %v316 = vsel %vm238, %v314, %v315
        %v317 = vrot.slane %v182, 1
        %v318 = vsel %vm238, %v315, %v317
        %s319 = scalar_lea.vmem %s1, 4
        %v320 = vld [vmem:[%s319] sm:$0xf]
        %vm321 = vcmask 31744
        %v322 = vsel %vm321, %v241, 0
        %v324 = vsel %vm321, %v243, 0
        %v326 = vsel %vm321, %v246, 0
        %v328 = vsel %vm321, %v248, 0
        %v330 = vsel %vm321, %v251, 0
        %v332 = vsel %vm321, %v253, 0
        %v334 = vsel %vm321, %v256, 0
        %v336 = vsel %vm321, %v258, 0
        %v338 = vsel %vm321, %v261, 0
        %v340 = vsel %vm321, %v263, 0
        %v342 = vsel %vm321, %v266, 0
        %v344 = vsel %vm321, %v268, 0
        %v346 = vsel %vm321, %v271, 0
        %v348 = vsel %vm321, %v273, 0
        %v350 = vsel %vm321, %v276, 0
        %v352 = vsel %vm321, %v278, 0
        %v354 = vsel %vm321, %v281, 0
        %v356 = vsel %vm321, %v283, 0
        %v358 = vsel %vm321, %v286, 0
        %v360 = vsel %vm321, %v288, 0
        %v362 = vsel %vm321, %v291, 0
        %v364 = vsel %vm321, %v293, 0
        %v366 = vsel %vm321, %v296, 0
        %v368 = vsel %vm321, %v298, 0
        %v370 = vsel %vm321, %v301, 0
        %v372 = vsel %vm321, %v303, 0
        %v374 = vsel %vm321, %v306, 0
        %v376 = vsel %vm321, %v308, 0
        %v378 = vsel %vm321, %v311, 0
        %v380 = vsel %vm321, %v313, 0
        %v382 = vsel %vm321, %v316, 0
        %v384 = vsel %vm321, %v318, 0
        %vm386 = vcmask 1043456
        %v388 = vsel %vm386, %v320, 0
        %390 = vmatprep.subr.mxu0 0.0
        %391 = vmatpush1.msra.mxu0 %v388
        %392 = vmatprep.subr.mxu0 0.0
        %393 = vmatpush1.msra.mxu0 0.0
        %394 = vmatprep.subr.mxu0 0.0
        %395 = vmatpush1.msra.mxu0 0.0
        %396 = vmatprep.subr.mxu0 0.0
        %397 = vmatpush1.msra.mxu0 0.0
        %398 = vmatprep.subr.mxu0 0.0
        %399 = vmatpush1.msra.mxu0 0.0
        %400 = vmatprep.subr.mxu0 0.0
        %401 = vmatpush1.msra.mxu0 0.0
        %402 = vmatprep.subr.mxu0 0.0
        %403 = vmatpush1.msra.mxu0 0.0
        %404 = vmatprep.subr.mxu0 0.0
        %405 = vmatpush1.msra.mxu0 0.0
        %406 = vmatprep.subr.mxu0 0.0
        %407 = vmatpush1.msra.mxu0 0.0
        %408 = vmatprep.subr.mxu0 0.0
        %409 = vmatpush1.msra.mxu0 0.0
        %410 = vmatprep.subr.mxu0 0.0
        %411 = vmatpush1.msra.mxu0 0.0
        %412 = vmatprep.subr.mxu0 0.0
        %413 = vmatpush1.msra.mxu0 0.0
        %414 = vmatprep.subr.mxu0 0.0
        %415 = vmatpush1.msra.mxu0 0.0
        %416 = vmatprep.subr.mxu0 0.0
        %417 = vmatpush1.msra.mxu0 0.0
        %418 = vmatprep.subr.mxu0 0.0
        %419 = vmatpush1.msra.mxu0 0.0
        %420 = vmatprep.subr.mxu0 0.0
        %421 = vmatpush1.msra.mxu0 0.0
        %422 = vmatprep.subr.mxu0 0.0
        %423 = vmatpush1.msra.mxu0 0.0
        %424 = vmatprep.subr.mxu0 0.0
        %425 = vmatpush1.msra.mxu0 0.0
        %426 = vmatprep.subr.mxu0 0.0
        %427 = vmatpush1.msra.mxu0 0.0
        %428 = vmatprep.subr.mxu0 0.0
        %429 = vmatpush1.msra.mxu0 0.0
        %430 = vmatprep.subr.mxu0 0.0
        %431 = vmatpush1.msra.mxu0 0.0
        %432 = vmatprep.subr.mxu0 0.0
        %433 = vmatpush1.msra.mxu0 0.0
        %434 = vmatprep.subr.mxu0 0.0
        %435 = vmatpush1.msra.mxu0 0.0
        %436 = vmatprep.subr.mxu0 0.0
        %437 = vmatpush1.msra.mxu0 0.0
        %438 = vmatprep.subr.mxu0 0.0
        %439 = vmatpush1.msra.mxu0 0.0
        %440 = vmatprep.subr.mxu0 0.0
        %441 = vmatpush1.msra.mxu0 0.0
        %442 = vmatprep.subr.mxu0 0.0
        %443 = vmatpush1.msra.mxu0 0.0
        %444 = vmatprep.subr.mxu0 0.0
        %445 = vmatpush1.msra.mxu0 0.0
        %446 = vmatprep.subr.mxu0 0.0
        %447 = vmatpush1.msra.mxu0 0.0
        %448 = vmatprep.subr.mxu0 0.0
        %449 = vmatpush1.msra.mxu0 0.0
        %450 = vmatprep.subr.mxu0 0.0
        %451 = vmatpush1.msra.mxu0 0.0
        %452 = vmatprep.subr.mxu0 0.0
        %453 = vmatpush1.msra.mxu0 0.0
        %454 = vmatprep.mubr.f32.mxu0 0.0
        %455 = vmatmul.mubr.f32.gmra.mrb[0].mxu0 %v322
        %v456 = vpop.f32.mrb[0].mxu0
        %v457 = vadd.f32 0.0, %v456
        %v458 = vpop.f32.mrb[0].mxu0
        %459 = vmatprep.mubr.f32.mxu0 0.0
        %460 = vmatmul.mubr.f32.gmra.mrb[0].mxu0 %v324
        %v461 = vpop.f32.mrb[0].mxu0
        %v462 = vadd.f32 0.0, %v461
        %v463 = vpop.f32.mrb[0].mxu0
        %464 = vmatprep.mubr.f32.mxu0 0.0
        %465 = vmatmul.mubr.f32.gmra.mrb[0].mxu0 %v326
        %v466 = vpop.f32.mrb[0].mxu0
        %v467 = vadd.f32 0.0, %v466
        %v468 = vpop.f32.mrb[0].mxu0
        %469 = vmatprep.mubr.f32.mxu0 0.0
        %470 = vmatmul.mubr.f32.gmra.mrb[0].mxu0 %v328
        %v471 = vpop.f32.mrb[0].mxu0
        %v472 = vadd.f32 0.0, %v471
        %v473 = vpop.f32.mrb[0].mxu0
        %474 = vmatprep.mubr.f32.mxu0 0.0
        %475 = vmatmul.mubr.f32.gmra.mrb[0].mxu0 %v330
        %v476 = vpop.f32.mrb[0].mxu0
        %v477 = vadd.f32 0.0, %v476
        %v478 = vpop.f32.mrb[0].mxu0
        %479 = vmatprep.mubr.f32.mxu0 0.0
        %480 = vmatmul.mubr.f32.gmra.mrb[0].mxu0 %v332
        %v481 = vpop.f32.mrb[0].mxu0
        %v482 = vadd.f32 0.0, %v481
        %v483 = vpop.f32.mrb[0].mxu0
        %484 = vmatprep.mubr.f32.mxu0 0.0
        %485 = vmatmul.mubr.f32.gmra.mrb[0].mxu0 %v334
        %v486 = vpop.f32.mrb[0].mxu0
        %v487 = vadd.f32 0.0, %v486
        %v488 = vpop.f32.mrb[0].mxu0
        %489 = vmatprep.mubr.f32.mxu0 0.0
        %490 = vmatmul.mubr.f32.gmra.mrb[0].mxu0 %v336
        %v491 = vpop.f32.mrb[0].mxu0
        %v492 = vadd.f32 0.0, %v491
        %v493 = vpop.f32.mrb[0].mxu0
        %494 = vmatprep.mubr.f32.mxu0 0.0
        %495 = vmatmul.mubr.f32.gmra.mrb[0].mxu0 %v338
        %v496 = vpop.f32.mrb[0].mxu0
        %v497 = vadd.f32 0.0, %v496
        %v498 = vpop.f32.mrb[0].mxu0
        %499 = vmatprep.mubr.f32.mxu0 0.0
        %500 = vmatmul.mubr.f32.gmra.mrb[0].mxu0 %v340
        %v501 = vpop.f32.mrb[0].mxu0
        %v502 = vadd.f32 0.0, %v501
        %v503 = vpop.f32.mrb[0].mxu0
        %504 = vmatprep.mubr.f32.mxu0 0.0
        %505 = vmatmul.mubr.f32.gmra.mrb[0].mxu0 %v342
        %v506 = vpop.f32.mrb[0].mxu0
        %v507 = vadd.f32 0.0, %v506
        %v508 = vpop.f32.mrb[0].mxu0
        %509 = vmatprep.mubr.f32.mxu0 0.0
        %510 = vmatmul.mubr.f32.gmra.mrb[0].mxu0 %v344
        %v511 = vpop.f32.mrb[0].mxu0
        %v512 = vadd.f32 0.0, %v511
        %v513 = vpop.f32.mrb[0].mxu0
        %514 = vmatprep.mubr.f32.mxu0 0.0
        %515 = vmatmul.mubr.f32.gmra.mrb[0].mxu0 %v346
        %v516 = vpop.f32.mrb[0].mxu0
        %v517 = vadd.f32 0.0, %v516
        %v518 = vpop.f32.mrb[0].mxu0
        %519 = vmatprep.mubr.f32.mxu0 0.0
        %520 = vmatmul.mubr.f32.gmra.mrb[0].mxu0 %v348
        %v521 = vpop.f32.mrb[0].mxu0
        %v522 = vadd.f32 0.0, %v521
        %v523 = vpop.f32.mrb[0].mxu0
        %524 = vmatprep.mubr.f32.mxu0 0.0
        %525 = vmatmul.mubr.f32.gmra.mrb[0].mxu0 %v350
        %v526 = vpop.f32.mrb[0].mxu0
        %v527 = vadd.f32 0.0, %v526
        %v528 = vpop.f32.mrb[0].mxu0
        %529 = vmatprep.mubr.f32.mxu0 0.0
        %530 = vmatmul.mubr.f32.gmra.mrb[0].mxu0 %v352
        %v531 = vpop.f32.mrb[0].mxu0
        %v532 = vadd.f32 0.0, %v531
        %v533 = vpop.f32.mrb[0].mxu0
        %534 = vmatprep.mubr.f32.mxu0 0.0
        %535 = vmatmul.mubr.f32.gmra.mrb[0].mxu0 %v354
        %v536 = vpop.f32.mrb[0].mxu0
        %v537 = vadd.f32 0.0, %v536
        %v538 = vpop.f32.mrb[0].mxu0
        %539 = vmatprep.mubr.f32.mxu0 0.0
        %540 = vmatmul.mubr.f32.gmra.mrb[0].mxu0 %v356
        %v541 = vpop.f32.mrb[0].mxu0
        %v542 = vadd.f32 0.0, %v541
        %v543 = vpop.f32.mrb[0].mxu0
        %544 = vmatprep.mubr.f32.mxu0 0.0
        %545 = vmatmul.mubr.f32.gmra.mrb[0].mxu0 %v358
        %v546 = vpop.f32.mrb[0].mxu0
        %v547 = vadd.f32 0.0, %v546
        %v548 = vpop.f32.mrb[0].mxu0
        %549 = vmatprep.mubr.f32.mxu0 0.0
        %550 = vmatmul.mubr.f32.gmra.mrb[0].mxu0 %v360
        %v551 = vpop.f32.mrb[0].mxu0
        %v552 = vadd.f32 0.0, %v551
        %v553 = vpop.f32.mrb[0].mxu0
        %554 = vmatprep.mubr.f32.mxu0 0.0
        %555 = vmatmul.mubr.f32.gmra.mrb[0].mxu0 %v362
        %v556 = vpop.f32.mrb[0].mxu0
        %v557 = vadd.f32 0.0, %v556
        %v558 = vpop.f32.mrb[0].mxu0
        %559 = vmatprep.mubr.f32.mxu0 0.0
        %560 = vmatmul.mubr.f32.gmra.mrb[0].mxu0 %v364
        %v561 = vpop.f32.mrb[0].mxu0
        %v562 = vadd.f32 0.0, %v561
        %v563 = vpop.f32.mrb[0].mxu0
        %564 = vmatprep.mubr.f32.mxu0 0.0
        %565 = vmatmul.mubr.f32.gmra.mrb[0].mxu0 %v366
        %v566 = vpop.f32.mrb[0].mxu0
        %v567 = vadd.f32 0.0, %v566
        %v568 = vpop.f32.mrb[0].mxu0
        %569 = vmatprep.mubr.f32.mxu0 0.0
        %570 = vmatmul.mubr.f32.gmra.mrb[0].mxu0 %v368
        %v571 = vpop.f32.mrb[0].mxu0
        %v572 = vadd.f32 0.0, %v571
        %v573 = vpop.f32.mrb[0].mxu0
        %574 = vmatprep.mubr.f32.mxu0 0.0
        %575 = vmatmul.mubr.f32.gmra.mrb[0].mxu0 %v370
        %v576 = vpop.f32.mrb[0].mxu0
        %v577 = vadd.f32 0.0, %v576
        %v578 = vpop.f32.mrb[0].mxu0
        %579 = vmatprep.mubr.f32.mxu0 0.0
        %580 = vmatmul.mubr.f32.gmra.mrb[0].mxu0 %v372
        %v581 = vpop.f32.mrb[0].mxu0
        %v582 = vadd.f32 0.0, %v581
        %v583 = vpop.f32.mrb[0].mxu0
        %584 = vmatprep.mubr.f32.mxu0 0.0
        %585 = vmatmul.mubr.f32.gmra.mrb[0].mxu0 %v374
        %v586 = vpop.f32.mrb[0].mxu0
        %v587 = vadd.f32 0.0, %v586
        %v588 = vpop.f32.mrb[0].mxu0
        %589 = vmatprep.mubr.f32.mxu0 0.0
        %590 = vmatmul.mubr.f32.gmra.mrb[0].mxu0 %v376
        %v591 = vpop.f32.mrb[0].mxu0
        %v592 = vadd.f32 0.0, %v591
        %v593 = vpop.f32.mrb[0].mxu0
        %594 = vmatprep.mubr.f32.mxu0 0.0
        %595 = vmatmul.mubr.f32.gmra.mrb[0].mxu0 %v378
        %v596 = vpop.f32.mrb[0].mxu0
        %v597 = vadd.f32 0.0, %v596
        %v598 = vpop.f32.mrb[0].mxu0
        %599 = vmatprep.mubr.f32.mxu0 0.0
        %600 = vmatmul.mubr.f32.gmra.mrb[0].mxu0 %v380
        %v601 = vpop.f32.mrb[0].mxu0
        %v602 = vadd.f32 0.0, %v601
        %v603 = vpop.f32.mrb[0].mxu0
        %604 = vmatprep.mubr.f32.mxu0 0.0
        %605 = vmatmul.mubr.f32.gmra.mrb[0].mxu0 %v382
        %v606 = vpop.f32.mrb[0].mxu0
        %v607 = vadd.f32 0.0, %v606
        %v608 = vpop.f32.mrb[0].mxu0
        %609 = vmatprep.mubr.f32.mxu0 0.0
        %610 = vmatmul.mubr.f32.gmra.mrb[0].mxu0 %v384
        %v611 = vpop.f32.mrb[0].mxu0
        %v612 = vadd.f32 0.0, %v611
        %v613 = vpop.f32.mrb[0].mxu0
        %614 = vdwg.mxu0
        %v615 = vsel %vm321, %v135, 0
        %v617 = vsel %vm321, %v136, 0
        %v619 = vsel %vm321, %v138, 0
        %v621 = vsel %vm321, %v139, 0
        %v623 = vsel %vm321, %v141, 0
        %v625 = vsel %vm321, %v142, 0
        %v627 = vsel %vm321, %v144, 0
        %v629 = vsel %vm321, %v145, 0
        %v631 = vsel %vm321, %v147, 0
        %v633 = vsel %vm321, %v148, 0
        %v635 = vsel %vm321, %v150, 0
        %v637 = vsel %vm321, %v151, 0
        %v639 = vsel %vm321, %v153, 0
        %v641 = vsel %vm321, %v154, 0
        %v643 = vsel %vm321, %v156, 0
        %v645 = vsel %vm321, %v157, 0
        %v647 = vsel %vm321, %v159, 0
        %v649 = vsel %vm321, %v160, 0
        %v651 = vsel %vm321, %v162, 0
        %v653 = vsel %vm321, %v163, 0
        %v655 = vsel %vm321, %v165, 0
        %v657 = vsel %vm321, %v166, 0
        %v659 = vsel %vm321, %v168, 0
        %v661 = vsel %vm321, %v169, 0
        %v663 = vsel %vm321, %v171, 0
        %v665 = vsel %vm321, %v172, 0
        %v667 = vsel %vm321, %v174, 0
        %v669 = vsel %vm321, %v175, 0
        %v671 = vsel %vm321, %v177, 0
        %v673 = vsel %vm321, %v178, 0
        %v675 = vsel %vm321, %v180, 0
        %v677 = vsel %vm321, %v181, 0
        %v680 = vsel %vm386, %v189, 0
        %682 = vmatprep.subr.mxu0 0.0
        %683 = vmatpush1.msra.mxu0 %v680
        %684 = vmatprep.subr.mxu0 0.0
        %685 = vmatpush1.msra.mxu0 0.0
        %686 = vmatprep.subr.mxu0 0.0
        %687 = vmatpush1.msra.mxu0 0.0
        %688 = vmatprep.subr.mxu0 0.0
        %689 = vmatpush1.msra.mxu0 0.0
        %690 = vmatprep.subr.mxu0 0.0
        %691 = vmatpush1.msra.mxu0 0.0
        %692 = vmatprep.subr.mxu0 0.0
        %693 = vmatpush1.msra.mxu0 0.0
        %694 = vmatprep.subr.mxu0 0.0
        %695 = vmatpush1.msra.mxu0 0.0
        %696 = vmatprep.subr.mxu0 0.0
        %697 = vmatpush1.msra.mxu0 0.0
        %698 = vmatprep.subr.mxu0 0.0
        %699 = vmatpush1.msra.mxu0 0.0
        %700 = vmatprep.subr.mxu0 0.0
        %701 = vmatpush1.msra.mxu0 0.0
        %702 = vmatprep.subr.mxu0 0.0
        %703 = vmatpush1.msra.mxu0 0.0
        %704 = vmatprep.subr.mxu0 0.0
        %705 = vmatpush1.msra.mxu0 0.0
        %706 = vmatprep.subr.mxu0 0.0
        %707 = vmatpush1.msra.mxu0 0.0
        %708 = vmatprep.subr.mxu0 0.0
        %709 = vmatpush1.msra.mxu0 0.0
        %710 = vmatprep.subr.mxu0 0.0
        %711 = vmatpush1.msra.mxu0 0.0
        %712 = vmatprep.subr.mxu0 0.0
        %713 = vmatpush1.msra.mxu0 0.0
        %714 = vmatprep.subr.mxu0 0.0
        %715 = vmatpush1.msra.mxu0 0.0
        %716 = vmatprep.subr.mxu0 0.0
        %717 = vmatpush1.msra.mxu0 0.0
        %718 = vmatprep.subr.mxu0 0.0
        %719 = vmatpush1.msra.mxu0 0.0
        %720 = vmatprep.subr.mxu0 0.0
        %721 = vmatpush1.msra.mxu0 0.0
        %722 = vmatprep.subr.mxu0 0.0
        %723 = vmatpush1.msra.mxu0 0.0
        %724 = vmatprep.subr.mxu0 0.0
        %725 = vmatpush1.msra.mxu0 0.0
        %726 = vmatprep.subr.mxu0 0.0
        %727 = vmatpush1.msra.mxu0 0.0
        %728 = vmatprep.subr.mxu0 0.0
        %729 = vmatpush1.msra.mxu0 0.0
        %730 = vmatprep.subr.mxu0 0.0
        %731 = vmatpush1.msra.mxu0 0.0
        %732 = vmatprep.subr.mxu0 0.0
        %733 = vmatpush1.msra.mxu0 0.0
        %734 = vmatprep.subr.mxu0 0.0
        %735 = vmatpush1.msra.mxu0 0.0
        %736 = vmatprep.subr.mxu0 0.0
        %737 = vmatpush1.msra.mxu0 0.0
        %738 = vmatprep.subr.mxu0 0.0
        %739 = vmatpush1.msra.mxu0 0.0
        %740 = vmatprep.subr.mxu0 0.0
        %741 = vmatpush1.msra.mxu0 0.0
        %742 = vmatprep.subr.mxu0 0.0
        %743 = vmatpush1.msra.mxu0 0.0
        %744 = vmatprep.subr.mxu0 0.0
        %745 = vmatpush1.msra.mxu0 0.0
        %746 = vmatprep.mubr.f32.mxu0 0.0
        %747 = vmatmul.mubr.f32.gmra.mrb[0].mxu0 %v615
        %v748 = vpop.f32.mrb[0].mxu0
        %v749 = vadd.f32 %v457, %v748
        %v750 = vpop.f32.mrb[0].mxu0
        %751 = vmatprep.mubr.f32.mxu0 0.0
        %752 = vmatmul.mubr.f32.gmra.mrb[0].mxu0 %v617
        %v753 = vpop.f32.mrb[0].mxu0
        %v754 = vadd.f32 %v462, %v753
        %v755 = vpop.f32.mrb[0].mxu0
        %756 = vmatprep.mubr.f32.mxu0 0.0
        %757 = vmatmul.mubr.f32.gmra.mrb[0].mxu0 %v619
        %v758 = vpop.f32.mrb[0].mxu0
        %v759 = vadd.f32 %v467, %v758
        %v760 = vpop.f32.mrb[0].mxu0
        %761 = vmatprep.mubr.f32.mxu0 0.0
        %762 = vmatmul.mubr.f32.gmra.mrb[0].mxu0 %v621
        %v763 = vpop.f32.mrb[0].mxu0
        %v764 = vadd.f32 %v472, %v763
        %v765 = vpop.f32.mrb[0].mxu0
        %766 = vmatprep.mubr.f32.mxu0 0.0
        %767 = vmatmul.mubr.f32.gmra.mrb[0].mxu0 %v623
        %v768 = vpop.f32.mrb[0].mxu0
        %v769 = vadd.f32 %v477, %v768
        %v770 = vpop.f32.mrb[0].mxu0
        %771 = vmatprep.mubr.f32.mxu0 0.0
        %772 = vmatmul.mubr.f32.gmra.mrb[0].mxu0 %v625
        %v773 = vpop.f32.mrb[0].mxu0
        %v774 = vadd.f32 %v482, %v773
        %v775 = vpop.f32.mrb[0].mxu0
        %776 = vmatprep.mubr.f32.mxu0 0.0
        %777 = vmatmul.mubr.f32.gmra.mrb[0].mxu0 %v627
        %v778 = vpop.f32.mrb[0].mxu0
        %v779 = vadd.f32 %v487, %v778
        %v780 = vpop.f32.mrb[0].mxu0
        %781 = vmatprep.mubr.f32.mxu0 0.0
        %782 = vmatmul.mubr.f32.gmra.mrb[0].mxu0 %v629
        %v783 = vpop.f32.mrb[0].mxu0
        %v784 = vadd.f32 %v492, %v783
        %v785 = vpop.f32.mrb[0].mxu0
        %786 = vmatprep.mubr.f32.mxu0 0.0
        %787 = vmatmul.mubr.f32.gmra.mrb[0].mxu0 %v631
        %v788 = vpop.f32.mrb[0].mxu0
        %v789 = vadd.f32 %v497, %v788
        %v790 = vpop.f32.mrb[0].mxu0
        %791 = vmatprep.mubr.f32.mxu0 0.0
        %792 = vmatmul.mubr.f32.gmra.mrb[0].mxu0 %v633
        %v793 = vpop.f32.mrb[0].mxu0
        %v794 = vadd.f32 %v502, %v793
        %v795 = vpop.f32.mrb[0].mxu0
        %796 = vmatprep.mubr.f32.mxu0 0.0
        %797 = vmatmul.mubr.f32.gmra.mrb[0].mxu0 %v635
        %v798 = vpop.f32.mrb[0].mxu0
        %v799 = vadd.f32 %v507, %v798
        %v800 = vpop.f32.mrb[0].mxu0
        %801 = vmatprep.mubr.f32.mxu0 0.0
        %802 = vmatmul.mubr.f32.gmra.mrb[0].mxu0 %v637
        %v803 = vpop.f32.mrb[0].mxu0
        %v804 = vadd.f32 %v512, %v803
        %v805 = vpop.f32.mrb[0].mxu0
        %806 = vmatprep.mubr.f32.mxu0 0.0
        %807 = vmatmul.mubr.f32.gmra.mrb[0].mxu0 %v639
        %v808 = vpop.f32.mrb[0].mxu0
        %v809 = vadd.f32 %v517, %v808
        %v810 = vpop.f32.mrb[0].mxu0
        %811 = vmatprep.mubr.f32.mxu0 0.0
        %812 = vmatmul.mubr.f32.gmra.mrb[0].mxu0 %v641
        %v813 = vpop.f32.mrb[0].mxu0
        %v814 = vadd.f32 %v522, %v813
        %v815 = vpop.f32.mrb[0].mxu0
        %816 = vmatprep.mubr.f32.mxu0 0.0
        %817 = vmatmul.mubr.f32.gmra.mrb[0].mxu0 %v643
        %v818 = vpop.f32.mrb[0].mxu0
        %v819 = vadd.f32 %v527, %v818
        %v820 = vpop.f32.mrb[0].mxu0
        %821 = vmatprep.mubr.f32.mxu0 0.0
        %822 = vmatmul.mubr.f32.gmra.mrb[0].mxu0 %v645
        %v823 = vpop.f32.mrb[0].mxu0
        %v824 = vadd.f32 %v532, %v823
        %v825 = vpop.f32.mrb[0].mxu0
        %826 = vmatprep.mubr.f32.mxu0 0.0
        %827 = vmatmul.mubr.f32.gmra.mrb[0].mxu0 %v647
        %v828 = vpop.f32.mrb[0].mxu0
        %v829 = vadd.f32 %v537, %v828
        %v830 = vpop.f32.mrb[0].mxu0
        %831 = vmatprep.mubr.f32.mxu0 0.0
        %832 = vmatmul.mubr.f32.gmra.mrb[0].mxu0 %v649
        %v833 = vpop.f32.mrb[0].mxu0
        %v834 = vadd.f32 %v542, %v833
        %v835 = vpop.f32.mrb[0].mxu0
        %836 = vmatprep.mubr.f32.mxu0 0.0
        %837 = vmatmul.mubr.f32.gmra.mrb[0].mxu0 %v651
        %v838 = vpop.f32.mrb[0].mxu0
        %v839 = vadd.f32 %v547, %v838
        %v840 = vpop.f32.mrb[0].mxu0
        %841 = vmatprep.mubr.f32.mxu0 0.0
        %842 = vmatmul.mubr.f32.gmra.mrb[0].mxu0 %v653
        %v843 = vpop.f32.mrb[0].mxu0
        %v844 = vadd.f32 %v552, %v843
        %v845 = vpop.f32.mrb[0].mxu0
        %846 = vmatprep.mubr.f32.mxu0 0.0
        %847 = vmatmul.mubr.f32.gmra.mrb[0].mxu0 %v655
        %v848 = vpop.f32.mrb[0].mxu0
        %v849 = vadd.f32 %v557, %v848
        %v850 = vpop.f32.mrb[0].mxu0
        %851 = vmatprep.mubr.f32.mxu0 0.0
        %852 = vmatmul.mubr.f32.gmra.mrb[0].mxu0 %v657
        %v853 = vpop.f32.mrb[0].mxu0
        %v854 = vadd.f32 %v562, %v853
        %v855 = vpop.f32.mrb[0].mxu0
        %856 = vmatprep.mubr.f32.mxu0 0.0
        %857 = vmatmul.mubr.f32.gmra.mrb[0].mxu0 %v659
        %v858 = vpop.f32.mrb[0].mxu0
        %v859 = vadd.f32 %v567, %v858
        %v860 = vpop.f32.mrb[0].mxu0
        %861 = vmatprep.mubr.f32.mxu0 0.0
        %862 = vmatmul.mubr.f32.gmra.mrb[0].mxu0 %v661
        %v863 = vpop.f32.mrb[0].mxu0
        %v864 = vadd.f32 %v572, %v863
        %v865 = vpop.f32.mrb[0].mxu0
        %866 = vmatprep.mubr.f32.mxu0 0.0
        %867 = vmatmul.mubr.f32.gmra.mrb[0].mxu0 %v663
        %v868 = vpop.f32.mrb[0].mxu0
        %v869 = vadd.f32 %v577, %v868
        %v870 = vpop.f32.mrb[0].mxu0
        %871 = vmatprep.mubr.f32.mxu0 0.0
        %872 = vmatmul.mubr.f32.gmra.mrb[0].mxu0 %v665
        %v873 = vpop.f32.mrb[0].mxu0
        %v874 = vadd.f32 %v582, %v873
        %v875 = vpop.f32.mrb[0].mxu0
        %876 = vmatprep.mubr.f32.mxu0 0.0
        %877 = vmatmul.mubr.f32.gmra.mrb[0].mxu0 %v667
        %v878 = vpop.f32.mrb[0].mxu0
        %v879 = vadd.f32 %v587, %v878
        %v880 = vpop.f32.mrb[0].mxu0
        %881 = vmatprep.mubr.f32.mxu0 0.0
        %882 = vmatmul.mubr.f32.gmra.mrb[0].mxu0 %v669
        %v883 = vpop.f32.mrb[0].mxu0
        %v884 = vadd.f32 %v592, %v883
        %v885 = vpop.f32.mrb[0].mxu0
        %886 = vmatprep.mubr.f32.mxu0 0.0
        %887 = vmatmul.mubr.f32.gmra.mrb[0].mxu0 %v671
        %v888 = vpop.f32.mrb[0].mxu0
        %v889 = vadd.f32 %v597, %v888
        %v890 = vpop.f32.mrb[0].mxu0
        %891 = vmatprep.mubr.f32.mxu0 0.0
        %892 = vmatmul.mubr.f32.gmra.mrb[0].mxu0 %v673
        %v893 = vpop.f32.mrb[0].mxu0
        %v894 = vadd.f32 %v602, %v893
        %v895 = vpop.f32.mrb[0].mxu0
        %896 = vmatprep.mubr.f32.mxu0 0.0
        %897 = vmatmul.mubr.f32.gmra.mrb[0].mxu0 %v675
        %v898 = vpop.f32.mrb[0].mxu0
        %v899 = vadd.f32 %v607, %v898
        %v900 = vpop.f32.mrb[0].mxu0
        %901 = vmatprep.mubr.f32.mxu0 0.0
        %902 = vmatmul.mubr.f32.gmra.mrb[0].mxu0 %v677
        %v903 = vpop.f32.mrb[0].mxu0
        %v904 = vadd.f32 %v612, %v903
        %v905 = vpop.f32.mrb[0].mxu0
        %906 = vdwg.mxu0
        %vm907 = vcmask 1045504
        %v908 = vrot.slane %v135, 2
        %v909 = vrot.slane %v136, 2
        %v910 = vsel %vm907, %v908, %v909
        %v911 = vrot.slane %v137, 2
        %v912 = vsel %vm907, %v909, %v911
        %v913 = vrot.slane %v138, 2
        %v914 = vrot.slane %v139, 2
        %v915 = vsel %vm907, %v913, %v914
        %v916 = vrot.slane %v140, 2
        %v917 = vsel %vm907, %v914, %v916
        %v918 = vrot.slane %v141, 2
        %v919 = vrot.slane %v142, 2
        %v920 = vsel %vm907, %v918, %v919
        %v921 = vrot.slane %v143, 2
        %v922 = vsel %vm907, %v919, %v921
        %v923 = vrot.slane %v144, 2
        %v924 = vrot.slane %v145, 2
        %v925 = vsel %vm907, %v923, %v924
        %v926 = vrot.slane %v146, 2
        %v927 = vsel %vm907, %v924, %v926
        %v928 = vrot.slane %v147, 2
        %v929 = vrot.slane %v148, 2
        %v930 = vsel %vm907, %v928, %v929
        %v931 = vrot.slane %v149, 2
        %v932 = vsel %vm907, %v929, %v931
        %v933 = vrot.slane %v150, 2
        %v934 = vrot.slane %v151, 2
        %v935 = vsel %vm907, %v933, %v934
        %v936 = vrot.slane %v152, 2
        %v937 = vsel %vm907, %v934, %v936
        %v938 = vrot.slane %v153, 2
        %v939 = vrot.slane %v154, 2
        %v940 = vsel %vm907, %v938, %v939
        %v941 = vrot.slane %v155, 2
        %v942 = vsel %vm907, %v939, %v941
        %v943 = vrot.slane %v156, 2
        %v944 = vrot.slane %v157, 2
        %v945 = vsel %vm907, %v943, %v944
        %v946 = vrot.slane %v158, 2
        %v947 = vsel %vm907, %v944, %v946
        %v948 = vrot.slane %v159, 2
        %v949 = vrot.slane %v160, 2
        %v950 = vsel %vm907, %v948, %v949
        %v951 = vrot.slane %v161, 2
        %v952 = vsel %vm907, %v949, %v951
        %v953 = vrot.slane %v162, 2
        %v954 = vrot.slane %v163, 2
        %v955 = vsel %vm907, %v953, %v954
        %v956 = vrot.slane %v164, 2
        %v957 = vsel %vm907, %v954, %v956
        %v958 = vrot.slane %v165, 2
        %v959 = vrot.slane %v166, 2
        %v960 = vsel %vm907, %v958, %v959
        %v961 = vrot.slane %v167, 2
        %v962 = vsel %vm907, %v959, %v961
        %v963 = vrot.slane %v168, 2
        %v964 = vrot.slane %v169, 2
        %v965 = vsel %vm907, %v963, %v964
        %v966 = vrot.slane %v170, 2
        %v967 = vsel %vm907, %v964, %v966
        %v968 = vrot.slane %v171, 2
        %v969 = vrot.slane %v172, 2
        %v970 = vsel %vm907, %v968, %v969
        %v971 = vrot.slane %v173, 2
        %v972 = vsel %vm907, %v969, %v971
        %v973 = vrot.slane %v174, 2
        %v974 = vrot.slane %v175, 2
        %v975 = vsel %vm907, %v973, %v974
        %v976 = vrot.slane %v176, 2
        %v977 = vsel %vm907, %v974, %v976
        %v978 = vrot.slane %v177, 2
        %v979 = vrot.slane %v178, 2
        %v980 = vsel %vm907, %v978, %v979
        %v981 = vrot.slane %v179, 2
        %v982 = vsel %vm907, %v979, %v981
        %v983 = vrot.slane %v180, 2
        %v984 = vrot.slane %v181, 2
        %v985 = vsel %vm907, %v983, %v984
        %v986 = vrot.slane %v182, 2
        %v987 = vsel %vm907, %v984, %v986
        %s988 = scalar_lea.vmem %s1, 8
        %v989 = vld [vmem:[%s988] sm:$0xf]
        %v990 = vsel %vm321, %v910, 0
        %v992 = vsel %vm321, %v912, 0
        %v994 = vsel %vm321, %v915, 0
        %v996 = vsel %vm321, %v917, 0
        %v998 = vsel %vm321, %v920, 0
        %v1000 = vsel %vm321, %v922, 0
        %v1002 = vsel %vm321, %v925, 0
        %v1004 = vsel %vm321, %v927, 0
        %v1006 = vsel %vm321, %v930, 0
        %v1008 = vsel %vm321, %v932, 0
        %v1010 = vsel %vm321, %v935, 0
        %v1012 = vsel %vm321, %v937, 0
        %v1014 = vsel %vm321, %v940, 0
        %v1016 = vsel %vm321, %v942, 0
        %v1018 = vsel %vm321, %v945, 0
        %v1020 = vsel %vm321, %v947, 0
        %v1022 = vsel %vm321, %v950, 0
        %v1024 = vsel %vm321, %v952, 0
        %v1026 = vsel %vm321, %v955, 0
        %v1028 = vsel %vm321, %v957, 0
        %v1030 = vsel %vm321, %v960, 0
        %v1032 = vsel %vm321, %v962, 0
        %v1034 = vsel %vm321, %v965, 0
        %v1036 = vsel %vm321, %v967, 0
        %v1038 = vsel %vm321, %v970, 0
        %v1040 = vsel %vm321, %v972, 0
        %v1042 = vsel %vm321, %v975, 0
        %v1044 = vsel %vm321, %v977, 0
        %v1046 = vsel %vm321, %v980, 0
        %v1048 = vsel %vm321, %v982, 0
        %v1050 = vsel %vm321, %v985, 0
        %v1052 = vsel %vm321, %v987, 0
        %v1055 = vsel %vm386, %v989, 0
        %1057 = vmatprep.subr.mxu0 0.0
        %1058 = vmatpush1.msra.mxu0 %v1055
        %1059 = vmatprep.subr.mxu0 0.0
        %1060 = vmatpush1.msra.mxu0 0.0
        %1061 = vmatprep.subr.mxu0 0.0
        %1062 = vmatpush1.msra.mxu0 0.0
        %1063 = vmatprep.subr.mxu0 0.0
        %1064 = vmatpush1.msra.mxu0 0.0
        %1065 = vmatprep.subr.mxu0 0.0
        %1066 = vmatpush1.msra.mxu0 0.0
        %1067 = vmatprep.subr.mxu0 0.0
        %1068 = vmatpush1.msra.mxu0 0.0
        %1069 = vmatprep.subr.mxu0 0.0
        %1070 = vmatpush1.msra.mxu0 0.0
        %1071 = vmatprep.subr.mxu0 0.0
        %1072 = vmatpush1.msra.mxu0 0.0
        %1073 = vmatprep.subr.mxu0 0.0
        %1074 = vmatpush1.msra.mxu0 0.0
        %1075 = vmatprep.subr.mxu0 0.0
        %1076 = vmatpush1.msra.mxu0 0.0
        %1077 = vmatprep.subr.mxu0 0.0
        %1078 = vmatpush1.msra.mxu0 0.0
        %1079 = vmatprep.subr.mxu0 0.0
        %1080 = vmatpush1.msra.mxu0 0.0
        %1081 = vmatprep.subr.mxu0 0.0
        %1082 = vmatpush1.msra.mxu0 0.0
        %1083 = vmatprep.subr.mxu0 0.0
        %1084 = vmatpush1.msra.mxu0 0.0
        %1085 = vmatprep.subr.mxu0 0.0
        %1086 = vmatpush1.msra.mxu0 0.0
        %1087 = vmatprep.subr.mxu0 0.0
        %1088 = vmatpush1.msra.mxu0 0.0
        %1089 = vmatprep.subr.mxu0 0.0
        %1090 = vmatpush1.msra.mxu0 0.0
        %1091 = vmatprep.subr.mxu0 0.0
        %1092 = vmatpush1.msra.mxu0 0.0
        %1093 = vmatprep.subr.mxu0 0.0
        %1094 = vmatpush1.msra.mxu0 0.0
        %1095 = vmatprep.subr.mxu0 0.0
        %1096 = vmatpush1.msra.mxu0 0.0
        %1097 = vmatprep.subr.mxu0 0.0
        %1098 = vmatpush1.msra.mxu0 0.0
        %1099 = vmatprep.subr.mxu0 0.0
        %1100 = vmatpush1.msra.mxu0 0.0
        %1101 = vmatprep.subr.mxu0 0.0
        %1102 = vmatpush1.msra.mxu0 0.0
        %1103 = vmatprep.subr.mxu0 0.0
        %1104 = vmatpush1.msra.mxu0 0.0
        %1105 = vmatprep.subr.mxu0 0.0
        %1106 = vmatpush1.msra.mxu0 0.0
        %1107 = vmatprep.subr.mxu0 0.0
        %1108 = vmatpush1.msra.mxu0 0.0
        %1109 = vmatprep.subr.mxu0 0.0
        %1110 = vmatpush1.msra.mxu0 0.0
        %1111 = vmatprep.subr.mxu0 0.0
        %1112 = vmatpush1.msra.mxu0 0.0
        %1113 = vmatprep.subr.mxu0 0.0
        %1114 = vmatpush1.msra.mxu0 0.0
        %1115 = vmatprep.subr.mxu0 0.0
        %1116 = vmatpush1.msra.mxu0 0.0
        %1117 = vmatprep.subr.mxu0 0.0
        %1118 = vmatpush1.msra.mxu0 0.0
        %1119 = vmatprep.subr.mxu0 0.0
        %1120 = vmatpush1.msra.mxu0 0.0
        %1121 = vmatprep.mubr.f32.mxu0 0.0
        %1122 = vmatmul.mubr.f32.gmra.mrb[0].mxu0 %v990
        %v1123 = vpop.f32.mrb[0].mxu0
        %v1124 = vadd.f32 0.0, %v1123
        %v1125 = vpop.f32.mrb[0].mxu0
        %1126 = vmatprep.mubr.f32.mxu0 0.0
        %1127 = vmatmul.mubr.f32.gmra.mrb[0].mxu0 %v992
        %v1128 = vpop.f32.mrb[0].mxu0
        %v1129 = vadd.f32 0.0, %v1128
        %v1130 = vpop.f32.mrb[0].mxu0
        %1131 = vmatprep.mubr.f32.mxu0 0.0
        %1132 = vmatmul.mubr.f32.gmra.mrb[0].mxu0 %v994
        %v1133 = vpop.f32.mrb[0].mxu0
        %v1134 = vadd.f32 0.0, %v1133
        %v1135 = vpop.f32.mrb[0].mxu0
        %1136 = vmatprep.mubr.f32.mxu0 0.0
        %1137 = vmatmul.mubr.f32.gmra.mrb[0].mxu0 %v996
        %v1138 = vpop.f32.mrb[0].mxu0
        %v1139 = vadd.f32 0.0, %v1138
        %v1140 = vpop.f32.mrb[0].mxu0
        %1141 = vmatprep.mubr.f32.mxu0 0.0
        %1142 = vmatmul.mubr.f32.gmra.mrb[0].mxu0 %v998
        %v1143 = vpop.f32.mrb[0].mxu0
        %v1144 = vadd.f32 0.0, %v1143
        %v1145 = vpop.f32.mrb[0].mxu0
        %1146 = vmatprep.mubr.f32.mxu0 0.0
        %1147 = vmatmul.mubr.f32.gmra.mrb[0].mxu0 %v1000
        %v1148 = vpop.f32.mrb[0].mxu0
        %v1149 = vadd.f32 0.0, %v1148
        %v1150 = vpop.f32.mrb[0].mxu0
        %1151 = vmatprep.mubr.f32.mxu0 0.0
        %1152 = vmatmul.mubr.f32.gmra.mrb[0].mxu0 %v1002
        %v1153 = vpop.f32.mrb[0].mxu0
        %v1154 = vadd.f32 0.0, %v1153
        %v1155 = vpop.f32.mrb[0].mxu0
        %1156 = vmatprep.mubr.f32.mxu0 0.0
        %1157 = vmatmul.mubr.f32.gmra.mrb[0].mxu0 %v1004
        %v1158 = vpop.f32.mrb[0].mxu0
        %v1159 = vadd.f32 0.0, %v1158
        %v1160 = vpop.f32.mrb[0].mxu0
        %1161 = vmatprep.mubr.f32.mxu0 0.0
        %1162 = vmatmul.mubr.f32.gmra.mrb[0].mxu0 %v1006
        %v1163 = vpop.f32.mrb[0].mxu0
        %v1164 = vadd.f32 0.0, %v1163
        %v1165 = vpop.f32.mrb[0].mxu0
        %1166 = vmatprep.mubr.f32.mxu0 0.0
        %1167 = vmatmul.mubr.f32.gmra.mrb[0].mxu0 %v1008
        %v1168 = vpop.f32.mrb[0].mxu0
        %v1169 = vadd.f32 0.0, %v1168
        %v1170 = vpop.f32.mrb[0].mxu0
        %1171 = vmatprep.mubr.f32.mxu0 0.0
        %1172 = vmatmul.mubr.f32.gmra.mrb[0].mxu0 %v1010
        %v1173 = vpop.f32.mrb[0].mxu0
        %v1174 = vadd.f32 0.0, %v1173
        %v1175 = vpop.f32.mrb[0].mxu0
        %1176 = vmatprep.mubr.f32.mxu0 0.0
        %1177 = vmatmul.mubr.f32.gmra.mrb[0].mxu0 %v1012
        %v1178 = vpop.f32.mrb[0].mxu0
        %v1179 = vadd.f32 0.0, %v1178
        %v1180 = vpop.f32.mrb[0].mxu0
        %1181 = vmatprep.mubr.f32.mxu0 0.0
        %1182 = vmatmul.mubr.f32.gmra.mrb[0].mxu0 %v1014
        %v1183 = vpop.f32.mrb[0].mxu0
        %v1184 = vadd.f32 0.0, %v1183
        %v1185 = vpop.f32.mrb[0].mxu0
        %1186 = vmatprep.mubr.f32.mxu0 0.0
        %1187 = vmatmul.mubr.f32.gmra.mrb[0].mxu0 %v1016
        %v1188 = vpop.f32.mrb[0].mxu0
        %v1189 = vadd.f32 0.0, %v1188
        %v1190 = vpop.f32.mrb[0].mxu0
        %1191 = vmatprep.mubr.f32.mxu0 0.0
        %1192 = vmatmul.mubr.f32.gmra.mrb[0].mxu0 %v1018
        %v1193 = vpop.f32.mrb[0].mxu0
        %v1194 = vadd.f32 0.0, %v1193
        %v1195 = vpop.f32.mrb[0].mxu0
        %1196 = vmatprep.mubr.f32.mxu0 0.0
        %1197 = vmatmul.mubr.f32.gmra.mrb[0].mxu0 %v1020
        %v1198 = vpop.f32.mrb[0].mxu0
        %v1199 = vadd.f32 0.0, %v1198
        %v1200 = vpop.f32.mrb[0].mxu0
        %1201 = vmatprep.mubr.f32.mxu0 0.0
        %1202 = vmatmul.mubr.f32.gmra.mrb[0].mxu0 %v1022
        %v1203 = vpop.f32.mrb[0].mxu0
        %v1204 = vadd.f32 0.0, %v1203
        %v1205 = vpop.f32.mrb[0].mxu0
        %1206 = vmatprep.mubr.f32.mxu0 0.0
        %1207 = vmatmul.mubr.f32.gmra.mrb[0].mxu0 %v1024
        %v1208 = vpop.f32.mrb[0].mxu0
        %v1209 = vadd.f32 0.0, %v1208
        %v1210 = vpop.f32.mrb[0].mxu0
        %1211 = vmatprep.mubr.f32.mxu0 0.0
        %1212 = vmatmul.mubr.f32.gmra.mrb[0].mxu0 %v1026
        %v1213 = vpop.f32.mrb[0].mxu0
        %v1214 = vadd.f32 0.0, %v1213
        %v1215 = vpop.f32.mrb[0].mxu0
        %1216 = vmatprep.mubr.f32.mxu0 0.0
        %1217 = vmatmul.mubr.f32.gmra.mrb[0].mxu0 %v1028
        %v1218 = vpop.f32.mrb[0].mxu0
        %v1219 = vadd.f32 0.0, %v1218
        %v1220 = vpop.f32.mrb[0].mxu0
        %1221 = vmatprep.mubr.f32.mxu0 0.0
        %1222 = vmatmul.mubr.f32.gmra.mrb[0].mxu0 %v1030
        %v1223 = vpop.f32.mrb[0].mxu0
        %v1224 = vadd.f32 0.0, %v1223
        %v1225 = vpop.f32.mrb[0].mxu0
        %1226 = vmatprep.mubr.f32.mxu0 0.0
        %1227 = vmatmul.mubr.f32.gmra.mrb[0].mxu0 %v1032
        %v1228 = vpop.f32.mrb[0].mxu0
        %v1229 = vadd.f32 0.0, %v1228
        %v1230 = vpop.f32.mrb[0].mxu0
        %1231 = vmatprep.mubr.f32.mxu0 0.0
        %1232 = vmatmul.mubr.f32.gmra.mrb[0].mxu0 %v1034
        %v1233 = vpop.f32.mrb[0].mxu0
        %v1234 = vadd.f32 0.0, %v1233
        %v1235 = vpop.f32.mrb[0].mxu0
        %1236 = vmatprep.mubr.f32.mxu0 0.0
        %1237 = vmatmul.mubr.f32.gmra.mrb[0].mxu0 %v1036
        %v1238 = vpop.f32.mrb[0].mxu0
        %v1239 = vadd.f32 0.0, %v1238
        %v1240 = vpop.f32.mrb[0].mxu0
        %1241 = vmatprep.mubr.f32.mxu0 0.0
        %1242 = vmatmul.mubr.f32.gmra.mrb[0].mxu0 %v1038
        %v1243 = vpop.f32.mrb[0].mxu0
        %v1244 = vadd.f32 0.0, %v1243
        %v1245 = vpop.f32.mrb[0].mxu0
        %1246 = vmatprep.mubr.f32.mxu0 0.0
        %1247 = vmatmul.mubr.f32.gmra.mrb[0].mxu0 %v1040
        %v1248 = vpop.f32.mrb[0].mxu0
        %v1249 = vadd.f32 0.0, %v1248
        %v1250 = vpop.f32.mrb[0].mxu0
        %1251 = vmatprep.mubr.f32.mxu0 0.0
        %1252 = vmatmul.mubr.f32.gmra.mrb[0].mxu0 %v1042
        %v1253 = vpop.f32.mrb[0].mxu0
        %v1254 = vadd.f32 0.0, %v1253
        %v1255 = vpop.f32.mrb[0].mxu0
        %1256 = vmatprep.mubr.f32.mxu0 0.0
        %1257 = vmatmul.mubr.f32.gmra.mrb[0].mxu0 %v1044
        %v1258 = vpop.f32.mrb[0].mxu0
        %v1259 = vadd.f32 0.0, %v1258
        %v1260 = vpop.f32.mrb[0].mxu0
        %1261 = vmatprep.mubr.f32.mxu0 0.0
        %1262 = vmatmul.mubr.f32.gmra.mrb[0].mxu0 %v1046
        %v1263 = vpop.f32.mrb[0].mxu0
        %v1264 = vadd.f32 0.0, %v1263
        %v1265 = vpop.f32.mrb[0].mxu0
        %1266 = vmatprep.mubr.f32.mxu0 0.0
        %1267 = vmatmul.mubr.f32.gmra.mrb[0].mxu0 %v1048
        %v1268 = vpop.f32.mrb[0].mxu0
        %v1269 = vadd.f32 0.0, %v1268
        %v1270 = vpop.f32.mrb[0].mxu0
        %1271 = vmatprep.mubr.f32.mxu0 0.0
        %1272 = vmatmul.mubr.f32.gmra.mrb[0].mxu0 %v1050
        %v1273 = vpop.f32.mrb[0].mxu0
        %v1274 = vadd.f32 0.0, %v1273
        %v1275 = vpop.f32.mrb[0].mxu0
        %1276 = vmatprep.mubr.f32.mxu0 0.0
        %1277 = vmatmul.mubr.f32.gmra.mrb[0].mxu0 %v1052
        %v1278 = vpop.f32.mrb[0].mxu0
        %v1279 = vadd.f32 0.0, %v1278
        %v1280 = vpop.f32.mrb[0].mxu0
        %1281 = vdwg.mxu0
        %v1282 = vadd.f32 %v749, %v1124
        %v1283 = vadd.f32 %v754, %v1129
        %v1284 = vadd.f32 %v759, %v1134
        %v1285 = vadd.f32 %v764, %v1139
        %v1286 = vadd.f32 %v769, %v1144
        %v1287 = vadd.f32 %v774, %v1149
        %v1288 = vadd.f32 %v779, %v1154
        %v1289 = vadd.f32 %v784, %v1159
        %v1290 = vadd.f32 %v789, %v1164
        %v1291 = vadd.f32 %v794, %v1169
        %v1292 = vadd.f32 %v799, %v1174
        %v1293 = vadd.f32 %v804, %v1179
        %v1294 = vadd.f32 %v809, %v1184
        %v1295 = vadd.f32 %v814, %v1189
        %v1296 = vadd.f32 %v819, %v1194
        %v1297 = vadd.f32 %v824, %v1199
        %v1298 = vadd.f32 %v829, %v1204
        %v1299 = vadd.f32 %v834, %v1209
        %v1300 = vadd.f32 %v839, %v1214
        %v1301 = vadd.f32 %v844, %v1219
        %v1302 = vadd.f32 %v849, %v1224
        %v1303 = vadd.f32 %v854, %v1229
        %v1304 = vadd.f32 %v859, %v1234
        %v1305 = vadd.f32 %v864, %v1239
        %v1306 = vadd.f32 %v869, %v1244
        %v1307 = vadd.f32 %v874, %v1249
        %v1308 = vadd.f32 %v879, %v1254
        %v1309 = vadd.f32 %v884, %v1259
        %v1310 = vadd.f32 %v889, %v1264
        %v1311 = vadd.f32 %v894, %v1269
        %v1312 = vadd.f32 %v899, %v1274
        %v1313 = vadd.f32 %v904, %v1279
        %s1314 = scalar_lea.vmem %s1, 12
        %v1315 = vld [vmem:[%s1314] sm:$0xf]
        %v1317 = vsel %vm321, %v183, 0
        %v1320 = vsel %vm321, %v184, 0
        %v1323 = vsel %vm386, %v1315, 0
        %1325 = vmatprep.subr.mxu0 0.0
        %1326 = vmatpush1.msra.mxu0 %v1323
        %1327 = vmatprep.subr.mxu0 0.0
        %1328 = vmatpush1.msra.mxu0 0.0
        %1329 = vmatprep.subr.mxu0 0.0
        %1330 = vmatpush1.msra.mxu0 0.0
        %1331 = vmatprep.subr.mxu0 0.0
        %1332 = vmatpush1.msra.mxu0 0.0
        %1333 = vmatprep.subr.mxu0 0.0
        %1334 = vmatpush1.msra.mxu0 0.0
        %1335 = vmatprep.subr.mxu0 0.0
        %1336 = vmatpush1.msra.mxu0 0.0
        %1337 = vmatprep.subr.mxu0 0.0
        %1338 = vmatpush1.msra.mxu0 0.0
        %1339 = vmatprep.subr.mxu0 0.0
        %1340 = vmatpush1.msra.mxu0 0.0
        %1341 = vmatprep.subr.mxu0 0.0
        %1342 = vmatpush1.msra.mxu0 0.0
        %1343 = vmatprep.subr.mxu0 0.0
        %1344 = vmatpush1.msra.mxu0 0.0
        %1345 = vmatprep.subr.mxu0 0.0
        %1346 = vmatpush1.msra.mxu0 0.0
        %1347 = vmatprep.subr.mxu0 0.0
        %1348 = vmatpush1.msra.mxu0 0.0
        %1349 = vmatprep.subr.mxu0 0.0
        %1350 = vmatpush1.msra.mxu0 0.0
        %1351 = vmatprep.subr.mxu0 0.0
        %1352 = vmatpush1.msra.mxu0 0.0
        %1353 = vmatprep.subr.mxu0 0.0
        %1354 = vmatpush1.msra.mxu0 0.0
        %1355 = vmatprep.subr.mxu0 0.0
        %1356 = vmatpush1.msra.mxu0 0.0
        %1357 = vmatprep.subr.mxu0 0.0
        %1358 = vmatpush1.msra.mxu0 0.0
        %1359 = vmatprep.subr.mxu0 0.0
        %1360 = vmatpush1.msra.mxu0 0.0
        %1361 = vmatprep.subr.mxu0 0.0
        %1362 = vmatpush1.msra.mxu0 0.0
        %1363 = vmatprep.subr.mxu0 0.0
        %1364 = vmatpush1.msra.mxu0 0.0
        %1365 = vmatprep.subr.mxu0 0.0
        %1366 = vmatpush1.msra.mxu0 0.0
        %1367 = vmatprep.subr.mxu0 0.0
        %1368 = vmatpush1.msra.mxu0 0.0
        %1369 = vmatprep.subr.mxu0 0.0
        %1370 = vmatpush1.msra.mxu0 0.0
        %1371 = vmatprep.subr.mxu0 0.0
        %1372 = vmatpush1.msra.mxu0 0.0
        %1373 = vmatprep.subr.mxu0 0.0
        %1374 = vmatpush1.msra.mxu0 0.0
        %1375 = vmatprep.subr.mxu0 0.0
        %1376 = vmatpush1.msra.mxu0 0.0
        %1377 = vmatprep.subr.mxu0 0.0
        %1378 = vmatpush1.msra.mxu0 0.0
        %1379 = vmatprep.subr.mxu0 0.0
        %1380 = vmatpush1.msra.mxu0 0.0
        %1381 = vmatprep.subr.mxu0 0.0
        %1382 = vmatpush1.msra.mxu0 0.0
        %1383 = vmatprep.subr.mxu0 0.0
        %1384 = vmatpush1.msra.mxu0 0.0
        %1385 = vmatprep.subr.mxu0 0.0
        %1386 = vmatpush1.msra.mxu0 0.0
        %1387 = vmatprep.subr.mxu0 0.0
        %1388 = vmatpush1.msra.mxu0 0.0
        %1389 = vmatprep.mubr.f32.mxu0 0.0
        %1390 = vmatmul.mubr.f32.gmra.mrb[0].mxu0 %v619
        %v1391 = vpop.f32.mrb[0].mxu0
        %v1392 = vadd.f32 0.0, %v1391
        %v1393 = vpop.f32.mrb[0].mxu0
        %1394 = vmatprep.mubr.f32.mxu0 0.0
        %1395 = vmatmul.mubr.f32.gmra.mrb[0].mxu0 %v621
        %v1396 = vpop.f32.mrb[0].mxu0
        %v1397 = vadd.f32 0.0, %v1396
        %v1398 = vpop.f32.mrb[0].mxu0
        %1399 = vmatprep.mubr.f32.mxu0 0.0
        %1400 = vmatmul.mubr.f32.gmra.mrb[0].mxu0 %v623
        %v1401 = vpop.f32.mrb[0].mxu0
        %v1402 = vadd.f32 0.0, %v1401
        %v1403 = vpop.f32.mrb[0].mxu0
        %1404 = vmatprep.mubr.f32.mxu0 0.0
        %1405 = vmatmul.mubr.f32.gmra.mrb[0].mxu0 %v625
        %v1406 = vpop.f32.mrb[0].mxu0
        %v1407 = vadd.f32 0.0, %v1406
        %v1408 = vpop.f32.mrb[0].mxu0
        %1409 = vmatprep.mubr.f32.mxu0 0.0
        %1410 = vmatmul.mubr.f32.gmra.mrb[0].mxu0 %v627
        %v1411 = vpop.f32.mrb[0].mxu0
        %v1412 = vadd.f32 0.0, %v1411
        %v1413 = vpop.f32.mrb[0].mxu0
        %1414 = vmatprep.mubr.f32.mxu0 0.0
        %1415 = vmatmul.mubr.f32.gmra.mrb[0].mxu0 %v629
        %v1416 = vpop.f32.mrb[0].mxu0
        %v1417 = vadd.f32 0.0, %v1416
        %v1418 = vpop.f32.mrb[0].mxu0
        %1419 = vmatprep.mubr.f32.mxu0 0.0
        %1420 = vmatmul.mubr.f32.gmra.mrb[0].mxu0 %v631
        %v1421 = vpop.f32.mrb[0].mxu0
        %v1422 = vadd.f32 0.0, %v1421
        %v1423 = vpop.f32.mrb[0].mxu0
        %1424 = vmatprep.mubr.f32.mxu0 0.0
        %1425 = vmatmul.mubr.f32.gmra.mrb[0].mxu0 %v633
        %v1426 = vpop.f32.mrb[0].mxu0
        %v1427 = vadd.f32 0.0, %v1426
        %v1428 = vpop.f32.mrb[0].mxu0
        %1429 = vmatprep.mubr.f32.mxu0 0.0
        %1430 = vmatmul.mubr.f32.gmra.mrb[0].mxu0 %v635
        %v1431 = vpop.f32.mrb[0].mxu0
        %v1432 = vadd.f32 0.0, %v1431
        %v1433 = vpop.f32.mrb[0].mxu0
        %1434 = vmatprep.mubr.f32.mxu0 0.0
        %1435 = vmatmul.mubr.f32.gmra.mrb[0].mxu0 %v637
        %v1436 = vpop.f32.mrb[0].mxu0
        %v1437 = vadd.f32 0.0, %v1436
        %v1438 = vpop.f32.mrb[0].mxu0
        %1439 = vmatprep.mubr.f32.mxu0 0.0
        %1440 = vmatmul.mubr.f32.gmra.mrb[0].mxu0 %v639
        %v1441 = vpop.f32.mrb[0].mxu0
        %v1442 = vadd.f32 0.0, %v1441
        %v1443 = vpop.f32.mrb[0].mxu0
        %1444 = vmatprep.mubr.f32.mxu0 0.0
        %1445 = vmatmul.mubr.f32.gmra.mrb[0].mxu0 %v641
        %v1446 = vpop.f32.mrb[0].mxu0
        %v1447 = vadd.f32 0.0, %v1446
        %v1448 = vpop.f32.mrb[0].mxu0
        %1449 = vmatprep.mubr.f32.mxu0 0.0
        %1450 = vmatmul.mubr.f32.gmra.mrb[0].mxu0 %v643
        %v1451 = vpop.f32.mrb[0].mxu0
        %v1452 = vadd.f32 0.0, %v1451
        %v1453 = vpop.f32.mrb[0].mxu0
        %1454 = vmatprep.mubr.f32.mxu0 0.0
        %1455 = vmatmul.mubr.f32.gmra.mrb[0].mxu0 %v645
        %v1456 = vpop.f32.mrb[0].mxu0
        %v1457 = vadd.f32 0.0, %v1456
        %v1458 = vpop.f32.mrb[0].mxu0
        %1459 = vmatprep.mubr.f32.mxu0 0.0
        %1460 = vmatmul.mubr.f32.gmra.mrb[0].mxu0 %v647
        %v1461 = vpop.f32.mrb[0].mxu0
        %v1462 = vadd.f32 0.0, %v1461
        %v1463 = vpop.f32.mrb[0].mxu0
        %1464 = vmatprep.mubr.f32.mxu0 0.0
        %1465 = vmatmul.mubr.f32.gmra.mrb[0].mxu0 %v649
        %v1466 = vpop.f32.mrb[0].mxu0
        %v1467 = vadd.f32 0.0, %v1466
        %v1468 = vpop.f32.mrb[0].mxu0
        %1469 = vmatprep.mubr.f32.mxu0 0.0
        %1470 = vmatmul.mubr.f32.gmra.mrb[0].mxu0 %v651
        %v1471 = vpop.f32.mrb[0].mxu0
        %v1472 = vadd.f32 0.0, %v1471
        %v1473 = vpop.f32.mrb[0].mxu0
        %1474 = vmatprep.mubr.f32.mxu0 0.0
        %1475 = vmatmul.mubr.f32.gmra.mrb[0].mxu0 %v653
        %v1476 = vpop.f32.mrb[0].mxu0
        %v1477 = vadd.f32 0.0, %v1476
        %v1478 = vpop.f32.mrb[0].mxu0
        %1479 = vmatprep.mubr.f32.mxu0 0.0
        %1480 = vmatmul.mubr.f32.gmra.mrb[0].mxu0 %v655
        %v1481 = vpop.f32.mrb[0].mxu0
        %v1482 = vadd.f32 0.0, %v1481
        %v1483 = vpop.f32.mrb[0].mxu0
        %1484 = vmatprep.mubr.f32.mxu0 0.0
        %1485 = vmatmul.mubr.f32.gmra.mrb[0].mxu0 %v657
        %v1486 = vpop.f32.mrb[0].mxu0
        %v1487 = vadd.f32 0.0, %v1486
        %v1488 = vpop.f32.mrb[0].mxu0
        %1489 = vmatprep.mubr.f32.mxu0 0.0
        %1490 = vmatmul.mubr.f32.gmra.mrb[0].mxu0 %v659
        %v1491 = vpop.f32.mrb[0].mxu0
        %v1492 = vadd.f32 0.0, %v1491
        %v1493 = vpop.f32.mrb[0].mxu0
        %1494 = vmatprep.mubr.f32.mxu0 0.0
        %1495 = vmatmul.mubr.f32.gmra.mrb[0].mxu0 %v661
        %v1496 = vpop.f32.mrb[0].mxu0
        %v1497 = vadd.f32 0.0, %v1496
        %v1498 = vpop.f32.mrb[0].mxu0
        %1499 = vmatprep.mubr.f32.mxu0 0.0
        %1500 = vmatmul.mubr.f32.gmra.mrb[0].mxu0 %v663
        %v1501 = vpop.f32.mrb[0].mxu0
        %v1502 = vadd.f32 0.0, %v1501
        %v1503 = vpop.f32.mrb[0].mxu0
        %1504 = vmatprep.mubr.f32.mxu0 0.0
        %1505 = vmatmul.mubr.f32.gmra.mrb[0].mxu0 %v665
        %v1506 = vpop.f32.mrb[0].mxu0
        %v1507 = vadd.f32 0.0, %v1506
        %v1508 = vpop.f32.mrb[0].mxu0
        %1509 = vmatprep.mubr.f32.mxu0 0.0
        %1510 = vmatmul.mubr.f32.gmra.mrb[0].mxu0 %v667
        %v1511 = vpop.f32.mrb[0].mxu0
        %v1512 = vadd.f32 0.0, %v1511
        %v1513 = vpop.f32.mrb[0].mxu0
        %1514 = vmatprep.mubr.f32.mxu0 0.0
        %1515 = vmatmul.mubr.f32.gmra.mrb[0].mxu0 %v669
        %v1516 = vpop.f32.mrb[0].mxu0
        %v1517 = vadd.f32 0.0, %v1516
        %v1518 = vpop.f32.mrb[0].mxu0
        %1519 = vmatprep.mubr.f32.mxu0 0.0
        %1520 = vmatmul.mubr.f32.gmra.mrb[0].mxu0 %v671
        %v1521 = vpop.f32.mrb[0].mxu0
        %v1522 = vadd.f32 0.0, %v1521
        %v1523 = vpop.f32.mrb[0].mxu0
        %1524 = vmatprep.mubr.f32.mxu0 0.0
        %1525 = vmatmul.mubr.f32.gmra.mrb[0].mxu0 %v673
        %v1526 = vpop.f32.mrb[0].mxu0
        %v1527 = vadd.f32 0.0, %v1526
        %v1528 = vpop.f32.mrb[0].mxu0
        %1529 = vmatprep.mubr.f32.mxu0 0.0
        %1530 = vmatmul.mubr.f32.gmra.mrb[0].mxu0 %v675
        %v1531 = vpop.f32.mrb[0].mxu0
        %v1532 = vadd.f32 0.0, %v1531
        %v1533 = vpop.f32.mrb[0].mxu0
        %1534 = vmatprep.mubr.f32.mxu0 0.0
        %1535 = vmatmul.mubr.f32.gmra.mrb[0].mxu0 %v677
        %v1536 = vpop.f32.mrb[0].mxu0
        %v1537 = vadd.f32 0.0, %v1536
        %v1538 = vpop.f32.mrb[0].mxu0
        %1539 = vmatprep.mubr.f32.mxu0 0.0
        %1540 = vmatmul.mubr.f32.gmra.mrb[0].mxu0 %v1317
        %v1541 = vpop.f32.mrb[0].mxu0
        %v1542 = vadd.f32 0.0, %v1541
        %v1543 = vpop.f32.mrb[0].mxu0
        %1544 = vmatprep.mubr.f32.mxu0 0.0
        %1545 = vmatmul.mubr.f32.gmra.mrb[0].mxu0 %v1320
        %v1546 = vpop.f32.mrb[0].mxu0
        %v1547 = vadd.f32 0.0, %v1546
        %v1548 = vpop.f32.mrb[0].mxu0
        %1549 = vdwg.mxu0
        %v1550 = vadd.f32 %v1282, %v1392
        %v1551 = vadd.f32 %v1283, %v1397
        %v1552 = vadd.f32 %v1284, %v1402
        %v1553 = vadd.f32 %v1285, %v1407
        %v1554 = vadd.f32 %v1286, %v1412
        %v1555 = vadd.f32 %v1287, %v1417
        %v1556 = vadd.f32 %v1288, %v1422
        %v1557 = vadd.f32 %v1289, %v1427
        %v1558 = vadd.f32 %v1290, %v1432
        %v1559 = vadd.f32 %v1291, %v1437
        %v1560 = vadd.f32 %v1292, %v1442
        %v1561 = vadd.f32 %v1293, %v1447
        %v1562 = vadd.f32 %v1294, %v1452
        %v1563 = vadd.f32 %v1295, %v1457
        %v1564 = vadd.f32 %v1296, %v1462
        %v1565 = vadd.f32 %v1297, %v1467
        %v1566 = vadd.f32 %v1298, %v1472
        %v1567 = vadd.f32 %v1299, %v1477
        %v1568 = vadd.f32 %v1300, %v1482
        %v1569 = vadd.f32 %v1301, %v1487
        %v1570 = vadd.f32 %v1302, %v1492
        %v1571 = vadd.f32 %v1303, %v1497
        %v1572 = vadd.f32 %v1304, %v1502
        %v1573 = vadd.f32 %v1305, %v1507
        %v1574 = vadd.f32 %v1306, %v1512
        %v1575 = vadd.f32 %v1307, %v1517
        %v1576 = vadd.f32 %v1308, %v1522
        %v1577 = vadd.f32 %v1309, %v1527
        %v1578 = vadd.f32 %v1310, %v1532
        %v1579 = vadd.f32 %v1311, %v1537
        %v1580 = vadd.f32 %v1312, %v1542
        %v1581 = vadd.f32 %v1313, %v1547
        %v1583 = vrot.slane %v183, 1
        %v1584 = vrot.slane %v184, 1
        %v1585 = vsel %vm238, %v1583, %v1584
        %v1586 = vrot.slane %v185, 1
        %v1587 = vsel %vm238, %v1584, %v1586
        %s1588 = scalar_lea.vmem %s1, 16
        %v1589 = vld [vmem:[%s1588] sm:$0xf]
        %v1590 = vsel %vm321, %v1585, 0
        %v1592 = vsel %vm321, %v1587, 0
        %v1595 = vsel %vm386, %v1589, 0
        %1597 = vmatprep.subr.mxu0 0.0
        %1598 = vmatpush1.msra.mxu0 %v1595
        %1599 = vmatprep.subr.mxu0 0.0
        %1600 = vmatpush1.msra.mxu0 0.0
        %1601 = vmatprep.subr.mxu0 0.0
        %1602 = vmatpush1.msra.mxu0 0.0
        %1603 = vmatprep.subr.mxu0 0.0
        %1604 = vmatpush1.msra.mxu0 0.0
        %1605 = vmatprep.subr.mxu0 0.0
        %1606 = vmatpush1.msra.mxu0 0.0
        %1607 = vmatprep.subr.mxu0 0.0
        %1608 = vmatpush1.msra.mxu0 0.0
        %1609 = vmatprep.subr.mxu0 0.0
        %1610 = vmatpush1.msra.mxu0 0.0
        %1611 = vmatprep.subr.mxu0 0.0
        %1612 = vmatpush1.msra.mxu0 0.0
        %1613 = vmatprep.subr.mxu0 0.0
        %1614 = vmatpush1.msra.mxu0 0.0
        %1615 = vmatprep.subr.mxu0 0.0
        %1616 = vmatpush1.msra.mxu0 0.0
        %1617 = vmatprep.subr.mxu0 0.0
        %1618 = vmatpush1.msra.mxu0 0.0
        %1619 = vmatprep.subr.mxu0 0.0
        %1620 = vmatpush1.msra.mxu0 0.0
        %1621 = vmatprep.subr.mxu0 0.0
        %1622 = vmatpush1.msra.mxu0 0.0
        %1623 = vmatprep.subr.mxu0 0.0
        %1624 = vmatpush1.msra.mxu0 0.0
        %1625 = vmatprep.subr.mxu0 0.0
        %1626 = vmatpush1.msra.mxu0 0.0
        %1627 = vmatprep.subr.mxu0 0.0
        %1628 = vmatpush1.msra.mxu0 0.0
        %1629 = vmatprep.subr.mxu0 0.0
        %1630 = vmatpush1.msra.mxu0 0.0
        %1631 = vmatprep.subr.mxu0 0.0
        %1632 = vmatpush1.msra.mxu0 0.0
        %1633 = vmatprep.subr.mxu0 0.0
        %1634 = vmatpush1.msra.mxu0 0.0
        %1635 = vmatprep.subr.mxu0 0.0
        %1636 = vmatpush1.msra.mxu0 0.0
        %1637 = vmatprep.subr.mxu0 0.0
        %1638 = vmatpush1.msra.mxu0 0.0
        %1639 = vmatprep.subr.mxu0 0.0
        %1640 = vmatpush1.msra.mxu0 0.0
        %1641 = vmatprep.subr.mxu0 0.0
        %1642 = vmatpush1.msra.mxu0 0.0
        %1643 = vmatprep.subr.mxu0 0.0
        %1644 = vmatpush1.msra.mxu0 0.0
        %1645 = vmatprep.subr.mxu0 0.0
        %1646 = vmatpush1.msra.mxu0 0.0
        %1647 = vmatprep.subr.mxu0 0.0
        %1648 = vmatpush1.msra.mxu0 0.0
        %1649 = vmatprep.subr.mxu0 0.0
        %1650 = vmatpush1.msra.mxu0 0.0
        %1651 = vmatprep.subr.mxu0 0.0
        %1652 = vmatpush1.msra.mxu0 0.0
        %1653 = vmatprep.subr.mxu0 0.0
        %1654 = vmatpush1.msra.mxu0 0.0
        %1655 = vmatprep.subr.mxu0 0.0
        %1656 = vmatpush1.msra.mxu0 0.0
        %1657 = vmatprep.subr.mxu0 0.0
        %1658 = vmatpush1.msra.mxu0 0.0
        %1659 = vmatprep.subr.mxu0 0.0
        %1660 = vmatpush1.msra.mxu0 0.0
        %1661 = vmatprep.mubr.f32.mxu0 0.0
        %1662 = vmatmul.mubr.f32.gmra.mrb[0].mxu0 %v326
        %v1663 = vpop.f32.mrb[0].mxu0
        %v1664 = vadd.f32 0.0, %v1663
        %v1665 = vpop.f32.mrb[0].mxu0
        %1666 = vmatprep.mubr.f32.mxu0 0.0
        %1667 = vmatmul.mubr.f32.gmra.mrb[0].mxu0 %v328
        %v1668 = vpop.f32.mrb[0].mxu0
        %v1669 = vadd.f32 0.0, %v1668
        %v1670 = vpop.f32.mrb[0].mxu0
        %1671 = vmatprep.mubr.f32.mxu0 0.0
        %1672 = vmatmul.mubr.f32.gmra.mrb[0].mxu0 %v330
        %v1673 = vpop.f32.mrb[0].mxu0
        %v1674 = vadd.f32 0.0, %v1673
        %v1675 = vpop.f32.mrb[0].mxu0
        %1676 = vmatprep.mubr.f32.mxu0 0.0
        %1677 = vmatmul.mubr.f32.gmra.mrb[0].mxu0 %v332
        %v1678 = vpop.f32.mrb[0].mxu0
        %v1679 = vadd.f32 0.0, %v1678
        %v1680 = vpop.f32.mrb[0].mxu0
        %1681 = vmatprep.mubr.f32.mxu0 0.0
        %1682 = vmatmul.mubr.f32.gmra.mrb[0].mxu0 %v334
        %v1683 = vpop.f32.mrb[0].mxu0
        %v1684 = vadd.f32 0.0, %v1683
        %v1685 = vpop.f32.mrb[0].mxu0
        %1686 = vmatprep.mubr.f32.mxu0 0.0
        %1687 = vmatmul.mubr.f32.gmra.mrb[0].mxu0 %v336
        %v1688 = vpop.f32.mrb[0].mxu0
        %v1689 = vadd.f32 0.0, %v1688
        %v1690 = vpop.f32.mrb[0].mxu0
        %1691 = vmatprep.mubr.f32.mxu0 0.0
        %1692 = vmatmul.mubr.f32.gmra.mrb[0].mxu0 %v338
        %v1693 = vpop.f32.mrb[0].mxu0
        %v1694 = vadd.f32 0.0, %v1693
        %v1695 = vpop.f32.mrb[0].mxu0
        %1696 = vmatprep.mubr.f32.mxu0 0.0
        %1697 = vmatmul.mubr.f32.gmra.mrb[0].mxu0 %v340
        %v1698 = vpop.f32.mrb[0].mxu0
        %v1699 = vadd.f32 0.0, %v1698
        %v1700 = vpop.f32.mrb[0].mxu0
        %1701 = vmatprep.mubr.f32.mxu0 0.0
        %1702 = vmatmul.mubr.f32.gmra.mrb[0].mxu0 %v342
        %v1703 = vpop.f32.mrb[0].mxu0
        %v1704 = vadd.f32 0.0, %v1703
        %v1705 = vpop.f32.mrb[0].mxu0
        %1706 = vmatprep.mubr.f32.mxu0 0.0
        %1707 = vmatmul.mubr.f32.gmra.mrb[0].mxu0 %v344
        %v1708 = vpop.f32.mrb[0].mxu0
        %v1709 = vadd.f32 0.0, %v1708
        %v1710 = vpop.f32.mrb[0].mxu0
        %1711 = vmatprep.mubr.f32.mxu0 0.0
        %1712 = vmatmul.mubr.f32.gmra.mrb[0].mxu0 %v346
        %v1713 = vpop.f32.mrb[0].mxu0
        %v1714 = vadd.f32 0.0, %v1713
        %v1715 = vpop.f32.mrb[0].mxu0
        %1716 = vmatprep.mubr.f32.mxu0 0.0
        %1717 = vmatmul.mubr.f32.gmra.mrb[0].mxu0 %v348
        %v1718 = vpop.f32.mrb[0].mxu0
        %v1719 = vadd.f32 0.0, %v1718
        %v1720 = vpop.f32.mrb[0].mxu0
        %1721 = vmatprep.mubr.f32.mxu0 0.0
        %1722 = vmatmul.mubr.f32.gmra.mrb[0].mxu0 %v350
        %v1723 = vpop.f32.mrb[0].mxu0
        %v1724 = vadd.f32 0.0, %v1723
        %v1725 = vpop.f32.mrb[0].mxu0
        %1726 = vmatprep.mubr.f32.mxu0 0.0
        %1727 = vmatmul.mubr.f32.gmra.mrb[0].mxu0 %v352
        %v1728 = vpop.f32.mrb[0].mxu0
        %v1729 = vadd.f32 0.0, %v1728
        %v1730 = vpop.f32.mrb[0].mxu0
        %1731 = vmatprep.mubr.f32.mxu0 0.0
        %1732 = vmatmul.mubr.f32.gmra.mrb[0].mxu0 %v354
        %v1733 = vpop.f32.mrb[0].mxu0
        %v1734 = vadd.f32 0.0, %v1733
        %v1735 = vpop.f32.mrb[0].mxu0
        %1736 = vmatprep.mubr.f32.mxu0 0.0
        %1737 = vmatmul.mubr.f32.gmra.mrb[0].mxu0 %v356
        %v1738 = vpop.f32.mrb[0].mxu0
        %v1739 = vadd.f32 0.0, %v1738
        %v1740 = vpop.f32.mrb[0].mxu0
        %1741 = vmatprep.mubr.f32.mxu0 0.0
        %1742 = vmatmul.mubr.f32.gmra.mrb[0].mxu0 %v358
        %v1743 = vpop.f32.mrb[0].mxu0
        %v1744 = vadd.f32 0.0, %v1743
        %v1745 = vpop.f32.mrb[0].mxu0
        %1746 = vmatprep.mubr.f32.mxu0 0.0
        %1747 = vmatmul.mubr.f32.gmra.mrb[0].mxu0 %v360
        %v1748 = vpop.f32.mrb[0].mxu0
        %v1749 = vadd.f32 0.0, %v1748
        %v1750 = vpop.f32.mrb[0].mxu0
        %1751 = vmatprep.mubr.f32.mxu0 0.0
        %1752 = vmatmul.mubr.f32.gmra.mrb[0].mxu0 %v362
        %v1753 = vpop.f32.mrb[0].mxu0
        %v1754 = vadd.f32 0.0, %v1753
        %v1755 = vpop.f32.mrb[0].mxu0
        %1756 = vmatprep.mubr.f32.mxu0 0.0
        %1757 = vmatmul.mubr.f32.gmra.mrb[0].mxu0 %v364
        %v1758 = vpop.f32.mrb[0].mxu0
        %v1759 = vadd.f32 0.0, %v1758
        %v1760 = vpop.f32.mrb[0].mxu0
        %1761 = vmatprep.mubr.f32.mxu0 0.0
        %1762 = vmatmul.mubr.f32.gmra.mrb[0].mxu0 %v366
        %v1763 = vpop.f32.mrb[0].mxu0
        %v1764 = vadd.f32 0.0, %v1763
        %v1765 = vpop.f32.mrb[0].mxu0
        %1766 = vmatprep.mubr.f32.mxu0 0.0
        %1767 = vmatmul.mubr.f32.gmra.mrb[0].mxu0 %v368
        %v1768 = vpop.f32.mrb[0].mxu0
        %v1769 = vadd.f32 0.0, %v1768
        %v1770 = vpop.f32.mrb[0].mxu0
        %1771 = vmatprep.mubr.f32.mxu0 0.0
        %1772 = vmatmul.mubr.f32.gmra.mrb[0].mxu0 %v370
        %v1773 = vpop.f32.mrb[0].mxu0
        %v1774 = vadd.f32 0.0, %v1773
        %v1775 = vpop.f32.mrb[0].mxu0
        %1776 = vmatprep.mubr.f32.mxu0 0.0
        %1777 = vmatmul.mubr.f32.gmra.mrb[0].mxu0 %v372
        %v1778 = vpop.f32.mrb[0].mxu0
        %v1779 = vadd.f32 0.0, %v1778
        %v1780 = vpop.f32.mrb[0].mxu0
        %1781 = vmatprep.mubr.f32.mxu0 0.0
        %1782 = vmatmul.mubr.f32.gmra.mrb[0].mxu0 %v374
        %v1783 = vpop.f32.mrb[0].mxu0
        %v1784 = vadd.f32 0.0, %v1783
        %v1785 = vpop.f32.mrb[0].mxu0
        %1786 = vmatprep.mubr.f32.mxu0 0.0
        %1787 = vmatmul.mubr.f32.gmra.mrb[0].mxu0 %v376
        %v1788 = vpop.f32.mrb[0].mxu0
        %v1789 = vadd.f32 0.0, %v1788
        %v1790 = vpop.f32.mrb[0].mxu0
        %1791 = vmatprep.mubr.f32.mxu0 0.0
        %1792 = vmatmul.mubr.f32.gmra.mrb[0].mxu0 %v378
        %v1793 = vpop.f32.mrb[0].mxu0
        %v1794 = vadd.f32 0.0, %v1793
        %v1795 = vpop.f32.mrb[0].mxu0
        %1796 = vmatprep.mubr.f32.mxu0 0.0
        %1797 = vmatmul.mubr.f32.gmra.mrb[0].mxu0 %v380
        %v1798 = vpop.f32.mrb[0].mxu0
        %v1799 = vadd.f32 0.0, %v1798
        %v1800 = vpop.f32.mrb[0].mxu0
        %1801 = vmatprep.mubr.f32.mxu0 0.0
        %1802 = vmatmul.mubr.f32.gmra.mrb[0].mxu0 %v382
        %v1803 = vpop.f32.mrb[0].mxu0
        %v1804 = vadd.f32 0.0, %v1803
        %v1805 = vpop.f32.mrb[0].mxu0
        %1806 = vmatprep.mubr.f32.mxu0 0.0
        %1807 = vmatmul.mubr.f32.gmra.mrb[0].mxu0 %v384
        %v1808 = vpop.f32.mrb[0].mxu0
        %v1809 = vadd.f32 0.0, %v1808
        %v1810 = vpop.f32.mrb[0].mxu0
        %1811 = vmatprep.mubr.f32.mxu0 0.0
        %1812 = vmatmul.mubr.f32.gmra.mrb[0].mxu0 %v1590
        %v1813 = vpop.f32.mrb[0].mxu0
        %v1814 = vadd.f32 0.0, %v1813
        %v1815 = vpop.f32.mrb[0].mxu0
        %1816 = vmatprep.mubr.f32.mxu0 0.0
        %1817 = vmatmul.mubr.f32.gmra.mrb[0].mxu0 %v1592
        %v1818 = vpop.f32.mrb[0].mxu0
        %v1819 = vadd.f32 0.0, %v1818
        %v1820 = vpop.f32.mrb[0].mxu0
        %1821 = vdwg.mxu0
        %v1822 = vadd.f32 %v1550, %v1664
        %v1823 = vadd.f32 %v1551, %v1669
        %v1824 = vadd.f32 %v1552, %v1674
        %v1825 = vadd.f32 %v1553, %v1679
        %v1826 = vadd.f32 %v1554, %v1684
        %v1827 = vadd.f32 %v1555, %v1689
        %v1828 = vadd.f32 %v1556, %v1694
        %v1829 = vadd.f32 %v1557, %v1699
        %v1830 = vadd.f32 %v1558, %v1704
        %v1831 = vadd.f32 %v1559, %v1709
        %v1832 = vadd.f32 %v1560, %v1714
        %v1833 = vadd.f32 %v1561, %v1719
        %v1834 = vadd.f32 %v1562, %v1724
        %v1835 = vadd.f32 %v1563, %v1729
        %v1836 = vadd.f32 %v1564, %v1734
        %v1837 = vadd.f32 %v1565, %v1739
        %v1838 = vadd.f32 %v1566, %v1744
        %v1839 = vadd.f32 %v1567, %v1749
        %v1840 = vadd.f32 %v1568, %v1754
        %v1841 = vadd.f32 %v1569, %v1759
        %v1842 = vadd.f32 %v1570, %v1764
        %v1843 = vadd.f32 %v1571, %v1769
        %v1844 = vadd.f32 %v1572, %v1774
        %v1845 = vadd.f32 %v1573, %v1779
        %v1846 = vadd.f32 %v1574, %v1784
        %v1847 = vadd.f32 %v1575, %v1789
        %v1848 = vadd.f32 %v1576, %v1794
        %v1849 = vadd.f32 %v1577, %v1799
        %v1850 = vadd.f32 %v1578, %v1804
        %v1851 = vadd.f32 %v1579, %v1809
        %v1852 = vadd.f32 %v1580, %v1814
        %v1853 = vadd.f32 %v1581, %v1819
        %v1854 = vrot.slane %v183, 2
        %v1855 = vrot.slane %v184, 2
        %v1856 = vsel %vm907, %v1854, %v1855
        %v1857 = vrot.slane %v185, 2
        %v1858 = vsel %vm907, %v1855, %v1857
        %s1859 = scalar_lea.vmem %s1, 20
        %v1860 = vld [vmem:[%s1859] sm:$0xf]
        %v1861 = vsel %vm321, %v1856, 0
        %v1863 = vsel %vm321, %v1858, 0
        %v1866 = vsel %vm386, %v1860, 0
        %1868 = vmatprep.subr.mxu0 0.0
        %1869 = vmatpush1.msra.mxu0 %v1866
        %1870 = vmatprep.subr.mxu0 0.0
        %1871 = vmatpush1.msra.mxu0 0.0
        %1872 = vmatprep.subr.mxu0 0.0
        %1873 = vmatpush1.msra.mxu0 0.0
        %1874 = vmatprep.subr.mxu0 0.0
        %1875 = vmatpush1.msra.mxu0 0.0
        %1876 = vmatprep.subr.mxu0 0.0
        %1877 = vmatpush1.msra.mxu0 0.0
        %1878 = vmatprep.subr.mxu0 0.0
        %1879 = vmatpush1.msra.mxu0 0.0
        %1880 = vmatprep.subr.mxu0 0.0
        %1881 = vmatpush1.msra.mxu0 0.0
        %1882 = vmatprep.subr.mxu0 0.0
        %1883 = vmatpush1.msra.mxu0 0.0
        %1884 = vmatprep.subr.mxu0 0.0
        %1885 = vmatpush1.msra.mxu0 0.0
        %1886 = vmatprep.subr.mxu0 0.0
        %1887 = vmatpush1.msra.mxu0 0.0
        %1888 = vmatprep.subr.mxu0 0.0
        %1889 = vmatpush1.msra.mxu0 0.0
        %1890 = vmatprep.subr.mxu0 0.0
        %1891 = vmatpush1.msra.mxu0 0.0
        %1892 = vmatprep.subr.mxu0 0.0
        %1893 = vmatpush1.msra.mxu0 0.0
        %1894 = vmatprep.subr.mxu0 0.0
        %1895 = vmatpush1.msra.mxu0 0.0
        %1896 = vmatprep.subr.mxu0 0.0
        %1897 = vmatpush1.msra.mxu0 0.0
        %1898 = vmatprep.subr.mxu0 0.0
        %1899 = vmatpush1.msra.mxu0 0.0
        %1900 = vmatprep.subr.mxu0 0.0
        %1901 = vmatpush1.msra.mxu0 0.0
        %1902 = vmatprep.subr.mxu0 0.0
        %1903 = vmatpush1.msra.mxu0 0.0
        %1904 = vmatprep.subr.mxu0 0.0
        %1905 = vmatpush1.msra.mxu0 0.0
        %1906 = vmatprep.subr.mxu0 0.0
        %1907 = vmatpush1.msra.mxu0 0.0
        %1908 = vmatprep.subr.mxu0 0.0
        %1909 = vmatpush1.msra.mxu0 0.0
        %1910 = vmatprep.subr.mxu0 0.0
        %1911 = vmatpush1.msra.mxu0 0.0
        %1912 = vmatprep.subr.mxu0 0.0
        %1913 = vmatpush1.msra.mxu0 0.0
        %1914 = vmatprep.subr.mxu0 0.0
        %1915 = vmatpush1.msra.mxu0 0.0
        %1916 = vmatprep.subr.mxu0 0.0
        %1917 = vmatpush1.msra.mxu0 0.0
        %1918 = vmatprep.subr.mxu0 0.0
        %1919 = vmatpush1.msra.mxu0 0.0
        %1920 = vmatprep.subr.mxu0 0.0
        %1921 = vmatpush1.msra.mxu0 0.0
        %1922 = vmatprep.subr.mxu0 0.0
        %1923 = vmatpush1.msra.mxu0 0.0
        %1924 = vmatprep.subr.mxu0 0.0
        %1925 = vmatpush1.msra.mxu0 0.0
        %1926 = vmatprep.subr.mxu0 0.0
        %1927 = vmatpush1.msra.mxu0 0.0
        %1928 = vmatprep.subr.mxu0 0.0
        %1929 = vmatpush1.msra.mxu0 0.0
        %1930 = vmatprep.subr.mxu0 0.0
        %1931 = vmatpush1.msra.mxu0 0.0
        %1932 = vmatprep.mubr.f32.mxu0 0.0
        %1933 = vmatmul.mubr.f32.gmra.mrb[0].mxu0 %v994
        %v1934 = vpop.f32.mrb[0].mxu0
        %v1935 = vadd.f32 0.0, %v1934
        %v1936 = vpop.f32.mrb[0].mxu0
        %1937 = vmatprep.mubr.f32.mxu0 0.0
        %1938 = vmatmul.mubr.f32.gmra.mrb[0].mxu0 %v996
        %v1939 = vpop.f32.mrb[0].mxu0
        %v1940 = vadd.f32 0.0, %v1939
        %v1941 = vpop.f32.mrb[0].mxu0
        %1942 = vmatprep.mubr.f32.mxu0 0.0
        %1943 = vmatmul.mubr.f32.gmra.mrb[0].mxu0 %v998
        %v1944 = vpop.f32.mrb[0].mxu0
        %v1945 = vadd.f32 0.0, %v1944
        %v1946 = vpop.f32.mrb[0].mxu0
        %1947 = vmatprep.mubr.f32.mxu0 0.0
        %1948 = vmatmul.mubr.f32.gmra.mrb[0].mxu0 %v1000
        %v1949 = vpop.f32.mrb[0].mxu0
        %v1950 = vadd.f32 0.0, %v1949
        %v1951 = vpop.f32.mrb[0].mxu0
        %1952 = vmatprep.mubr.f32.mxu0 0.0
        %1953 = vmatmul.mubr.f32.gmra.mrb[0].mxu0 %v1002
        %v1954 = vpop.f32.mrb[0].mxu0
        %v1955 = vadd.f32 0.0, %v1954
        %v1956 = vpop.f32.mrb[0].mxu0
        %1957 = vmatprep.mubr.f32.mxu0 0.0
        %1958 = vmatmul.mubr.f32.gmra.mrb[0].mxu0 %v1004
        %v1959 = vpop.f32.mrb[0].mxu0
        %v1960 = vadd.f32 0.0, %v1959
        %v1961 = vpop.f32.mrb[0].mxu0
        %1962 = vmatprep.mubr.f32.mxu0 0.0
        %1963 = vmatmul.mubr.f32.gmra.mrb[0].mxu0 %v1006
        %v1964 = vpop.f32.mrb[0].mxu0
        %v1965 = vadd.f32 0.0, %v1964
        %v1966 = vpop.f32.mrb[0].mxu0
        %1967 = vmatprep.mubr.f32.mxu0 0.0
        %1968 = vmatmul.mubr.f32.gmra.mrb[0].mxu0 %v1008
        %v1969 = vpop.f32.mrb[0].mxu0
        %v1970 = vadd.f32 0.0, %v1969
        %v1971 = vpop.f32.mrb[0].mxu0
        %1972 = vmatprep.mubr.f32.mxu0 0.0
        %1973 = vmatmul.mubr.f32.gmra.mrb[0].mxu0 %v1010
        %v1974 = vpop.f32.mrb[0].mxu0
        %v1975 = vadd.f32 0.0, %v1974
        %v1976 = vpop.f32.mrb[0].mxu0
        %1977 = vmatprep.mubr.f32.mxu0 0.0
        %1978 = vmatmul.mubr.f32.gmra.mrb[0].mxu0 %v1012
        %v1979 = vpop.f32.mrb[0].mxu0
        %v1980 = vadd.f32 0.0, %v1979
        %v1981 = vpop.f32.mrb[0].mxu0
        %1982 = vmatprep.mubr.f32.mxu0 0.0
        %1983 = vmatmul.mubr.f32.gmra.mrb[0].mxu0 %v1014
        %v1984 = vpop.f32.mrb[0].mxu0
        %v1985 = vadd.f32 0.0, %v1984
        %v1986 = vpop.f32.mrb[0].mxu0
        %1987 = vmatprep.mubr.f32.mxu0 0.0
        %1988 = vmatmul.mubr.f32.gmra.mrb[0].mxu0 %v1016
        %v1989 = vpop.f32.mrb[0].mxu0
        %v1990 = vadd.f32 0.0, %v1989
        %v1991 = vpop.f32.mrb[0].mxu0
        %1992 = vmatprep.mubr.f32.mxu0 0.0
        %1993 = vmatmul.mubr.f32.gmra.mrb[0].mxu0 %v1018
        %v1994 = vpop.f32.mrb[0].mxu0
        %v1995 = vadd.f32 0.0, %v1994
        %v1996 = vpop.f32.mrb[0].mxu0
        %1997 = vmatprep.mubr.f32.mxu0 0.0
        %1998 = vmatmul.mubr.f32.gmra.mrb[0].mxu0 %v1020
        %v1999 = vpop.f32.mrb[0].mxu0
        %v2000 = vadd.f32 0.0, %v1999
        %v2001 = vpop.f32.mrb[0].mxu0
        %2002 = vmatprep.mubr.f32.mxu0 0.0
        %2003 = vmatmul.mubr.f32.gmra.mrb[0].mxu0 %v1022
        %v2004 = vpop.f32.mrb[0].mxu0
        %v2005 = vadd.f32 0.0, %v2004
        %v2006 = vpop.f32.mrb[0].mxu0
        %2007 = vmatprep.mubr.f32.mxu0 0.0
        %2008 = vmatmul.mubr.f32.gmra.mrb[0].mxu0 %v1024
        %v2009 = vpop.f32.mrb[0].mxu0
        %v2010 = vadd.f32 0.0, %v2009
        %v2011 = vpop.f32.mrb[0].mxu0
        %2012 = vmatprep.mubr.f32.mxu0 0.0
        %2013 = vmatmul.mubr.f32.gmra.mrb[0].mxu0 %v1026
        %v2014 = vpop.f32.mrb[0].mxu0
        %v2015 = vadd.f32 0.0, %v2014
        %v2016 = vpop.f32.mrb[0].mxu0
        %2017 = vmatprep.mubr.f32.mxu0 0.0
        %2018 = vmatmul.mubr.f32.gmra.mrb[0].mxu0 %v1028
        %v2019 = vpop.f32.mrb[0].mxu0
        %v2020 = vadd.f32 0.0, %v2019
        %v2021 = vpop.f32.mrb[0].mxu0
        %2022 = vmatprep.mubr.f32.mxu0 0.0
        %2023 = vmatmul.mubr.f32.gmra.mrb[0].mxu0 %v1030
        %v2024 = vpop.f32.mrb[0].mxu0
        %v2025 = vadd.f32 0.0, %v2024
        %v2026 = vpop.f32.mrb[0].mxu0
        %2027 = vmatprep.mubr.f32.mxu0 0.0
        %2028 = vmatmul.mubr.f32.gmra.mrb[0].mxu0 %v1032
        %v2029 = vpop.f32.mrb[0].mxu0
        %v2030 = vadd.f32 0.0, %v2029
        %v2031 = vpop.f32.mrb[0].mxu0
        %2032 = vmatprep.mubr.f32.mxu0 0.0
        %2033 = vmatmul.mubr.f32.gmra.mrb[0].mxu0 %v1034
        %v2034 = vpop.f32.mrb[0].mxu0
        %v2035 = vadd.f32 0.0, %v2034
        %v2036 = vpop.f32.mrb[0].mxu0
        %2037 = vmatprep.mubr.f32.mxu0 0.0
        %2038 = vmatmul.mubr.f32.gmra.mrb[0].mxu0 %v1036
        %v2039 = vpop.f32.mrb[0].mxu0
        %v2040 = vadd.f32 0.0, %v2039
        %v2041 = vpop.f32.mrb[0].mxu0
        %2042 = vmatprep.mubr.f32.mxu0 0.0
        %2043 = vmatmul.mubr.f32.gmra.mrb[0].mxu0 %v1038
        %v2044 = vpop.f32.mrb[0].mxu0
        %v2045 = vadd.f32 0.0, %v2044
        %v2046 = vpop.f32.mrb[0].mxu0
        %2047 = vmatprep.mubr.f32.mxu0 0.0
        %2048 = vmatmul.mubr.f32.gmra.mrb[0].mxu0 %v1040
        %v2049 = vpop.f32.mrb[0].mxu0
        %v2050 = vadd.f32 0.0, %v2049
        %v2051 = vpop.f32.mrb[0].mxu0
        %2052 = vmatprep.mubr.f32.mxu0 0.0
        %2053 = vmatmul.mubr.f32.gmra.mrb[0].mxu0 %v1042
        %v2054 = vpop.f32.mrb[0].mxu0
        %v2055 = vadd.f32 0.0, %v2054
        %v2056 = vpop.f32.mrb[0].mxu0
        %2057 = vmatprep.mubr.f32.mxu0 0.0
        %2058 = vmatmul.mubr.f32.gmra.mrb[0].mxu0 %v1044
        %v2059 = vpop.f32.mrb[0].mxu0
        %v2060 = vadd.f32 0.0, %v2059
        %v2061 = vpop.f32.mrb[0].mxu0
        %2062 = vmatprep.mubr.f32.mxu0 0.0
        %2063 = vmatmul.mubr.f32.gmra.mrb[0].mxu0 %v1046
        %v2064 = vpop.f32.mrb[0].mxu0
        %v2065 = vadd.f32 0.0, %v2064
        %v2066 = vpop.f32.mrb[0].mxu0
        %2067 = vmatprep.mubr.f32.mxu0 0.0
        %2068 = vmatmul.mubr.f32.gmra.mrb[0].mxu0 %v1048
        %v2069 = vpop.f32.mrb[0].mxu0
        %v2070 = vadd.f32 0.0, %v2069
        %v2071 = vpop.f32.mrb[0].mxu0
        %2072 = vmatprep.mubr.f32.mxu0 0.0
        %2073 = vmatmul.mubr.f32.gmra.mrb[0].mxu0 %v1050
        %v2074 = vpop.f32.mrb[0].mxu0
        %v2075 = vadd.f32 0.0, %v2074
        %v2076 = vpop.f32.mrb[0].mxu0
        %2077 = vmatprep.mubr.f32.mxu0 0.0
        %2078 = vmatmul.mubr.f32.gmra.mrb[0].mxu0 %v1052
        %v2079 = vpop.f32.mrb[0].mxu0
        %v2080 = vadd.f32 0.0, %v2079
        %v2081 = vpop.f32.mrb[0].mxu0
        %2082 = vmatprep.mubr.f32.mxu0 0.0
        %2083 = vmatmul.mubr.f32.gmra.mrb[0].mxu0 %v1861
        %v2084 = vpop.f32.mrb[0].mxu0
        %v2085 = vadd.f32 0.0, %v2084
        %v2086 = vpop.f32.mrb[0].mxu0
        %2087 = vmatprep.mubr.f32.mxu0 0.0
        %2088 = vmatmul.mubr.f32.gmra.mrb[0].mxu0 %v1863
        %v2089 = vpop.f32.mrb[0].mxu0
        %v2090 = vadd.f32 0.0, %v2089
        %v2091 = vpop.f32.mrb[0].mxu0
        %2092 = vdwg.mxu0
        %v2093 = vadd.f32 %v1822, %v1935
        %v2094 = vadd.f32 %v1823, %v1940
        %v2095 = vadd.f32 %v1824, %v1945
        %v2096 = vadd.f32 %v1825, %v1950
        %v2097 = vadd.f32 %v1826, %v1955
        %v2098 = vadd.f32 %v1827, %v1960
        %v2099 = vadd.f32 %v1828, %v1965
        %v2100 = vadd.f32 %v1829, %v1970
        %v2101 = vadd.f32 %v1830, %v1975
        %v2102 = vadd.f32 %v1831, %v1980
        %v2103 = vadd.f32 %v1832, %v1985
        %v2104 = vadd.f32 %v1833, %v1990
        %v2105 = vadd.f32 %v1834, %v1995
        %v2106 = vadd.f32 %v1835, %v2000
        %v2107 = vadd.f32 %v1836, %v2005
        %v2108 = vadd.f32 %v1837, %v2010
        %v2109 = vadd.f32 %v1838, %v2015
        %v2110 = vadd.f32 %v1839, %v2020
        %v2111 = vadd.f32 %v1840, %v2025
        %v2112 = vadd.f32 %v1841, %v2030
        %v2113 = vadd.f32 %v1842, %v2035
        %v2114 = vadd.f32 %v1843, %v2040
        %v2115 = vadd.f32 %v1844, %v2045
        %v2116 = vadd.f32 %v1845, %v2050
        %v2117 = vadd.f32 %v1846, %v2055
        %v2118 = vadd.f32 %v1847, %v2060
        %v2119 = vadd.f32 %v1848, %v2065
        %v2120 = vadd.f32 %v1849, %v2070
        %v2121 = vadd.f32 %v1850, %v2075
        %v2122 = vadd.f32 %v1851, %v2080
        %v2123 = vadd.f32 %v1852, %v2085
        %v2124 = vadd.f32 %v1853, %v2090
        %s2125 = scalar_lea.vmem %s1, 24
        %v2126 = vld [vmem:[%s2125] sm:$0xf]
        %v2128 = vsel %vm321, %v186, 0
        %v2131 = vsel %vm321, %v187, 0
        %v2134 = vsel %vm386, %v2126, 0
        %2136 = vmatprep.subr.mxu0 0.0
        %2137 = vmatpush1.msra.mxu0 %v2134
        %2138 = vmatprep.subr.mxu0 0.0
        %2139 = vmatpush1.msra.mxu0 0.0
        %2140 = vmatprep.subr.mxu0 0.0
        %2141 = vmatpush1.msra.mxu0 0.0
        %2142 = vmatprep.subr.mxu0 0.0
        %2143 = vmatpush1.msra.mxu0 0.0
        %2144 = vmatprep.subr.mxu0 0.0
        %2145 = vmatpush1.msra.mxu0 0.0
        %2146 = vmatprep.subr.mxu0 0.0
        %2147 = vmatpush1.msra.mxu0 0.0
        %2148 = vmatprep.subr.mxu0 0.0
        %2149 = vmatpush1.msra.mxu0 0.0
        %2150 = vmatprep.subr.mxu0 0.0
        %2151 = vmatpush1.msra.mxu0 0.0
        %2152 = vmatprep.subr.mxu0 0.0
        %2153 = vmatpush1.msra.mxu0 0.0
        %2154 = vmatprep.subr.mxu0 0.0
        %2155 = vmatpush1.msra.mxu0 0.0
        %2156 = vmatprep.subr.mxu0 0.0
        %2157 = vmatpush1.msra.mxu0 0.0
        %2158 = vmatprep.subr.mxu0 0.0
        %2159 = vmatpush1.msra.mxu0 0.0
        %2160 = vmatprep.subr.mxu0 0.0
        %2161 = vmatpush1.msra.mxu0 0.0
        %2162 = vmatprep.subr.mxu0 0.0
        %2163 = vmatpush1.msra.mxu0 0.0
        %2164 = vmatprep.subr.mxu0 0.0
        %2165 = vmatpush1.msra.mxu0 0.0
        %2166 = vmatprep.subr.mxu0 0.0
        %2167 = vmatpush1.msra.mxu0 0.0
        %2168 = vmatprep.subr.mxu0 0.0
        %2169 = vmatpush1.msra.mxu0 0.0
        %2170 = vmatprep.subr.mxu0 0.0
        %2171 = vmatpush1.msra.mxu0 0.0
        %2172 = vmatprep.subr.mxu0 0.0
        %2173 = vmatpush1.msra.mxu0 0.0
        %2174 = vmatprep.subr.mxu0 0.0
        %2175 = vmatpush1.msra.mxu0 0.0
        %2176 = vmatprep.subr.mxu0 0.0
        %2177 = vmatpush1.msra.mxu0 0.0
        %2178 = vmatprep.subr.mxu0 0.0
        %2179 = vmatpush1.msra.mxu0 0.0
        %2180 = vmatprep.subr.mxu0 0.0
        %2181 = vmatpush1.msra.mxu0 0.0
        %2182 = vmatprep.subr.mxu0 0.0
        %2183 = vmatpush1.msra.mxu0 0.0
        %2184 = vmatprep.subr.mxu0 0.0
        %2185 = vmatpush1.msra.mxu0 0.0
        %2186 = vmatprep.subr.mxu0 0.0
        %2187 = vmatpush1.msra.mxu0 0.0
        %2188 = vmatprep.subr.mxu0 0.0
        %2189 = vmatpush1.msra.mxu0 0.0
        %2190 = vmatprep.subr.mxu0 0.0
        %2191 = vmatpush1.msra.mxu0 0.0
        %2192 = vmatprep.subr.mxu0 0.0
        %2193 = vmatpush1.msra.mxu0 0.0
        %2194 = vmatprep.subr.mxu0 0.0
        %2195 = vmatpush1.msra.mxu0 0.0
        %2196 = vmatprep.subr.mxu0 0.0
        %2197 = vmatpush1.msra.mxu0 0.0
        %2198 = vmatprep.subr.mxu0 0.0
        %2199 = vmatpush1.msra.mxu0 0.0
        %2200 = vmatprep.mubr.f32.mxu0 0.0
        %2201 = vmatmul.mubr.f32.gmra.mrb[0].mxu0 %v623
        %v2202 = vpop.f32.mrb[0].mxu0
        %v2203 = vadd.f32 0.0, %v2202
        %v2204 = vpop.f32.mrb[0].mxu0
        %2205 = vmatprep.mubr.f32.mxu0 0.0
        %2206 = vmatmul.mubr.f32.gmra.mrb[0].mxu0 %v625
        %v2207 = vpop.f32.mrb[0].mxu0
        %v2208 = vadd.f32 0.0, %v2207
        %v2209 = vpop.f32.mrb[0].mxu0
        %2210 = vmatprep.mubr.f32.mxu0 0.0
        %2211 = vmatmul.mubr.f32.gmra.mrb[0].mxu0 %v627
        %v2212 = vpop.f32.mrb[0].mxu0
        %v2213 = vadd.f32 0.0, %v2212
        %v2214 = vpop.f32.mrb[0].mxu0
        %2215 = vmatprep.mubr.f32.mxu0 0.0
        %2216 = vmatmul.mubr.f32.gmra.mrb[0].mxu0 %v629
        %v2217 = vpop.f32.mrb[0].mxu0
        %v2218 = vadd.f32 0.0, %v2217
        %v2219 = vpop.f32.mrb[0].mxu0
        %2220 = vmatprep.mubr.f32.mxu0 0.0
        %2221 = vmatmul.mubr.f32.gmra.mrb[0].mxu0 %v631
        %v2222 = vpop.f32.mrb[0].mxu0
        %v2223 = vadd.f32 0.0, %v2222
        %v2224 = vpop.f32.mrb[0].mxu0
        %2225 = vmatprep.mubr.f32.mxu0 0.0
        %2226 = vmatmul.mubr.f32.gmra.mrb[0].mxu0 %v633
        %v2227 = vpop.f32.mrb[0].mxu0
        %v2228 = vadd.f32 0.0, %v2227
        %v2229 = vpop.f32.mrb[0].mxu0
        %2230 = vmatprep.mubr.f32.mxu0 0.0
        %2231 = vmatmul.mubr.f32.gmra.mrb[0].mxu0 %v635
        %v2232 = vpop.f32.mrb[0].mxu0
        %v2233 = vadd.f32 0.0, %v2232
        %v2234 = vpop.f32.mrb[0].mxu0
        %2235 = vmatprep.mubr.f32.mxu0 0.0
        %2236 = vmatmul.mubr.f32.gmra.mrb[0].mxu0 %v637
        %v2237 = vpop.f32.mrb[0].mxu0
        %v2238 = vadd.f32 0.0, %v2237
        %v2239 = vpop.f32.mrb[0].mxu0
        %2240 = vmatprep.mubr.f32.mxu0 0.0
        %2241 = vmatmul.mubr.f32.gmra.mrb[0].mxu0 %v639
        %v2242 = vpop.f32.mrb[0].mxu0
        %v2243 = vadd.f32 0.0, %v2242
        %v2244 = vpop.f32.mrb[0].mxu0
        %2245 = vmatprep.mubr.f32.mxu0 0.0
        %2246 = vmatmul.mubr.f32.gmra.mrb[0].mxu0 %v641
        %v2247 = vpop.f32.mrb[0].mxu0
        %v2248 = vadd.f32 0.0, %v2247
        %v2249 = vpop.f32.mrb[0].mxu0
        %2250 = vmatprep.mubr.f32.mxu0 0.0
        %2251 = vmatmul.mubr.f32.gmra.mrb[0].mxu0 %v643
        %v2252 = vpop.f32.mrb[0].mxu0
        %v2253 = vadd.f32 0.0, %v2252
        %v2254 = vpop.f32.mrb[0].mxu0
        %2255 = vmatprep.mubr.f32.mxu0 0.0
        %2256 = vmatmul.mubr.f32.gmra.mrb[0].mxu0 %v645
        %v2257 = vpop.f32.mrb[0].mxu0
        %v2258 = vadd.f32 0.0, %v2257
        %v2259 = vpop.f32.mrb[0].mxu0
        %2260 = vmatprep.mubr.f32.mxu0 0.0
        %2261 = vmatmul.mubr.f32.gmra.mrb[0].mxu0 %v647
        %v2262 = vpop.f32.mrb[0].mxu0
        %v2263 = vadd.f32 0.0, %v2262
        %v2264 = vpop.f32.mrb[0].mxu0
        %2265 = vmatprep.mubr.f32.mxu0 0.0
        %2266 = vmatmul.mubr.f32.gmra.mrb[0].mxu0 %v649
        %v2267 = vpop.f32.mrb[0].mxu0
        %v2268 = vadd.f32 0.0, %v2267
        %v2269 = vpop.f32.mrb[0].mxu0
        %2270 = vmatprep.mubr.f32.mxu0 0.0
        %2271 = vmatmul.mubr.f32.gmra.mrb[0].mxu0 %v651
        %v2272 = vpop.f32.mrb[0].mxu0
        %v2273 = vadd.f32 0.0, %v2272
        %v2274 = vpop.f32.mrb[0].mxu0
        %2275 = vmatprep.mubr.f32.mxu0 0.0
        %2276 = vmatmul.mubr.f32.gmra.mrb[0].mxu0 %v653
        %v2277 = vpop.f32.mrb[0].mxu0
        %v2278 = vadd.f32 0.0, %v2277
        %v2279 = vpop.f32.mrb[0].mxu0
        %2280 = vmatprep.mubr.f32.mxu0 0.0
        %2281 = vmatmul.mubr.f32.gmra.mrb[0].mxu0 %v655
        %v2282 = vpop.f32.mrb[0].mxu0
        %v2283 = vadd.f32 0.0, %v2282
        %v2284 = vpop.f32.mrb[0].mxu0
        %2285 = vmatprep.mubr.f32.mxu0 0.0
        %2286 = vmatmul.mubr.f32.gmra.mrb[0].mxu0 %v657
        %v2287 = vpop.f32.mrb[0].mxu0
        %v2288 = vadd.f32 0.0, %v2287
        %v2289 = vpop.f32.mrb[0].mxu0
        %2290 = vmatprep.mubr.f32.mxu0 0.0
        %2291 = vmatmul.mubr.f32.gmra.mrb[0].mxu0 %v659
        %v2292 = vpop.f32.mrb[0].mxu0
        %v2293 = vadd.f32 0.0, %v2292
        %v2294 = vpop.f32.mrb[0].mxu0
        %2295 = vmatprep.mubr.f32.mxu0 0.0
        %2296 = vmatmul.mubr.f32.gmra.mrb[0].mxu0 %v661
        %v2297 = vpop.f32.mrb[0].mxu0
        %v2298 = vadd.f32 0.0, %v2297
        %v2299 = vpop.f32.mrb[0].mxu0
        %2300 = vmatprep.mubr.f32.mxu0 0.0
        %2301 = vmatmul.mubr.f32.gmra.mrb[0].mxu0 %v663
        %v2302 = vpop.f32.mrb[0].mxu0
        %v2303 = vadd.f32 0.0, %v2302
        %v2304 = vpop.f32.mrb[0].mxu0
        %2305 = vmatprep.mubr.f32.mxu0 0.0
        %2306 = vmatmul.mubr.f32.gmra.mrb[0].mxu0 %v665
        %v2307 = vpop.f32.mrb[0].mxu0
        %v2308 = vadd.f32 0.0, %v2307
        %v2309 = vpop.f32.mrb[0].mxu0
        %2310 = vmatprep.mubr.f32.mxu0 0.0
        %2311 = vmatmul.mubr.f32.gmra.mrb[0].mxu0 %v667
        %v2312 = vpop.f32.mrb[0].mxu0
        %v2313 = vadd.f32 0.0, %v2312
        %v2314 = vpop.f32.mrb[0].mxu0
        %2315 = vmatprep.mubr.f32.mxu0 0.0
        %2316 = vmatmul.mubr.f32.gmra.mrb[0].mxu0 %v669
        %v2317 = vpop.f32.mrb[0].mxu0
        %v2318 = vadd.f32 0.0, %v2317
        %v2319 = vpop.f32.mrb[0].mxu0
        %2320 = vmatprep.mubr.f32.mxu0 0.0
        %2321 = vmatmul.mubr.f32.gmra.mrb[0].mxu0 %v671
        %v2322 = vpop.f32.mrb[0].mxu0
        %v2323 = vadd.f32 0.0, %v2322
        %v2324 = vpop.f32.mrb[0].mxu0
        %2325 = vmatprep.mubr.f32.mxu0 0.0
        %2326 = vmatmul.mubr.f32.gmra.mrb[0].mxu0 %v673
        %v2327 = vpop.f32.mrb[0].mxu0
        %v2328 = vadd.f32 0.0, %v2327
        %v2329 = vpop.f32.mrb[0].mxu0
        %2330 = vmatprep.mubr.f32.mxu0 0.0
        %2331 = vmatmul.mubr.f32.gmra.mrb[0].mxu0 %v675
        %v2332 = vpop.f32.mrb[0].mxu0
        %v2333 = vadd.f32 0.0, %v2332
        %v2334 = vpop.f32.mrb[0].mxu0
        %2335 = vmatprep.mubr.f32.mxu0 0.0
        %2336 = vmatmul.mubr.f32.gmra.mrb[0].mxu0 %v677
        %v2337 = vpop.f32.mrb[0].mxu0
        %v2338 = vadd.f32 0.0, %v2337
        %v2339 = vpop.f32.mrb[0].mxu0
        %2340 = vmatprep.mubr.f32.mxu0 0.0
        %2341 = vmatmul.mubr.f32.gmra.mrb[0].mxu0 %v1317
        %v2342 = vpop.f32.mrb[0].mxu0
        %v2343 = vadd.f32 0.0, %v2342
        %v2344 = vpop.f32.mrb[0].mxu0
        %2345 = vmatprep.mubr.f32.mxu0 0.0
        %2346 = vmatmul.mubr.f32.gmra.mrb[0].mxu0 %v1320
        %v2347 = vpop.f32.mrb[0].mxu0
        %v2348 = vadd.f32 0.0, %v2347
        %v2349 = vpop.f32.mrb[0].mxu0
        %2350 = vmatprep.mubr.f32.mxu0 0.0
        %2351 = vmatmul.mubr.f32.gmra.mrb[0].mxu0 %v2128
        %v2352 = vpop.f32.mrb[0].mxu0
        %v2353 = vadd.f32 0.0, %v2352
        %v2354 = vpop.f32.mrb[0].mxu0
        %2355 = vmatprep.mubr.f32.mxu0 0.0
        %2356 = vmatmul.mubr.f32.gmra.mrb[0].mxu0 %v2131
        %v2357 = vpop.f32.mrb[0].mxu0
        %v2358 = vadd.f32 0.0, %v2357
        %v2359 = vpop.f32.mrb[0].mxu0
        %2360 = vdwg.mxu0
        %v2361 = vadd.f32 %v2093, %v2203
        %v2362 = vadd.f32 %v2094, %v2208
        %v2363 = vadd.f32 %v2095, %v2213
        %v2364 = vadd.f32 %v2096, %v2218
        %v2365 = vadd.f32 %v2097, %v2223
        %v2366 = vadd.f32 %v2098, %v2228
        %v2367 = vadd.f32 %v2099, %v2233
        %v2368 = vadd.f32 %v2100, %v2238
        %v2369 = vadd.f32 %v2101, %v2243
        %v2370 = vadd.f32 %v2102, %v2248
        %v2371 = vadd.f32 %v2103, %v2253
        %v2372 = vadd.f32 %v2104, %v2258
        %v2373 = vadd.f32 %v2105, %v2263
        %v2374 = vadd.f32 %v2106, %v2268
        %v2375 = vadd.f32 %v2107, %v2273
        %v2376 = vadd.f32 %v2108, %v2278
        %v2377 = vadd.f32 %v2109, %v2283
        %v2378 = vadd.f32 %v2110, %v2288
        %v2379 = vadd.f32 %v2111, %v2293
        %v2380 = vadd.f32 %v2112, %v2298
        %v2381 = vadd.f32 %v2113, %v2303
        %v2382 = vadd.f32 %v2114, %v2308
        %v2383 = vadd.f32 %v2115, %v2313
        %v2384 = vadd.f32 %v2116, %v2318
        %v2385 = vadd.f32 %v2117, %v2323
        %v2386 = vadd.f32 %v2118, %v2328
        %v2387 = vadd.f32 %v2119, %v2333
        %v2388 = vadd.f32 %v2120, %v2338
        %v2389 = vadd.f32 %v2121, %v2343
        %v2390 = vadd.f32 %v2122, %v2348
        %v2391 = vadd.f32 %v2123, %v2353
        %v2392 = vadd.f32 %v2124, %v2358
        %v2394 = vrot.slane %v186, 1
        %v2395 = vrot.slane %v187, 1
        %v2396 = vsel %vm238, %v2394, %v2395
        %v2397 = vrot.slane %v188, 1
        %v2398 = vsel %vm238, %v2395, %v2397
        %s2399 = scalar_lea.vmem %s1, 28
        %v2400 = vld [vmem:[%s2399] sm:$0xf]
        %v2401 = vsel %vm321, %v2396, 0
        %v2403 = vsel %vm321, %v2398, 0
        %v2406 = vsel %vm386, %v2400, 0
        %2408 = vmatprep.subr.mxu0 0.0
        %2409 = vmatpush1.msra.mxu0 %v2406
        %2410 = vmatprep.subr.mxu0 0.0
        %2411 = vmatpush1.msra.mxu0 0.0
        %2412 = vmatprep.subr.mxu0 0.0
        %2413 = vmatpush1.msra.mxu0 0.0
        %2414 = vmatprep.subr.mxu0 0.0
        %2415 = vmatpush1.msra.mxu0 0.0
        %2416 = vmatprep.subr.mxu0 0.0
        %2417 = vmatpush1.msra.mxu0 0.0
        %2418 = vmatprep.subr.mxu0 0.0
        %2419 = vmatpush1.msra.mxu0 0.0
        %2420 = vmatprep.subr.mxu0 0.0
        %2421 = vmatpush1.msra.mxu0 0.0
        %2422 = vmatprep.subr.mxu0 0.0
        %2423 = vmatpush1.msra.mxu0 0.0
        %2424 = vmatprep.subr.mxu0 0.0
        %2425 = vmatpush1.msra.mxu0 0.0
        %2426 = vmatprep.subr.mxu0 0.0
        %2427 = vmatpush1.msra.mxu0 0.0
        %2428 = vmatprep.subr.mxu0 0.0
        %2429 = vmatpush1.msra.mxu0 0.0
        %2430 = vmatprep.subr.mxu0 0.0
        %2431 = vmatpush1.msra.mxu0 0.0
        %2432 = vmatprep.subr.mxu0 0.0
        %2433 = vmatpush1.msra.mxu0 0.0
        %2434 = vmatprep.subr.mxu0 0.0
        %2435 = vmatpush1.msra.mxu0 0.0
        %2436 = vmatprep.subr.mxu0 0.0
        %2437 = vmatpush1.msra.mxu0 0.0
        %2438 = vmatprep.subr.mxu0 0.0
        %2439 = vmatpush1.msra.mxu0 0.0
        %2440 = vmatprep.subr.mxu0 0.0
        %2441 = vmatpush1.msra.mxu0 0.0
        %2442 = vmatprep.subr.mxu0 0.0
        %2443 = vmatpush1.msra.mxu0 0.0
        %2444 = vmatprep.subr.mxu0 0.0
        %2445 = vmatpush1.msra.mxu0 0.0
        %2446 = vmatprep.subr.mxu0 0.0
        %2447 = vmatpush1.msra.mxu0 0.0
        %2448 = vmatprep.subr.mxu0 0.0
        %2449 = vmatpush1.msra.mxu0 0.0
        %2450 = vmatprep.subr.mxu0 0.0
        %2451 = vmatpush1.msra.mxu0 0.0
        %2452 = vmatprep.subr.mxu0 0.0
        %2453 = vmatpush1.msra.mxu0 0.0
        %2454 = vmatprep.subr.mxu0 0.0
        %2455 = vmatpush1.msra.mxu0 0.0
        %2456 = vmatprep.subr.mxu0 0.0
        %2457 = vmatpush1.msra.mxu0 0.0
        %2458 = vmatprep.subr.mxu0 0.0
        %2459 = vmatpush1.msra.mxu0 0.0
        %2460 = vmatprep.subr.mxu0 0.0
        %2461 = vmatpush1.msra.mxu0 0.0
        %2462 = vmatprep.subr.mxu0 0.0
        %2463 = vmatpush1.msra.mxu0 0.0
        %2464 = vmatprep.subr.mxu0 0.0
        %2465 = vmatpush1.msra.mxu0 0.0
        %2466 = vmatprep.subr.mxu0 0.0
        %2467 = vmatpush1.msra.mxu0 0.0
        %2468 = vmatprep.subr.mxu0 0.0
        %2469 = vmatpush1.msra.mxu0 0.0
        %2470 = vmatprep.subr.mxu0 0.0
        %2471 = vmatpush1.msra.mxu0 0.0
        %2472 = vmatprep.mubr.f32.mxu0 0.0
        %2473 = vmatmul.mubr.f32.gmra.mrb[0].mxu0 %v330
        %v2474 = vpop.f32.mrb[0].mxu0
        %v2475 = vadd.f32 0.0, %v2474
        %v2476 = vpop.f32.mrb[0].mxu0
        %2477 = vmatprep.mubr.f32.mxu0 0.0
        %2478 = vmatmul.mubr.f32.gmra.mrb[0].mxu0 %v332
        %v2479 = vpop.f32.mrb[0].mxu0
        %v2480 = vadd.f32 0.0, %v2479
        %v2481 = vpop.f32.mrb[0].mxu0
        %2482 = vmatprep.mubr.f32.mxu0 0.0
        %2483 = vmatmul.mubr.f32.gmra.mrb[0].mxu0 %v334
        %v2484 = vpop.f32.mrb[0].mxu0
        %v2485 = vadd.f32 0.0, %v2484
        %v2486 = vpop.f32.mrb[0].mxu0
        %2487 = vmatprep.mubr.f32.mxu0 0.0
        %2488 = vmatmul.mubr.f32.gmra.mrb[0].mxu0 %v336
        %v2489 = vpop.f32.mrb[0].mxu0
        %v2490 = vadd.f32 0.0, %v2489
        %v2491 = vpop.f32.mrb[0].mxu0
        %2492 = vmatprep.mubr.f32.mxu0 0.0
        %2493 = vmatmul.mubr.f32.gmra.mrb[0].mxu0 %v338
        %v2494 = vpop.f32.mrb[0].mxu0
        %v2495 = vadd.f32 0.0, %v2494
        %v2496 = vpop.f32.mrb[0].mxu0
        %2497 = vmatprep.mubr.f32.mxu0 0.0
        %2498 = vmatmul.mubr.f32.gmra.mrb[0].mxu0 %v340
        %v2499 = vpop.f32.mrb[0].mxu0
        %v2500 = vadd.f32 0.0, %v2499
        %v2501 = vpop.f32.mrb[0].mxu0
        %2502 = vmatprep.mubr.f32.mxu0 0.0
        %2503 = vmatmul.mubr.f32.gmra.mrb[0].mxu0 %v342
        %v2504 = vpop.f32.mrb[0].mxu0
        %v2505 = vadd.f32 0.0, %v2504
        %v2506 = vpop.f32.mrb[0].mxu0
        %2507 = vmatprep.mubr.f32.mxu0 0.0
        %2508 = vmatmul.mubr.f32.gmra.mrb[0].mxu0 %v344
        %v2509 = vpop.f32.mrb[0].mxu0
        %v2510 = vadd.f32 0.0, %v2509
        %v2511 = vpop.f32.mrb[0].mxu0
        %2512 = vmatprep.mubr.f32.mxu0 0.0
        %2513 = vmatmul.mubr.f32.gmra.mrb[0].mxu0 %v346
        %v2514 = vpop.f32.mrb[0].mxu0
        %v2515 = vadd.f32 0.0, %v2514
        %v2516 = vpop.f32.mrb[0].mxu0
        %2517 = vmatprep.mubr.f32.mxu0 0.0
        %2518 = vmatmul.mubr.f32.gmra.mrb[0].mxu0 %v348
        %v2519 = vpop.f32.mrb[0].mxu0
        %v2520 = vadd.f32 0.0, %v2519
        %v2521 = vpop.f32.mrb[0].mxu0
        %2522 = vmatprep.mubr.f32.mxu0 0.0
        %2523 = vmatmul.mubr.f32.gmra.mrb[0].mxu0 %v350
        %v2524 = vpop.f32.mrb[0].mxu0
        %v2525 = vadd.f32 0.0, %v2524
        %v2526 = vpop.f32.mrb[0].mxu0
        %2527 = vmatprep.mubr.f32.mxu0 0.0
        %2528 = vmatmul.mubr.f32.gmra.mrb[0].mxu0 %v352
        %v2529 = vpop.f32.mrb[0].mxu0
        %v2530 = vadd.f32 0.0, %v2529
        %v2531 = vpop.f32.mrb[0].mxu0
        %2532 = vmatprep.mubr.f32.mxu0 0.0
        %2533 = vmatmul.mubr.f32.gmra.mrb[0].mxu0 %v354
        %v2534 = vpop.f32.mrb[0].mxu0
        %v2535 = vadd.f32 0.0, %v2534
        %v2536 = vpop.f32.mrb[0].mxu0
        %2537 = vmatprep.mubr.f32.mxu0 0.0
        %2538 = vmatmul.mubr.f32.gmra.mrb[0].mxu0 %v356
        %v2539 = vpop.f32.mrb[0].mxu0
        %v2540 = vadd.f32 0.0, %v2539
        %v2541 = vpop.f32.mrb[0].mxu0
        %2542 = vmatprep.mubr.f32.mxu0 0.0
        %2543 = vmatmul.mubr.f32.gmra.mrb[0].mxu0 %v358
        %v2544 = vpop.f32.mrb[0].mxu0
        %v2545 = vadd.f32 0.0, %v2544
        %v2546 = vpop.f32.mrb[0].mxu0
        %2547 = vmatprep.mubr.f32.mxu0 0.0
        %2548 = vmatmul.mubr.f32.gmra.mrb[0].mxu0 %v360
        %v2549 = vpop.f32.mrb[0].mxu0
        %v2550 = vadd.f32 0.0, %v2549
        %v2551 = vpop.f32.mrb[0].mxu0
        %2552 = vmatprep.mubr.f32.mxu0 0.0
        %2553 = vmatmul.mubr.f32.gmra.mrb[0].mxu0 %v362
        %v2554 = vpop.f32.mrb[0].mxu0
        %v2555 = vadd.f32 0.0, %v2554
        %v2556 = vpop.f32.mrb[0].mxu0
        %2557 = vmatprep.mubr.f32.mxu0 0.0
        %2558 = vmatmul.mubr.f32.gmra.mrb[0].mxu0 %v364
        %v2559 = vpop.f32.mrb[0].mxu0
        %v2560 = vadd.f32 0.0, %v2559
        %v2561 = vpop.f32.mrb[0].mxu0
        %2562 = vmatprep.mubr.f32.mxu0 0.0
        %2563 = vmatmul.mubr.f32.gmra.mrb[0].mxu0 %v366
        %v2564 = vpop.f32.mrb[0].mxu0
        %v2565 = vadd.f32 0.0, %v2564
        %v2566 = vpop.f32.mrb[0].mxu0
        %2567 = vmatprep.mubr.f32.mxu0 0.0
        %2568 = vmatmul.mubr.f32.gmra.mrb[0].mxu0 %v368
        %v2569 = vpop.f32.mrb[0].mxu0
        %v2570 = vadd.f32 0.0, %v2569
        %v2571 = vpop.f32.mrb[0].mxu0
        %2572 = vmatprep.mubr.f32.mxu0 0.0
        %2573 = vmatmul.mubr.f32.gmra.mrb[0].mxu0 %v370
        %v2574 = vpop.f32.mrb[0].mxu0
        %v2575 = vadd.f32 0.0, %v2574
        %v2576 = vpop.f32.mrb[0].mxu0
        %2577 = vmatprep.mubr.f32.mxu0 0.0
        %2578 = vmatmul.mubr.f32.gmra.mrb[0].mxu0 %v372
        %v2579 = vpop.f32.mrb[0].mxu0
        %v2580 = vadd.f32 0.0, %v2579
        %v2581 = vpop.f32.mrb[0].mxu0
        %2582 = vmatprep.mubr.f32.mxu0 0.0
        %2583 = vmatmul.mubr.f32.gmra.mrb[0].mxu0 %v374
        %v2584 = vpop.f32.mrb[0].mxu0
        %v2585 = vadd.f32 0.0, %v2584
        %v2586 = vpop.f32.mrb[0].mxu0
        %2587 = vmatprep.mubr.f32.mxu0 0.0
        %2588 = vmatmul.mubr.f32.gmra.mrb[0].mxu0 %v376
        %v2589 = vpop.f32.mrb[0].mxu0
        %v2590 = vadd.f32 0.0, %v2589
        %v2591 = vpop.f32.mrb[0].mxu0
        %2592 = vmatprep.mubr.f32.mxu0 0.0
        %2593 = vmatmul.mubr.f32.gmra.mrb[0].mxu0 %v378
        %v2594 = vpop.f32.mrb[0].mxu0
        %v2595 = vadd.f32 0.0, %v2594
        %v2596 = vpop.f32.mrb[0].mxu0
        %2597 = vmatprep.mubr.f32.mxu0 0.0
        %2598 = vmatmul.mubr.f32.gmra.mrb[0].mxu0 %v380
        %v2599 = vpop.f32.mrb[0].mxu0
        %v2600 = vadd.f32 0.0, %v2599
        %v2601 = vpop.f32.mrb[0].mxu0
        %2602 = vmatprep.mubr.f32.mxu0 0.0
        %2603 = vmatmul.mubr.f32.gmra.mrb[0].mxu0 %v382
        %v2604 = vpop.f32.mrb[0].mxu0
        %v2605 = vadd.f32 0.0, %v2604
        %v2606 = vpop.f32.mrb[0].mxu0
        %2607 = vmatprep.mubr.f32.mxu0 0.0
        %2608 = vmatmul.mubr.f32.gmra.mrb[0].mxu0 %v384
        %v2609 = vpop.f32.mrb[0].mxu0
        %v2610 = vadd.f32 0.0, %v2609
        %v2611 = vpop.f32.mrb[0].mxu0
        %2612 = vmatprep.mubr.f32.mxu0 0.0
        %2613 = vmatmul.mubr.f32.gmra.mrb[0].mxu0 %v1590
        %v2614 = vpop.f32.mrb[0].mxu0
        %v2615 = vadd.f32 0.0, %v2614
        %v2616 = vpop.f32.mrb[0].mxu0
        %2617 = vmatprep.mubr.f32.mxu0 0.0
        %2618 = vmatmul.mubr.f32.gmra.mrb[0].mxu0 %v1592
        %v2619 = vpop.f32.mrb[0].mxu0
        %v2620 = vadd.f32 0.0, %v2619
        %v2621 = vpop.f32.mrb[0].mxu0
        %2622 = vmatprep.mubr.f32.mxu0 0.0
        %2623 = vmatmul.mubr.f32.gmra.mrb[0].mxu0 %v2401
        %v2624 = vpop.f32.mrb[0].mxu0
        %v2625 = vadd.f32 0.0, %v2624
        %v2626 = vpop.f32.mrb[0].mxu0
        %2627 = vmatprep.mubr.f32.mxu0 0.0
        %2628 = vmatmul.mubr.f32.gmra.mrb[0].mxu0 %v2403
        %v2629 = vpop.f32.mrb[0].mxu0
        %v2630 = vadd.f32 0.0, %v2629
        %v2631 = vpop.f32.mrb[0].mxu0
        %2632 = vdwg.mxu0
        %v2633 = vadd.f32 %v2361, %v2475
        %v2634 = vadd.f32 %v2362, %v2480
        %v2635 = vadd.f32 %v2363, %v2485
        %v2636 = vadd.f32 %v2364, %v2490
        %v2637 = vadd.f32 %v2365, %v2495
        %v2638 = vadd.f32 %v2366, %v2500
        %v2639 = vadd.f32 %v2367, %v2505
        %v2640 = vadd.f32 %v2368, %v2510
        %v2641 = vadd.f32 %v2369, %v2515
        %v2642 = vadd.f32 %v2370, %v2520
        %v2643 = vadd.f32 %v2371, %v2525
        %v2644 = vadd.f32 %v2372, %v2530
        %v2645 = vadd.f32 %v2373, %v2535
        %v2646 = vadd.f32 %v2374, %v2540
        %v2647 = vadd.f32 %v2375, %v2545
        %v2648 = vadd.f32 %v2376, %v2550
        %v2649 = vadd.f32 %v2377, %v2555
        %v2650 = vadd.f32 %v2378, %v2560
        %v2651 = vadd.f32 %v2379, %v2565
        %v2652 = vadd.f32 %v2380, %v2570
        %v2653 = vadd.f32 %v2381, %v2575
        %v2654 = vadd.f32 %v2382, %v2580
        %v2655 = vadd.f32 %v2383, %v2585
        %v2656 = vadd.f32 %v2384, %v2590
        %v2657 = vadd.f32 %v2385, %v2595
        %v2658 = vadd.f32 %v2386, %v2600
        %v2659 = vadd.f32 %v2387, %v2605
        %v2660 = vadd.f32 %v2388, %v2610
        %v2661 = vadd.f32 %v2389, %v2615
        %v2662 = vadd.f32 %v2390, %v2620
        %v2663 = vadd.f32 %v2391, %v2625
        %v2664 = vadd.f32 %v2392, %v2630
        %v2665 = vrot.slane %v186, 2
        %v2666 = vrot.slane %v187, 2
        %v2667 = vsel %vm907, %v2665, %v2666
        %v2668 = vrot.slane %v188, 2
        %v2669 = vsel %vm907, %v2666, %v2668
        %s2670 = scalar_lea.vmem %s1, 32
        %v2671 = vld [vmem:[%s2670] sm:$0xf]
        %v2672 = vsel %vm321, %v2667, 0
        %v2674 = vsel %vm321, %v2669, 0
        %v2677 = vsel %vm386, %v2671, 0
        %2679 = vmatprep.subr.mxu0 0.0
        %2680 = vmatpush1.msra.mxu0 %v2677
        %2681 = vmatprep.subr.mxu0 0.0
        %2682 = vmatpush1.msra.mxu0 0.0
        %2683 = vmatprep.subr.mxu0 0.0
        %2684 = vmatpush1.msra.mxu0 0.0
        %2685 = vmatprep.subr.mxu0 0.0
        %2686 = vmatpush1.msra.mxu0 0.0
        %2687 = vmatprep.subr.mxu0 0.0
        %2688 = vmatpush1.msra.mxu0 0.0
        %2689 = vmatprep.subr.mxu0 0.0
        %2690 = vmatpush1.msra.mxu0 0.0
        %2691 = vmatprep.subr.mxu0 0.0
        %2692 = vmatpush1.msra.mxu0 0.0
        %2693 = vmatprep.subr.mxu0 0.0
        %2694 = vmatpush1.msra.mxu0 0.0
        %2695 = vmatprep.subr.mxu0 0.0
        %2696 = vmatpush1.msra.mxu0 0.0
        %2697 = vmatprep.subr.mxu0 0.0
        %2698 = vmatpush1.msra.mxu0 0.0
        %2699 = vmatprep.subr.mxu0 0.0
        %2700 = vmatpush1.msra.mxu0 0.0
        %2701 = vmatprep.subr.mxu0 0.0
        %2702 = vmatpush1.msra.mxu0 0.0
        %2703 = vmatprep.subr.mxu0 0.0
        %2704 = vmatpush1.msra.mxu0 0.0
        %2705 = vmatprep.subr.mxu0 0.0
        %2706 = vmatpush1.msra.mxu0 0.0
        %2707 = vmatprep.subr.mxu0 0.0
        %2708 = vmatpush1.msra.mxu0 0.0
        %2709 = vmatprep.subr.mxu0 0.0
        %2710 = vmatpush1.msra.mxu0 0.0
        %2711 = vmatprep.subr.mxu0 0.0
        %2712 = vmatpush1.msra.mxu0 0.0
        %2713 = vmatprep.subr.mxu0 0.0
        %2714 = vmatpush1.msra.mxu0 0.0
        %2715 = vmatprep.subr.mxu0 0.0
        %2716 = vmatpush1.msra.mxu0 0.0
        %2717 = vmatprep.subr.mxu0 0.0
        %2718 = vmatpush1.msra.mxu0 0.0
        %2719 = vmatprep.subr.mxu0 0.0
        %2720 = vmatpush1.msra.mxu0 0.0
        %2721 = vmatprep.subr.mxu0 0.0
        %2722 = vmatpush1.msra.mxu0 0.0
        %2723 = vmatprep.subr.mxu0 0.0
        %2724 = vmatpush1.msra.mxu0 0.0
        %2725 = vmatprep.subr.mxu0 0.0
        %2726 = vmatpush1.msra.mxu0 0.0
        %2727 = vmatprep.subr.mxu0 0.0
        %2728 = vmatpush1.msra.mxu0 0.0
        %2729 = vmatprep.subr.mxu0 0.0
        %2730 = vmatpush1.msra.mxu0 0.0
        %2731 = vmatprep.subr.mxu0 0.0
        %2732 = vmatpush1.msra.mxu0 0.0
        %2733 = vmatprep.subr.mxu0 0.0
        %2734 = vmatpush1.msra.mxu0 0.0
        %2735 = vmatprep.subr.mxu0 0.0
        %2736 = vmatpush1.msra.mxu0 0.0
        %2737 = vmatprep.subr.mxu0 0.0
        %2738 = vmatpush1.msra.mxu0 0.0
        %2739 = vmatprep.subr.mxu0 0.0
        %2740 = vmatpush1.msra.mxu0 0.0
        %2741 = vmatprep.subr.mxu0 0.0
        %2742 = vmatpush1.msra.mxu0 0.0
        %2743 = vmatprep.mubr.f32.mxu0 0.0
        %2744 = vmatmul.mubr.f32.gmra.mrb[0].mxu0 %v998
        %v2745 = vpop.f32.mrb[0].mxu0
        %v2746 = vadd.f32 0.0, %v2745
        %v2747 = vpop.f32.mrb[0].mxu0
        %2748 = vmatprep.mubr.f32.mxu0 0.0
        %2749 = vmatmul.mubr.f32.gmra.mrb[0].mxu0 %v1000
        %v2750 = vpop.f32.mrb[0].mxu0
        %v2751 = vadd.f32 0.0, %v2750
        %v2752 = vpop.f32.mrb[0].mxu0
        %2753 = vmatprep.mubr.f32.mxu0 0.0
        %2754 = vmatmul.mubr.f32.gmra.mrb[0].mxu0 %v1002
        %v2755 = vpop.f32.mrb[0].mxu0
        %v2756 = vadd.f32 0.0, %v2755
        %v2757 = vpop.f32.mrb[0].mxu0
        %2758 = vmatprep.mubr.f32.mxu0 0.0
        %2759 = vmatmul.mubr.f32.gmra.mrb[0].mxu0 %v1004
        %v2760 = vpop.f32.mrb[0].mxu0
        %v2761 = vadd.f32 0.0, %v2760
        %v2762 = vpop.f32.mrb[0].mxu0
        %2763 = vmatprep.mubr.f32.mxu0 0.0
        %2764 = vmatmul.mubr.f32.gmra.mrb[0].mxu0 %v1006
        %v2765 = vpop.f32.mrb[0].mxu0
        %v2766 = vadd.f32 0.0, %v2765
        %v2767 = vpop.f32.mrb[0].mxu0
        %2768 = vmatprep.mubr.f32.mxu0 0.0
        %2769 = vmatmul.mubr.f32.gmra.mrb[0].mxu0 %v1008
        %v2770 = vpop.f32.mrb[0].mxu0
        %v2771 = vadd.f32 0.0, %v2770
        %v2772 = vpop.f32.mrb[0].mxu0
        %2773 = vmatprep.mubr.f32.mxu0 0.0
        %2774 = vmatmul.mubr.f32.gmra.mrb[0].mxu0 %v1010
        %v2775 = vpop.f32.mrb[0].mxu0
        %v2776 = vadd.f32 0.0, %v2775
        %v2777 = vpop.f32.mrb[0].mxu0
        %2778 = vmatprep.mubr.f32.mxu0 0.0
        %2779 = vmatmul.mubr.f32.gmra.mrb[0].mxu0 %v1012
        %v2780 = vpop.f32.mrb[0].mxu0
        %v2781 = vadd.f32 0.0, %v2780
        %v2782 = vpop.f32.mrb[0].mxu0
        %2783 = vmatprep.mubr.f32.mxu0 0.0
        %2784 = vmatmul.mubr.f32.gmra.mrb[0].mxu0 %v1014
        %v2785 = vpop.f32.mrb[0].mxu0
        %v2786 = vadd.f32 0.0, %v2785
        %v2787 = vpop.f32.mrb[0].mxu0
        %2788 = vmatprep.mubr.f32.mxu0 0.0
        %2789 = vmatmul.mubr.f32.gmra.mrb[0].mxu0 %v1016
        %v2790 = vpop.f32.mrb[0].mxu0
        %v2791 = vadd.f32 0.0, %v2790
        %v2792 = vpop.f32.mrb[0].mxu0
        %2793 = vmatprep.mubr.f32.mxu0 0.0
        %2794 = vmatmul.mubr.f32.gmra.mrb[0].mxu0 %v1018
        %v2795 = vpop.f32.mrb[0].mxu0
        %v2796 = vadd.f32 0.0, %v2795
        %v2797 = vpop.f32.mrb[0].mxu0
        %2798 = vmatprep.mubr.f32.mxu0 0.0
        %2799 = vmatmul.mubr.f32.gmra.mrb[0].mxu0 %v1020
        %v2800 = vpop.f32.mrb[0].mxu0
        %v2801 = vadd.f32 0.0, %v2800
        %v2802 = vpop.f32.mrb[0].mxu0
        %2803 = vmatprep.mubr.f32.mxu0 0.0
        %2804 = vmatmul.mubr.f32.gmra.mrb[0].mxu0 %v1022
        %v2805 = vpop.f32.mrb[0].mxu0
        %v2806 = vadd.f32 0.0, %v2805
        %v2807 = vpop.f32.mrb[0].mxu0
        %2808 = vmatprep.mubr.f32.mxu0 0.0
        %2809 = vmatmul.mubr.f32.gmra.mrb[0].mxu0 %v1024
        %v2810 = vpop.f32.mrb[0].mxu0
        %v2811 = vadd.f32 0.0, %v2810
        %v2812 = vpop.f32.mrb[0].mxu0
        %2813 = vmatprep.mubr.f32.mxu0 0.0
        %2814 = vmatmul.mubr.f32.gmra.mrb[0].mxu0 %v1026
        %v2815 = vpop.f32.mrb[0].mxu0
        %v2816 = vadd.f32 0.0, %v2815
        %v2817 = vpop.f32.mrb[0].mxu0
        %2818 = vmatprep.mubr.f32.mxu0 0.0
        %2819 = vmatmul.mubr.f32.gmra.mrb[0].mxu0 %v1028
        %v2820 = vpop.f32.mrb[0].mxu0
        %v2821 = vadd.f32 0.0, %v2820
        %v2822 = vpop.f32.mrb[0].mxu0
        %2823 = vmatprep.mubr.f32.mxu0 0.0
        %2824 = vmatmul.mubr.f32.gmra.mrb[0].mxu0 %v1030
        %v2825 = vpop.f32.mrb[0].mxu0
        %v2826 = vadd.f32 0.0, %v2825
        %v2827 = vpop.f32.mrb[0].mxu0
        %2828 = vmatprep.mubr.f32.mxu0 0.0
        %2829 = vmatmul.mubr.f32.gmra.mrb[0].mxu0 %v1032
        %v2830 = vpop.f32.mrb[0].mxu0
        %v2831 = vadd.f32 0.0, %v2830
        %v2832 = vpop.f32.mrb[0].mxu0
        %2833 = vmatprep.mubr.f32.mxu0 0.0
        %2834 = vmatmul.mubr.f32.gmra.mrb[0].mxu0 %v1034
        %v2835 = vpop.f32.mrb[0].mxu0
        %v2836 = vadd.f32 0.0, %v2835
        %v2837 = vpop.f32.mrb[0].mxu0
        %2838 = vmatprep.mubr.f32.mxu0 0.0
        %2839 = vmatmul.mubr.f32.gmra.mrb[0].mxu0 %v1036
        %v2840 = vpop.f32.mrb[0].mxu0
        %v2841 = vadd.f32 0.0, %v2840
        %v2842 = vpop.f32.mrb[0].mxu0
        %2843 = vmatprep.mubr.f32.mxu0 0.0
        %2844 = vmatmul.mubr.f32.gmra.mrb[0].mxu0 %v1038
        %v2845 = vpop.f32.mrb[0].mxu0
        %v2846 = vadd.f32 0.0, %v2845
        %v2847 = vpop.f32.mrb[0].mxu0
        %2848 = vmatprep.mubr.f32.mxu0 0.0
        %2849 = vmatmul.mubr.f32.gmra.mrb[0].mxu0 %v1040
        %v2850 = vpop.f32.mrb[0].mxu0
        %v2851 = vadd.f32 0.0, %v2850
        %v2852 = vpop.f32.mrb[0].mxu0
        %2853 = vmatprep.mubr.f32.mxu0 0.0
        %2854 = vmatmul.mubr.f32.gmra.mrb[0].mxu0 %v1042
        %v2855 = vpop.f32.mrb[0].mxu0
        %v2856 = vadd.f32 0.0, %v2855
        %v2857 = vpop.f32.mrb[0].mxu0
        %2858 = vmatprep.mubr.f32.mxu0 0.0
        %2859 = vmatmul.mubr.f32.gmra.mrb[0].mxu0 %v1044
        %v2860 = vpop.f32.mrb[0].mxu0
        %v2861 = vadd.f32 0.0, %v2860
        %v2862 = vpop.f32.mrb[0].mxu0
        %2863 = vmatprep.mubr.f32.mxu0 0.0
        %2864 = vmatmul.mubr.f32.gmra.mrb[0].mxu0 %v1046
        %v2865 = vpop.f32.mrb[0].mxu0
        %v2866 = vadd.f32 0.0, %v2865
        %v2867 = vpop.f32.mrb[0].mxu0
        %2868 = vmatprep.mubr.f32.mxu0 0.0
        %2869 = vmatmul.mubr.f32.gmra.mrb[0].mxu0 %v1048
        %v2870 = vpop.f32.mrb[0].mxu0
        %v2871 = vadd.f32 0.0, %v2870
        %v2872 = vpop.f32.mrb[0].mxu0
        %2873 = vmatprep.mubr.f32.mxu0 0.0
        %2874 = vmatmul.mubr.f32.gmra.mrb[0].mxu0 %v1050
        %v2875 = vpop.f32.mrb[0].mxu0
        %v2876 = vadd.f32 0.0, %v2875
        %v2877 = vpop.f32.mrb[0].mxu0
        %2878 = vmatprep.mubr.f32.mxu0 0.0
        %2879 = vmatmul.mubr.f32.gmra.mrb[0].mxu0 %v1052
        %v2880 = vpop.f32.mrb[0].mxu0
        %v2881 = vadd.f32 0.0, %v2880
        %v2882 = vpop.f32.mrb[0].mxu0
        %2883 = vmatprep.mubr.f32.mxu0 0.0
        %2884 = vmatmul.mubr.f32.gmra.mrb[0].mxu0 %v1861
        %v2885 = vpop.f32.mrb[0].mxu0
        %v2886 = vadd.f32 0.0, %v2885
        %v2887 = vpop.f32.mrb[0].mxu0
        %2888 = vmatprep.mubr.f32.mxu0 0.0
        %2889 = vmatmul.mubr.f32.gmra.mrb[0].mxu0 %v1863
        %v2890 = vpop.f32.mrb[0].mxu0
        %v2891 = vadd.f32 0.0, %v2890
        %v2892 = vpop.f32.mrb[0].mxu0
        %2893 = vmatprep.mubr.f32.mxu0 0.0
        %2894 = vmatmul.mubr.f32.gmra.mrb[0].mxu0 %v2672
        %v2895 = vpop.f32.mrb[0].mxu0
        %v2896 = vadd.f32 0.0, %v2895
        %v2897 = vpop.f32.mrb[0].mxu0
        %2898 = vmatprep.mubr.f32.mxu0 0.0
        %2899 = vmatmul.mubr.f32.gmra.mrb[0].mxu0 %v2674
        %v2900 = vpop.f32.mrb[0].mxu0
        %v2901 = vadd.f32 0.0, %v2900
        %v2902 = vpop.f32.mrb[0].mxu0
        %2903 = vdwg.mxu0
        %v2904 = vadd.f32 %v2633, %v2746
        %v2905 = vadd.f32 %v2634, %v2751
        %v2906 = vadd.f32 %v2635, %v2756
        %v2907 = vadd.f32 %v2636, %v2761
        %v2908 = vadd.f32 %v2637, %v2766
        %v2909 = vadd.f32 %v2638, %v2771
        %v2910 = vadd.f32 %v2639, %v2776
        %v2911 = vadd.f32 %v2640, %v2781
        %v2912 = vadd.f32 %v2641, %v2786
        %v2913 = vadd.f32 %v2642, %v2791
        %v2914 = vadd.f32 %v2643, %v2796
        %v2915 = vadd.f32 %v2644, %v2801
        %v2916 = vadd.f32 %v2645, %v2806
        %v2917 = vadd.f32 %v2646, %v2811
        %v2918 = vadd.f32 %v2647, %v2816
        %v2919 = vadd.f32 %v2648, %v2821
        %v2920 = vadd.f32 %v2649, %v2826
        %v2921 = vadd.f32 %v2650, %v2831
        %v2922 = vadd.f32 %v2651, %v2836
        %v2923 = vadd.f32 %v2652, %v2841
        %v2924 = vadd.f32 %v2653, %v2846
        %v2925 = vadd.f32 %v2654, %v2851
        %v2926 = vadd.f32 %v2655, %v2856
        %v2927 = vadd.f32 %v2656, %v2861
        %v2928 = vadd.f32 %v2657, %v2866
        %v2929 = vadd.f32 %v2658, %v2871
        %v2930 = vadd.f32 %v2659, %v2876
        %v2931 = vadd.f32 %v2660, %v2881
        %v2932 = vadd.f32 %v2661, %v2886
        %v2933 = vadd.f32 %v2662, %v2891
        %v2934 = vadd.f32 %v2663, %v2896
        %v2935 = vadd.f32 %v2664, %v2901
        %v2936 = vld [vmem:[#allocation2] sm:$0x1]
        %v2937 = vadd.f32 %v2904, %v2905
        %v2938 = vadd.f32 %v2937, %v2906
        %v2939 = vadd.f32 %v2938, %v2907
        %v2940 = vadd.f32 %v2939, %v2908
        %v2941 = vadd.f32 %v2940, %v2909
        %v2942 = vadd.f32 %v2941, %v2910
        %v2943 = vadd.f32 %v2942, %v2911
        %v2944 = vadd.f32 %v2943, %v2912
        %v2945 = vadd.f32 %v2944, %v2913
        %v2946 = vadd.f32 %v2945, %v2914
        %v2947 = vadd.f32 %v2946, %v2915
        %v2948 = vadd.f32 %v2947, %v2916
        %v2949 = vadd.f32 %v2948, %v2917
        %v2950 = vadd.f32 %v2949, %v2918
        %v2951 = vadd.f32 %v2950, %v2919
        %v2952 = vadd.f32 %v2951, %v2920
        %v2953 = vadd.f32 %v2952, %v2921
        %v2954 = vadd.f32 %v2953, %v2922
        %v2955 = vadd.f32 %v2954, %v2923
        %v2956 = vadd.f32 %v2955, %v2924
        %v2957 = vadd.f32 %v2956, %v2925
        %v2958 = vadd.f32 %v2957, %v2926
        %v2959 = vadd.f32 %v2958, %v2927
        %v2960 = vadd.f32 %v2959, %v2928
        %v2961 = vadd.f32 %v2960, %v2929
        %v2962 = vadd.f32 %v2961, %v2930
        %v2963 = vadd.f32 %v2962, %v2931
        %v2964 = vadd.f32 %v2963, %v2932
        %v2965 = vadd.f32 %v2964, %v2933
        %v2966 = vadd.f32 %v2965, %v2934
        %v2967 = vadd.f32 %v2966, %v2935
        %v2968 = vrot.slane %v2967, 4
        %v2969 = vadd.f32 %v2967, %v2968
        %v2970 = vrot.slane %v2969, 2
        %v2971 = vadd.f32 %v2969, %v2970
        %v2972 = vrot.slane %v2971, 1
        %v2973 = vadd.f32 %v2971, %v2972
        %v2974 = vadd.f32 %v2936, %v2973
        %2975 = vst [vmem:[#allocation2] sm:$0x1] %v2974
        %v2976 = vld [vmem:[#allocation2 + $0x1] sm:$0x1]
        %v2977 = vmul.f32 %v2904, %v2904
        %v2978 = vmul.f32 %v2905, %v2905
        %v2979 = vmul.f32 %v2906, %v2906
        %v2980 = vmul.f32 %v2907, %v2907
        %v2981 = vmul.f32 %v2908, %v2908
        %v2982 = vmul.f32 %v2909, %v2909
        %v2983 = vmul.f32 %v2910, %v2910
        %v2984 = vmul.f32 %v2911, %v2911
        %v2985 = vmul.f32 %v2912, %v2912
        %v2986 = vmul.f32 %v2913, %v2913
        %v2987 = vmul.f32 %v2914, %v2914
        %v2988 = vmul.f32 %v2915, %v2915
        %v2989 = vmul.f32 %v2916, %v2916
        %v2990 = vmul.f32 %v2917, %v2917
        %v2991 = vmul.f32 %v2918, %v2918
        %v2992 = vmul.f32 %v2919, %v2919
        %v2993 = vmul.f32 %v2920, %v2920
        %v2994 = vmul.f32 %v2921, %v2921
        %v2995 = vmul.f32 %v2922, %v2922
        %v2996 = vmul.f32 %v2923, %v2923
        %v2997 = vmul.f32 %v2924, %v2924
        %v2998 = vmul.f32 %v2925, %v2925
        %v2999 = vmul.f32 %v2926, %v2926
        %v3000 = vmul.f32 %v2927, %v2927
        %v3001 = vmul.f32 %v2928, %v2928
        %v3002 = vmul.f32 %v2929, %v2929
        %v3003 = vmul.f32 %v2930, %v2930
        %v3004 = vmul.f32 %v2931, %v2931
        %v3005 = vmul.f32 %v2932, %v2932
        %v3006 = vmul.f32 %v2933, %v2933
        %v3007 = vmul.f32 %v2934, %v2934
        %v3008 = vmul.f32 %v2935, %v2935
        %v3009 = vadd.f32 %v2977, %v2978
        %v3010 = vadd.f32 %v3009, %v2979
        %v3011 = vadd.f32 %v3010, %v2980
        %v3012 = vadd.f32 %v3011, %v2981
        %v3013 = vadd.f32 %v3012, %v2982
        %v3014 = vadd.f32 %v3013, %v2983
        %v3015 = vadd.f32 %v3014, %v2984
        %v3016 = vadd.f32 %v3015, %v2985
        %v3017 = vadd.f32 %v3016, %v2986
        %v3018 = vadd.f32 %v3017, %v2987
        %v3019 = vadd.f32 %v3018, %v2988
        %v3020 = vadd.f32 %v3019, %v2989
        %v3021 = vadd.f32 %v3020, %v2990
        %v3022 = vadd.f32 %v3021, %v2991
        %v3023 = vadd.f32 %v3022, %v2992
        %v3024 = vadd.f32 %v3023, %v2993
        %v3025 = vadd.f32 %v3024, %v2994
        %v3026 = vadd.f32 %v3025, %v2995
        %v3027 = vadd.f32 %v3026, %v2996
        %v3028 = vadd.f32 %v3027, %v2997
        %v3029 = vadd.f32 %v3028, %v2998
        %v3030 = vadd.f32 %v3029, %v2999
        %v3031 = vadd.f32 %v3030, %v3000
        %v3032 = vadd.f32 %v3031, %v3001
        %v3033 = vadd.f32 %v3032, %v3002
        %v3034 = vadd.f32 %v3033, %v3003
        %v3035 = vadd.f32 %v3034, %v3004
        %v3036 = vadd.f32 %v3035, %v3005
        %v3037 = vadd.f32 %v3036, %v3006
        %v3038 = vadd.f32 %v3037, %v3007
        %v3039 = vadd.f32 %v3038, %v3008
        %v3040 = vrot.slane %v3039, 4
        %v3041 = vadd.f32 %v3039, %v3040
        %v3042 = vrot.slane %v3041, 2
        %v3043 = vadd.f32 %v3041, %v3042
        %v3044 = vrot.slane %v3043, 1
        %v3045 = vadd.f32 %v3043, %v3044
        %v3046 = vadd.f32 %v2976, %v3045
        %3047 = vst [vmem:[#allocation2 + $0x1] sm:$0x1] %v3046
        // Predicated region
        $region33: #{tpu_custom_call.1} parent=27 // pred_check
          %p3048 = pneg %p74
        $region34: #{tpu_custom_call.1} parent=27 // pred_check_branch
          %3050 = sbr.rel (%p3048) target = $region36
        $region35: #{tpu_custom_call.1} parent=27 // pred_region
          %s3052 = ssub.s32 32, 32
          %3053 = vsyncadd [#allocation3], %s3052
          %s3055 = sshll.u32 [#allocation2], 4
          %s3056 = int_to_ptr.vmem [resolvable:$true] %s3055
          %3058 = dma.vmem_to_hbm [thread:$0]  %s3056, 32, %s2, [#allocation3]
        $region36: #{tpu_custom_call.1} parent=27 // pred_fallthru
          _
        // Predicated region
        $region37: #{tpu_custom_call.1} parent=27 // pred_check
          %p3059 = pneg %p74
        $region38: #{tpu_custom_call.1} parent=27 // pred_check_branch
          %3061 = sbr.rel (%p3059) target = $region40
        $region39: #{tpu_custom_call.1} parent=27 // pred_region
          %3062 = dma.done [#allocation3], 32
        $region40: #{tpu_custom_call.1} parent=27 // pred_fallthru
          _
      $region28: #{tpu_custom_call.1} parent=5 // pred_fallthru
        _
      %p3063 = scmp.le.s32.totalorder 2, %s9
      // Predicated region
      $region41: #{tpu_custom_call.1} parent=5 // pred_check
        %p3064 = pneg %p3063
      $region42: #{tpu_custom_call.1} parent=5 // pred_check_branch
        %3066 = sbr.rel (%p3064) target = $region44
      $region43: #{tpu_custom_call.1} parent=5 // pred_region
        %s3067 = ssub.s32 %s9, 2
      $region44: #{tpu_custom_call.1} parent=5 // pred_fallthru
        _
    $region6: #{tpu_custom_call.1} parent=1 // loop_footer
      %s13 = sadd.s32 1, %s9
    $region7: #{tpu_custom_call.1} parent=1 // loop_footer_branch
      %8 = sbr.rel target = $region3
    $region8: #{tpu_custom_call.1} parent=1 // loop_exit
      _
    %3068 = vsyncpa [#allocation3], 1
    %s3069 = scalar_lea.sflag [#allocation3], 1
    %3070 = vsyncpa %s3069, 1

</llo_original>
